<compile_context>
chip_gen: v7x
topology: tpu7x:2x2x1
jax: 0.10.0
libtpu: 0.0.40
codegen_flags: <defaults>
</compile_context>

<pallas_src>
import jax
import jax.numpy as jnp
from jax.experimental import pallas as pl
from jax.experimental.pallas import tpu as pltpu


# ---------------------------------------------------------------------------
# Kernel 1: fused 3x3 conv (padding=1) + bias + ReLU + 2x2 maxpool (stride 2)
# ---------------------------------------------------------------------------
def _conv3x3_relu_pool_kernel(xd_ref, w_ref, b_ref, o_ref):
    """One batch element per grid step.

    xd_ref : (1, H+2, Wh, K)      sliding window of 4 padded columns per output
                                  pair, channels-last (K = pad(4*Cin) to mult. 8)
    w_ref  : (3, K, 2*Cout)       per-dy weights; first Cout output lanes compute
                                  the even output columns, last Cout the odd ones
    b_ref  : (1, 2*Cout)
    o_ref  : (1, H//2, Wh, Cout)  2x2 max-pooled output
    """
    H = xd_ref.shape[1] - 2
    Wh = xd_ref.shape[2]
    K = xd_ref.shape[3]
    C2 = w_ref.shape[2]
    Cout = C2 // 2
    M = H * Wh

    xd = xd_ref[0]                                   # (H+2, Wh, K)
    acc = jnp.zeros((M, C2), dtype=jnp.float32)
    for dy in range(3):                              # 3 deep matmuls (was 18 shallow)
        # slice is sublane-aligned (dy * Wh, Wh % 8 == 0); reshape is layout-free
        lhs = xd[dy:dy + H].reshape(M, K)
        acc = acc + jnp.dot(lhs, w_ref[dy], preferred_element_type=jnp.float32)

    z = jnp.maximum(acc + b_ref[...], 0.0)           # bias + ReLU, (M, 2*Cout)
    # 2x2 max pool: W direction = elementwise max of the even/odd lane halves,
    # H direction = max of two tile-aligned row groups (pure VPU, no strided pool)
    colmax = jnp.maximum(z[:, :Cout], z[:, Cout:])   # (M, Cout)
    rows = colmax.reshape(H // 2, 2 * Wh, Cout)      # aligned split of the row dim
    pooled = jnp.maximum(rows[:, :Wh, :], rows[:, Wh:, :])   # (H//2, Wh, Cout)
    o_ref[0] = pooled.astype(o_ref.dtype)


def conv3x3_relu_pool(x_nhwc, w_hwio, b):
    N, H, W, Cin = x_nhwc.shape
    Cout = w_hwio.shape[3]
    Wh = W // 2
    assert H % 2 == 0 and W % 2 == 0 and Wh % 8 == 0

    # ---- glue (plain JAX, cheap): build the 4-column sliding window ----------
    # padded width W+2 == 2*(Wh+1), so pairing adjacent padded columns is a free
    # row-major reshape; the 4-wide window is one concat (2x input bytes, no 8x
    # zero-channel padding).
    xp = jnp.pad(x_nhwc, ((0, 0), (1, 1), (1, 1), (0, 0)))
    xc = xp.reshape(N, H + 2, Wh + 1, 2 * Cin)
    xd = jnp.concatenate([xc[:, :, :Wh, :], xc[:, :, 1:, :]], axis=-1)  # (N,H+2,Wh,4Cin)

    # ---- weights: (3, 4*Cin, 2*Cout) --------------------------------------
    # column-tap block k multiplies w[dy, k] for the even outputs (first Cout
    # lanes) and w[dy, k-1] for the odd outputs (last Cout lanes); zero blocks
    # elsewhere.  Even/odd therefore share a single matmul per dy.
    zcol = jnp.zeros((3, 1, Cin, Cout), w_hwio.dtype)
    w_even = jnp.concatenate([w_hwio, zcol], axis=1)        # (3,4,Cin,Cout)
    w_odd = jnp.concatenate([zcol, w_hwio], axis=1)         # (3,4,Cin,Cout)
    w_big = jnp.concatenate([w_even, w_odd], axis=-1).reshape(3, 4 * Cin, 2 * Cout)
    b2 = jnp.concatenate([b, b]).reshape(1, 2 * Cout)

    # round the contraction dim up to a multiple of 8 (conv1: 4 -> 8)
    K = 4 * Cin
    Kp = ((K + 7) // 8) * 8
    if Kp != K:
        xd = jnp.pad(xd, ((0, 0), (0, 0), (0, 0), (0, Kp - K)))
        w_big = jnp.pad(w_big, ((0, 0), (0, Kp - K), (0, 0)))

    return pl.pallas_call(
        _conv3x3_relu_pool_kernel,
        out_shape=jax.ShapeDtypeStruct((N, H // 2, Wh, Cout), x_nhwc.dtype),
        grid=(N,),
        in_specs=[
            pl.BlockSpec((1, H + 2, Wh, Kp), lambda n: (n, 0, 0, 0)),
            pl.BlockSpec((3, Kp, 2 * Cout), lambda n: (0, 0, 0)),
            pl.BlockSpec((1, 2 * Cout), lambda n: (0, 0)),
        ],
        out_specs=pl.BlockSpec((1, H // 2, Wh, Cout), lambda n: (n, 0, 0, 0)),
        compiler_params=pltpu.CompilerParams(
            dimension_semantics=("parallel",)),     # batch-parallel (2 TCs on v7x)
    )(xd, w_big, b2)


# ---------------------------------------------------------------------------
# Kernel 2: fused MLP head = fc1 (K-tiled, bf16) + bias + ReLU + dropout(eval) +
#           fc2 + bias, single pallas_call.
# ---------------------------------------------------------------------------
def _fused_mlp_kernel(x_ref, w1_ref, b1_ref, w2_ref, b2_ref, o_ref, acc_ref):
    k = pl.program_id(0)

    @pl.when(k == 0)
    def _init():
        acc_ref[...] = jnp.zeros_like(acc_ref)

    acc_ref[...] += jnp.dot(x_ref[...], w1_ref[...],
                            preferred_element_type=jnp.float32)

    @pl.when(k == pl.num_programs(0) - 1)
    def _finalize():
        h = jnp.maximum(acc_ref[...] + b1_ref[...], 0.0)      # fc1 bias + ReLU
        # TODO(synk): nn.Dropout(0.5) is identity in eval mode; training-mode
        # stochastic dropout (pltpu.prng_*) is not implemented here.
        y = jnp.dot(h, w2_ref[...], preferred_element_type=jnp.float32) + b2_ref[...]
        o_ref[...] = y.astype(o_ref.dtype)


def fused_mlp(x, w1, b1, w2, b2, *, block_k=1024):
    N, K = x.shape
    F = w1.shape[1]
    C = w2.shape[1]
    block_k = block_k if K % block_k == 0 else K
    nk = K // block_k

    # bf16 operands for the big matmul (f32 accumulation): halves HBM weight bytes
    xb = x.astype(jnp.bfloat16)
    w1b = w1.astype(jnp.bfloat16)

    return pl.pallas_call(
        _fused_mlp_kernel,
        out_shape=jax.ShapeDtypeStruct((N, C), jnp.float32),
        grid=(nk,),
        in_specs=[
            pl.BlockSpec((N, block_k), lambda k: (0, k)),
            pl.BlockSpec((block_k, F), lambda k: (k, 0)),
            pl.BlockSpec((1, F), lambda k: (0, 0)),
            pl.BlockSpec((F, C), lambda k: (0, 0)),
            pl.BlockSpec((1, C), lambda k: (0, 0)),
        ],
        out_specs=pl.BlockSpec((N, C), lambda k: (0, 0)),
        scratch_shapes=[pltpu.VMEM((N, F), jnp.float32)],
        compiler_params=pltpu.CompilerParams(
            dimension_semantics=("arbitrary",),      # K is a reduction axis
            vmem_limit_bytes=32 * 1024 * 1024),
    )(xb, w1b, b1.reshape(1, F), w2, b2.reshape(1, C))


# ---------------------------------------------------------------------------
# Full forward pass (PyTorch semantics); param/layout glue in plain JAX.
# ---------------------------------------------------------------------------
def medical_cnn_forward(x_nchw, params):
    x = jnp.transpose(x_nchw, (0, 2, 3, 1))                       # NCHW -> NHWC
    x = conv3x3_relu_pool(x, params["conv1_w"], params["conv1_b"])
    x = conv3x3_relu_pool(x, params["conv2_w"], params["conv2_b"])
    # Flatten in torch's NCHW (C, H, W) order to match x.view(-1, C*H*W)
    x = jnp.transpose(x, (0, 3, 1, 2)).reshape(x.shape[0], -1)
    return fused_mlp(x, params["fc1_w"], params["fc1_b"],
                     params["fc2_w"], params["fc2_b"])


def init_params(key, H, W, num_classes=2):
    ks = jax.random.split(key, 6)
    feat = 64 * (H // 4) * (W // 4)

    def u(k, shape, fan_in):
        bound = 1.0 / (fan_in ** 0.5)
        return jax.random.uniform(k, shape, jnp.float32, -bound, bound)

    return {
        "conv1_w": u(ks[0], (3, 3, 1, 32), 9 * 1),
        "conv1_b": u(ks[1], (32,), 9 * 1),
        "conv2_w": u(ks[2], (3, 3, 32, 64), 9 * 32),
        "conv2_b": u(ks[3], (64,), 9 * 32),
        "fc1_w": u(ks[4], (feat, 512), feat),
        "fc1_b": jnp.zeros((512,), jnp.float32),
        "fc2_w": u(ks[5], (512, num_classes), 512),
        "fc2_b": jnp.zeros((num_classes,), jnp.float32),
    }


# Pure-JAX f32 reference for a numerical sanity check (kernel uses bf16 for fc1,
# hence the modest tolerance).
def _reference_forward(x_nchw, params):
    x = jnp.transpose(x_nchw, (0, 2, 3, 1))
    dn = ("NHWC", "HWIO", "NHWC")
    for wk, bk in (("conv1_w", "conv1_b"), ("conv2_w", "conv2_b")):
        x = jax.lax.conv_general_dilated(
            x, params[wk], (1, 1), ((1, 1), (1, 1)), dimension_numbers=dn)
        x = jax.nn.relu(x + params[bk])
        N, H, W, C = x.shape
        x = x.reshape(N, H // 2, 2, W // 2, 2, C).max(axis=(2, 4))
    x = jnp.transpose(x, (0, 3, 1, 2)).reshape(x.shape[0], -1)
    x = jax.nn.relu(x @ params["fc1_w"] + params["fc1_b"])
    return x @ params["fc2_w"] + params["fc2_b"]


if __name__ == "__main__":
    key = jax.random.PRNGKey(0)
    N, H, W = 2, 32, 32
    num_classes = 2

    kp, kx = jax.random.split(key)
    params = init_params(kp, H, W, num_classes)
    x = jax.random.normal(kx, (N, 1, H, W), jnp.float32)

    out = jax.jit(medical_cnn_forward)(x, params)
    jax.block_until_ready(out)
    assert out.shape == (N, num_classes), out.shape

    ref = _reference_forward(x, params)
    assert jnp.allclose(out, ref, rtol=2e-2, atol=2e-2), (out, ref)

    print("KERNEL_OK")
</pallas_src>

<mosaic_0001>
module attributes {stable_mosaic.version = 11 : i64} {
  func.func @_conv3x3_relu_pool_kernel(%arg0: i32, %arg1: memref<1x34x16x8xf32, #tpu.memory_space<vmem>>, %arg2: memref<3x8x64xf32, #tpu.memory_space<vmem>>, %arg3: memref<1x64xf32, #tpu.memory_space<vmem>>, %arg4: memref<1x16x16x32xf32, #tpu.memory_space<vmem>>) attributes {dimension_semantics = [#tpu.dimension_semantics<parallel>], iteration_bounds = array<i64: 2>, scalar_prefetch = 0 : i64, scratch_operands = 0 : i64, tpu.core_type = #tpu.core_type<tc>, window_params = [{transform_indices = @transform_0, window_bounds = array<i64: 1, 34, 16, 8>}, {pipeline_mode = #tpu.pipeline_mode<synchronous>, transform_indices = @transform_1, window_bounds = array<i64: 3, 8, 64>}, {pipeline_mode = #tpu.pipeline_mode<synchronous>, transform_indices = @transform_2, window_bounds = array<i64: 1, 64>}, {transform_indices = @transform_3, window_bounds = array<i64: 1, 16, 16, 32>}]} {
    %c0 = arith.constant 0 : index
    %c0_0 = arith.constant 0 : index
    %c0_1 = arith.constant 0 : index
    %c0_2 = arith.constant 0 : index
    %0 = vector.load %arg1[%c0, %c0_0, %c0_1, %c0_2] : memref<1x34x16x8xf32, #tpu.memory_space<vmem>>, vector<1x34x16x8xf32>
    %1 = vector.shape_cast %0 : vector<1x34x16x8xf32> to vector<34x16x8xf32>
    %cst = arith.constant 0.000000e+00 : f32
    %2 = vector.broadcast %cst : f32 to vector<512x64xf32>
    %3 = vector.extract_strided_slice %1 {offsets = [0, 0, 0], sizes = [32, 16, 8], strides = [1, 1, 1]} : vector<34x16x8xf32> to vector<32x16x8xf32>
    %4 = vector.shape_cast %3 : vector<32x16x8xf32> to vector<512x8xf32>
    %c0_3 = arith.constant 0 : index
    %c0_4 = arith.constant 0 : index
    %c0_5 = arith.constant 0 : index
    %5 = vector.load %arg2[%c0_3, %c0_4, %c0_5] : memref<3x8x64xf32, #tpu.memory_space<vmem>>, vector<1x8x64xf32>
    %6 = vector.shape_cast %5 : vector<1x8x64xf32> to vector<8x64xf32>
    %cst_6 = arith.constant dense<0.000000e+00> : vector<512x64xf32>
    %7 = tpu.matmul %4, %6, %cst_6 {dimension_numbers = #tpu.dot_dimension_numbers<[1], [0], [0], [1], [0, 0, 1, 1], [], []>} : vector<512x8xf32>, vector<8x64xf32>, vector<512x64xf32> -> vector<512x64xf32>
    %8 = arith.addf %2, %7 : vector<512x64xf32>
    %9 = vector.extract_strided_slice %1 {offsets = [1, 0, 0], sizes = [32, 16, 8], strides = [1, 1, 1]} : vector<34x16x8xf32> to vector<32x16x8xf32>
    %10 = vector.shape_cast %9 : vector<32x16x8xf32> to vector<512x8xf32>
    %c1 = arith.constant 1 : index
    %c0_7 = arith.constant 0 : index
    %c0_8 = arith.constant 0 : index
    %11 = vector.load %arg2[%c1, %c0_7, %c0_8] : memref<3x8x64xf32, #tpu.memory_space<vmem>>, vector<1x8x64xf32>
    %12 = vector.shape_cast %11 : vector<1x8x64xf32> to vector<8x64xf32>
    %cst_9 = arith.constant dense<0.000000e+00> : vector<512x64xf32>
    %13 = tpu.matmul %10, %12, %cst_9 {dimension_numbers = #tpu.dot_dimension_numbers<[1], [0], [0], [1], [0, 0, 1, 1], [], []>} : vector<512x8xf32>, vector<8x64xf32>, vector<512x64xf32> -> vector<512x64xf32>
    %14 = arith.addf %8, %13 : vector<512x64xf32>
    %15 = vector.extract_strided_slice %1 {offsets = [2, 0, 0], sizes = [32, 16, 8], strides = [1, 1, 1]} : vector<34x16x8xf32> to vector<32x16x8xf32>
    %16 = vector.shape_cast %15 : vector<32x16x8xf32> to vector<512x8xf32>
    %c2 = arith.constant 2 : index
    %c0_10 = arith.constant 0 : index
    %c0_11 = arith.constant 0 : index
    %17 = vector.load %arg2[%c2, %c0_10, %c0_11] : memref<3x8x64xf32, #tpu.memory_space<vmem>>, vector<1x8x64xf32>
    %18 = vector.shape_cast %17 : vector<1x8x64xf32> to vector<8x64xf32>
    %cst_12 = arith.constant dense<0.000000e+00> : vector<512x64xf32>
    %19 = tpu.matmul %16, %18, %cst_12 {dimension_numbers = #tpu.dot_dimension_numbers<[1], [0], [0], [1], [0, 0, 1, 1], [], []>} : vector<512x8xf32>, vector<8x64xf32>, vector<512x64xf32> -> vector<512x64xf32>
    %20 = arith.addf %14, %19 : vector<512x64xf32>
    %c0_13 = arith.constant 0 : index
    %c0_14 = arith.constant 0 : index
    %21 = vector.load %arg3[%c0_13, %c0_14] : memref<1x64xf32, #tpu.memory_space<vmem>>, vector<1x64xf32>
    %22 = vector.broadcast %21 : vector<1x64xf32> to vector<512x64xf32>
    %23 = arith.addf %20, %22 : vector<512x64xf32>
    %cst_15 = arith.constant 0.000000e+00 : f32
    %24 = vector.broadcast %cst_15 : f32 to vector<512x64xf32>
    %25 = arith.maximumf %23, %24 : vector<512x64xf32>
    %26 = vector.extract_strided_slice %25 {offsets = [0, 0], sizes = [512, 32], strides = [1, 1]} : vector<512x64xf32> to vector<512x32xf32>
    %27 = vector.extract_strided_slice %25 {offsets = [0, 32], sizes = [512, 32], strides = [1, 1]} : vector<512x64xf32> to vector<512x32xf32>
    %28 = arith.maximumf %26, %27 : vector<512x32xf32>
    %29 = vector.shape_cast %28 : vector<512x32xf32> to vector<16x32x32xf32>
    %30 = vector.extract_strided_slice %29 {offsets = [0, 0, 0], sizes = [16, 16, 32], strides = [1, 1, 1]} : vector<16x32x32xf32> to vector<16x16x32xf32>
    %31 = vector.extract_strided_slice %29 {offsets = [0, 16, 0], sizes = [16, 16, 32], strides = [1, 1, 1]} : vector<16x32x32xf32> to vector<16x16x32xf32>
    %32 = arith.maximumf %30, %31 : vector<16x16x32xf32>
    %c0_16 = arith.constant 0 : index
    %c0_17 = arith.constant 0 : index
    %c0_18 = arith.constant 0 : index
    %c0_19 = arith.constant 0 : index
    %33 = vector.load %arg4[%c0_16, %c0_17, %c0_18, %c0_19] : memref<1x16x16x32xf32, #tpu.memory_space<vmem>>, vector<1x16x16x32xf32>
    %34 = vector.shape_cast %33 : vector<1x16x16x32xf32> to vector<16x16x32xf32>
    %35 = vector.shape_cast %32 : vector<16x16x32xf32> to vector<1x16x16x32xf32>
    tpu.vector_store %arg4[%c0_16, %c0_17, %c0_18, %c0_19], %35 {strides = array<i32>} : memref<1x16x16x32xf32, #tpu.memory_space<vmem>>, vector<1x16x16x32xf32>,
    return
  }
  func.func @transform_0(%arg0: i32) -> (i32, i32, i32, i32) {
    %c0_i32 = arith.constant 0 : i32
    %c0_i32_0 = arith.constant 0 : i32
    %c0_i32_1 = arith.constant 0 : i32
    %c0_i32_2 = arith.constant 0 : i32
    return %arg0, %c0_i32, %c0_i32_0, %c0_i32_1 : i32, i32, i32, i32
  }
  func.func @transform_1(%arg0: i32) -> (i32, i32, i32) {
    %c0_i32 = arith.constant 0 : i32
    %c0_i32_0 = arith.constant 0 : i32
    %c0_i32_1 = arith.constant 0 : i32
    %c0_i32_2 = arith.constant 0 : i32
    return %c0_i32, %c0_i32_0, %c0_i32_1 : i32, i32, i32
  }
  func.func @transform_2(%arg0: i32) -> (i32, i32) {
    %c0_i32 = arith.constant 0 : i32
    %c0_i32_0 = arith.constant 0 : i32
    %c0_i32_1 = arith.constant 0 : i32
    return %c0_i32, %c0_i32_0 : i32, i32
  }
  func.func @transform_3(%arg0: i32) -> (i32, i32, i32, i32) {
    %c0_i32 = arith.constant 0 : i32
    %c0_i32_0 = arith.constant 0 : i32
    %c0_i32_1 = arith.constant 0 : i32
    %c0_i32_2 = arith.constant 0 : i32
    return %arg0, %c0_i32, %c0_i32_0, %c0_i32_1 : i32, i32, i32, i32
  }
}

module attributes {stable_mosaic.version = 11 : i64} {
  func.func @_conv3x3_relu_pool_kernel(%arg0: i32, %arg1: memref<1x18x8x128xf32, #tpu.memory_space<vmem>>, %arg2: memref<3x128x128xf32, #tpu.memory_space<vmem>>, %arg3: memref<1x128xf32, #tpu.memory_space<vmem>>, %arg4: memref<1x8x8x64xf32, #tpu.memory_space<vmem>>) attributes {dimension_semantics = [#tpu.dimension_semantics<parallel>], iteration_bounds = array<i64: 2>, scalar_prefetch = 0 : i64, scratch_operands = 0 : i64, tpu.core_type = #tpu.core_type<tc>, window_params = [{transform_indices = @transform_0, window_bounds = array<i64: 1, 18, 8, 128>}, {pipeline_mode = #tpu.pipeline_mode<synchronous>, transform_indices = @transform_1, window_bounds = array<i64: 3, 128, 128>}, {pipeline_mode = #tpu.pipeline_mode<synchronous>, transform_indices = @transform_2, window_bounds = array<i64: 1, 128>}, {transform_indices = @transform_3, window_bounds = array<i64: 1, 8, 8, 64>}]} {
    %c0 = arith.constant 0 : index
    %c0_0 = arith.constant 0 : index
    %c0_1 = arith.constant 0 : index
    %c0_2 = arith.constant 0 : index
    %0 = vector.load %arg1[%c0, %c0_0, %c0_1, %c0_2] : memref<1x18x8x128xf32, #tpu.memory_space<vmem>>, vector<1x18x8x128xf32>
    %1 = vector.shape_cast %0 : vector<1x18x8x128xf32> to vector<18x8x128xf32>
    %cst = arith.constant 0.000000e+00 : f32
    %2 = vector.broadcast %cst : f32 to vector<128x128xf32>
    %3 = vector.extract_strided_slice %1 {offsets = [0, 0, 0], sizes = [16, 8, 128], strides = [1, 1, 1]} : vector<18x8x128xf32> to vector<16x8x128xf32>
    %4 = vector.shape_cast %3 : vector<16x8x128xf32> to vector<128x128xf32>
    %c0_3 = arith.constant 0 : index
    %c0_4 = arith.constant 0 : index
    %c0_5 = arith.constant 0 : index
    %5 = vector.load %arg2[%c0_3, %c0_4, %c0_5] : memref<3x128x128xf32, #tpu.memory_space<vmem>>, vector<1x128x128xf32>
    %6 = vector.shape_cast %5 : vector<1x128x128xf32> to vector<128x128xf32>
    %cst_6 = arith.constant dense<0.000000e+00> : vector<128x128xf32>
    %7 = tpu.matmul %4, %6, %cst_6 {dimension_numbers = #tpu.dot_dimension_numbers<[1], [0], [0], [1], [0, 0, 1, 1], [], []>} : vector<128x128xf32>, vector<128x128xf32>, vector<128x128xf32> -> vector<128x128xf32>
    %8 = arith.addf %2, %7 : vector<128x128xf32>
    %9 = vector.extract_strided_slice %1 {offsets = [1, 0, 0], sizes = [16, 8, 128], strides = [1, 1, 1]} : vector<18x8x128xf32> to vector<16x8x128xf32>
    %10 = vector.shape_cast %9 : vector<16x8x128xf32> to vector<128x128xf32>
    %c1 = arith.constant 1 : index
    %c0_7 = arith.constant 0 : index
    %c0_8 = arith.constant 0 : index
    %11 = vector.load %arg2[%c1, %c0_7, %c0_8] : memref<3x128x128xf32, #tpu.memory_space<vmem>>, vector<1x128x128xf32>
    %12 = vector.shape_cast %11 : vector<1x128x128xf32> to vector<128x128xf32>
    %cst_9 = arith.constant dense<0.000000e+00> : vector<128x128xf32>
    %13 = tpu.matmul %10, %12, %cst_9 {dimension_numbers = #tpu.dot_dimension_numbers<[1], [0], [0], [1], [0, 0, 1, 1], [], []>} : vector<128x128xf32>, vector<128x128xf32>, vector<128x128xf32> -> vector<128x128xf32>
    %14 = arith.addf %8, %13 : vector<128x128xf32>
    %15 = vector.extract_strided_slice %1 {offsets = [2, 0, 0], sizes = [16, 8, 128], strides = [1, 1, 1]} : vector<18x8x128xf32> to vector<16x8x128xf32>
    %16 = vector.shape_cast %15 : vector<16x8x128xf32> to vector<128x128xf32>
    %c2 = arith.constant 2 : index
    %c0_10 = arith.constant 0 : index
    %c0_11 = arith.constant 0 : index
    %17 = vector.load %arg2[%c2, %c0_10, %c0_11] : memref<3x128x128xf32, #tpu.memory_space<vmem>>, vector<1x128x128xf32>
    %18 = vector.shape_cast %17 : vector<1x128x128xf32> to vector<128x128xf32>
    %cst_12 = arith.constant dense<0.000000e+00> : vector<128x128xf32>
    %19 = tpu.matmul %16, %18, %cst_12 {dimension_numbers = #tpu.dot_dimension_numbers<[1], [0], [0], [1], [0, 0, 1, 1], [], []>} : vector<128x128xf32>, vector<128x128xf32>, vector<128x128xf32> -> vector<128x128xf32>
    %20 = arith.addf %14, %19 : vector<128x128xf32>
    %c0_13 = arith.constant 0 : index
    %c0_14 = arith.constant 0 : index
    %21 = vector.load %arg3[%c0_13, %c0_14] : memref<1x128xf32, #tpu.memory_space<vmem>>, vector<1x128xf32>
    %22 = vector.broadcast %21 : vector<1x128xf32> to vector<128x128xf32>
    %23 = arith.addf %20, %22 : vector<128x128xf32>
    %cst_15 = arith.constant 0.000000e+00 : f32
    %24 = vector.broadcast %cst_15 : f32 to vector<128x128xf32>
    %25 = arith.maximumf %23, %24 : vector<128x128xf32>
    %26 = vector.extract_strided_slice %25 {offsets = [0, 0], sizes = [128, 64], strides = [1, 1]} : vector<128x128xf32> to vector<128x64xf32>
    %27 = vector.extract_strided_slice %25 {offsets = [0, 64], sizes = [128, 64], strides = [1, 1]} : vector<128x128xf32> to vector<128x64xf32>
    %28 = arith.maximumf %26, %27 : vector<128x64xf32>
    %29 = vector.shape_cast %28 : vector<128x64xf32> to vector<8x16x64xf32>
    %30 = vector.extract_strided_slice %29 {offsets = [0, 0, 0], sizes = [8, 8, 64], strides = [1, 1, 1]} : vector<8x16x64xf32> to vector<8x8x64xf32>
    %31 = vector.extract_strided_slice %29 {offsets = [0, 8, 0], sizes = [8, 8, 64], strides = [1, 1, 1]} : vector<8x16x64xf32> to vector<8x8x64xf32>
    %32 = arith.maximumf %30, %31 : vector<8x8x64xf32>
    %c0_16 = arith.constant 0 : index
    %c0_17 = arith.constant 0 : index
    %c0_18 = arith.constant 0 : index
    %c0_19 = arith.constant 0 : index
    %33 = vector.load %arg4[%c0_16, %c0_17, %c0_18, %c0_19] : memref<1x8x8x64xf32, #tpu.memory_space<vmem>>, vector<1x8x8x64xf32>
    %34 = vector.shape_cast %33 : vector<1x8x8x64xf32> to vector<8x8x64xf32>
    %35 = vector.shape_cast %32 : vector<8x8x64xf32> to vector<1x8x8x64xf32>
    tpu.vector_store %arg4[%c0_16, %c0_17, %c0_18, %c0_19], %35 {strides = array<i32>} : memref<1x8x8x64xf32, #tpu.memory_space<vmem>>, vector<1x8x8x64xf32>,
    return
  }
  func.func @transform_0(%arg0: i32) -> (i32, i32, i32, i32) {
    %c0_i32 = arith.constant 0 : i32
    %c0_i32_0 = arith.constant 0 : i32
    %c0_i32_1 = arith.constant 0 : i32
    %c0_i32_2 = arith.constant 0 : i32
    return %arg0, %c0_i32, %c0_i32_0, %c0_i32_1 : i32, i32, i32, i32
  }
  func.func @transform_1(%arg0: i32) -> (i32, i32, i32) {
    %c0_i32 = arith.constant 0 : i32
    %c0_i32_0 = arith.constant 0 : i32
    %c0_i32_1 = arith.constant 0 : i32
    %c0_i32_2 = arith.constant 0 : i32
    return %c0_i32, %c0_i32_0, %c0_i32_1 : i32, i32, i32
  }
  func.func @transform_2(%arg0: i32) -> (i32, i32) {
    %c0_i32 = arith.constant 0 : i32
    %c0_i32_0 = arith.constant 0 : i32
    %c0_i32_1 = arith.constant 0 : i32
    return %c0_i32, %c0_i32_0 : i32, i32
  }
  func.func @transform_3(%arg0: i32) -> (i32, i32, i32, i32) {
    %c0_i32 = arith.constant 0 : i32
    %c0_i32_0 = arith.constant 0 : i32
    %c0_i32_1 = arith.constant 0 : i32
    %c0_i32_2 = arith.constant 0 : i32
    return %arg0, %c0_i32, %c0_i32_0, %c0_i32_1 : i32, i32, i32, i32
  }
}

module attributes {stable_mosaic.version = 11 : i64} {
  func.func @_fused_mlp_kernel(%arg0: i32, %arg1: memref<2x1024xbf16, #tpu.memory_space<vmem>>, %arg2: memref<1024x512xbf16, #tpu.memory_space<vmem>>, %arg3: memref<1x512xf32, #tpu.memory_space<vmem>>, %arg4: memref<512x2xf32, #tpu.memory_space<vmem>>, %arg5: memref<1x2xf32, #tpu.memory_space<vmem>>, %arg6: memref<2x2xf32, #tpu.memory_space<vmem>>, %arg7: memref<2x512xf32, #tpu.memory_space<vmem>>) attributes {dimension_semantics = [#tpu.dimension_semantics<arbitrary>], iteration_bounds = array<i64: 4>, scalar_prefetch = 0 : i64, scratch_operands = 1 : i64, tpu.core_type = #tpu.core_type<tc>, window_params = [{transform_indices = @transform_0, window_bounds = array<i64: 2, 1024>}, {transform_indices = @transform_1, window_bounds = array<i64: 1024, 512>}, {pipeline_mode = #tpu.pipeline_mode<synchronous>, transform_indices = @transform_2, window_bounds = array<i64: 1, 512>}, {pipeline_mode = #tpu.pipeline_mode<synchronous>, transform_indices = @transform_3, window_bounds = array<i64: 512, 2>}, {pipeline_mode = #tpu.pipeline_mode<synchronous>, transform_indices = @transform_4, window_bounds = array<i64: 1, 2>}, {pipeline_mode = #tpu.pipeline_mode<synchronous>, transform_indices = @transform_5, window_bounds = array<i64: 2, 2>}]} {
    %c0_i32 = arith.constant 0 : i32
    %0 = arith.cmpi eq, %arg0, %c0_i32 : i32
    %1 = arith.extui %0 : i1 to i32
    %c0_i32_0 = arith.constant 0 : i32
    %2 = arith.cmpi ne, %1, %c0_i32_0 : i32
    scf.if %2 {
      %cst_9 = arith.constant 0.000000e+00 : f32
      %12 = vector.broadcast %cst_9 : f32 to vector<2x512xf32>
      %c0_10 = arith.constant 0 : index
      %c0_11 = arith.constant 0 : index
      %13 = vector.load %arg7[%c0_10, %c0_11] : memref<2x512xf32, #tpu.memory_space<vmem>>, vector<2x512xf32>
      tpu.vector_store %arg7[%c0_10, %c0_11], %12 {strides = array<i32>} : memref<2x512xf32, #tpu.memory_space<vmem>>, vector<2x512xf32>,
    } else {
    }
    %c0 = arith.constant 0 : index
    %c0_1 = arith.constant 0 : index
    %3 = vector.load %arg7[%c0, %c0_1] : memref<2x512xf32, #tpu.memory_space<vmem>>, vector<2x512xf32>
    %c0_2 = arith.constant 0 : index
    %c0_3 = arith.constant 0 : index
    %4 = vector.load %arg1[%c0_2, %c0_3] : memref<2x1024xbf16, #tpu.memory_space<vmem>>, vector<2x1024xbf16>
    %c0_4 = arith.constant 0 : index
    %c0_5 = arith.constant 0 : index
    %5 = vector.load %arg2[%c0_4, %c0_5] : memref<1024x512xbf16, #tpu.memory_space<vmem>>, vector<1024x512xbf16>
    %cst = arith.constant dense<0.000000e+00> : vector<2x512xf32>
    %6 = tpu.matmul %4, %5, %cst {dimension_numbers = #tpu.dot_dimension_numbers<[1], [0], [0], [1], [0, 0, 1, 1], [], []>} : vector<2x1024xbf16>, vector<1024x512xbf16>, vector<2x512xf32> -> vector<2x512xf32>
    %7 = arith.addf %3, %6 : vector<2x512xf32>
    %c0_6 = arith.constant 0 : index
    %c0_7 = arith.constant 0 : index
    %8 = vector.load %arg7[%c0_6, %c0_7] : memref<2x512xf32, #tpu.memory_space<vmem>>, vector<2x512xf32>
    tpu.vector_store %arg7[%c0_6, %c0_7], %7 {strides = array<i32>} : memref<2x512xf32, #tpu.memory_space<vmem>>, vector<2x512xf32>,
    %c3_i32 = arith.constant 3 : i32
    %9 = arith.cmpi eq, %arg0, %c3_i32 : i32
    %10 = arith.extui %9 : i1 to i32
    %c0_i32_8 = arith.constant 0 : i32
    %11 = arith.cmpi ne, %10, %c0_i32_8 : i32
    scf.if %11 {
      %c0_9 = arith.constant 0 : index
      %c0_10 = arith.constant 0 : index
      %12 = vector.load %arg7[%c0_9, %c0_10] : memref<2x512xf32, #tpu.memory_space<vmem>>, vector<2x512xf32>
      %c0_11 = arith.constant 0 : index
      %c0_12 = arith.constant 0 : index
      %13 = vector.load %arg3[%c0_11, %c0_12] : memref<1x512xf32, #tpu.memory_space<vmem>>, vector<1x512xf32>
      %14 = vector.broadcast %13 : vector<1x512xf32> to vector<2x512xf32>
      %15 = arith.addf %12, %14 : vector<2x512xf32>
      %cst_13 = arith.constant 0.000000e+00 : f32
      %16 = vector.broadcast %cst_13 : f32 to vector<2x512xf32>
      %17 = arith.maximumf %15, %16 : vector<2x512xf32>
      %c0_14 = arith.constant 0 : index
      %c0_15 = arith.constant 0 : index
      %18 = vector.load %arg4[%c0_14, %c0_15] : memref<512x2xf32, #tpu.memory_space<vmem>>, vector<512x2xf32>
      %cst_16 = arith.constant dense<0.000000e+00> : vector<2x2xf32>
      %19 = tpu.matmul %17, %18, %cst_16 {dimension_numbers = #tpu.dot_dimension_numbers<[1], [0], [0], [1], [0, 0, 1, 1], [], []>} : vector<2x512xf32>, vector<512x2xf32>, vector<2x2xf32> -> vector<2x2xf32>
      %c0_17 = arith.constant 0 : index
      %c0_18 = arith.constant 0 : index
      %20 = vector.load %arg5[%c0_17, %c0_18] : memref<1x2xf32, #tpu.memory_space<vmem>>, vector<1x2xf32>
      %21 = vector.broadcast %20 : vector<1x2xf32> to vector<2x2xf32>
      %22 = arith.addf %19, %21 : vector<2x2xf32>
      %c0_19 = arith.constant 0 : index
      %c0_20 = arith.constant 0 : index
      %23 = vector.load %arg6[%c0_19, %c0_20] : memref<2x2xf32, #tpu.memory_space<vmem>>, vector<2x2xf32>
      tpu.vector_store %arg6[%c0_19, %c0_20], %22 {strides = array<i32>} : memref<2x2xf32, #tpu.memory_space<vmem>>, vector<2x2xf32>,
    } else {
    }
    return
  }
  func.func @transform_0(%arg0: i32) -> (i32, i32) {
    %c0_i32 = arith.constant 0 : i32
    %c0_i32_0 = arith.constant 0 : i32
    return %c0_i32, %arg0 : i32, i32
  }
  func.func @transform_1(%arg0: i32) -> (i32, i32) {
    %c0_i32 = arith.constant 0 : i32
    %c0_i32_0 = arith.constant 0 : i32
    return %arg0, %c0_i32 : i32, i32
  }
  func.func @transform_2(%arg0: i32) -> (i32, i32) {
    %c0_i32 = arith.constant 0 : i32
    %c0_i32_0 = arith.constant 0 : i32
    %c0_i32_1 = arith.constant 0 : i32
    return %c0_i32, %c0_i32_0 : i32, i32
  }
  func.func @transform_3(%arg0: i32) -> (i32, i32) {
    %c0_i32 = arith.constant 0 : i32
    %c0_i32_0 = arith.constant 0 : i32
    %c0_i32_1 = arith.constant 0 : i32
    return %c0_i32, %c0_i32_0 : i32, i32
  }
  func.func @transform_4(%arg0: i32) -> (i32, i32) {
    %c0_i32 = arith.constant 0 : i32
    %c0_i32_0 = arith.constant 0 : i32
    %c0_i32_1 = arith.constant 0 : i32
    return %c0_i32, %c0_i32_0 : i32, i32
  }
  func.func @transform_5(%arg0: i32) -> (i32, i32) {
    %c0_i32 = arith.constant 0 : i32
    %c0_i32_0 = arith.constant 0 : i32
    %c0_i32_1 = arith.constant 0 : i32
    return %c0_i32, %c0_i32_0 : i32, i32
  }
}

</mosaic_0001>

<llo_original>
// kernel: medical_cnn_forward.3
$region0: #{medical_cnn_forward.3}
  #allocation0 [shape = 'u32[]', space=smem, size = 0x4, offset = 0x4, fixed_abs, tag = 'smem constant byte address 0x4 - core index']
  #allocation1 [shape = 'u32[144,128]{1,0:T(1,128)}', space=vmem, size = 0x12000, scoped, tag = 'internal scratch']
  %s0 = inlined_call_operand.vmem [shape: f32[2,34,16,8], index: 0, kind: input, shape index: {}]
  %s1 = inlined_call_operand.vmem [shape: f32[3,8,64], index: 1, kind: input, shape index: {}]
  %s2 = inlined_call_operand.vmem [shape: f32[1,64], index: 2, kind: input, shape index: {}]
  %s3 = inlined_call_operand.vmem [shape: f32[2,16,16,32], index: 3, kind: output, shape index: {}]
  %s4 = sld [smem:[#allocation0]]
  $region45: #{medical_cnn_forward.3} parent=0
    _
  %s6 = ssub.s32 1, %s4
  %s7 = scalar_select 0, %s6, %s4
  loop: start=0, step=1, limit=4
  $region2: #{medical_cnn_forward.3} parent=0 // loop_pre_header
    _
  $region3: #{medical_cnn_forward.3} parent=0 // loop_header
    %s9 = sphi 0, %s13
    %p10 = scmp.ge.s32.totalorder %s9, 4
    %s19 = sphi 0, %s21
    %s22 = sphi 0, %s19
    %s23 = sphi 0, %s22
    %s39 = sphi 0, %s23
    %s43 = sphi 0, %s43
    %s45 = sphi 0, %s43
    %s46 = sphi 0, %s45
    %s60 = sphi 0, %s46
    %s64 = sphi 0, %s64
    %s66 = sphi 0, %s64
    %s67 = sphi 0, %s66
    %s81 = sphi 0, %s67
    %s87 = sphi 0, %s89
    %s90 = sphi 0, %s87
    %s91 = sphi 0, %s90
    %s107 = sphi 0, %s91
  $region4: #{medical_cnn_forward.3} parent=0 // loop_header_branch
    %12 = sbr.rel (%p10) target = $region8
  $region5: #{medical_cnn_forward.3} parent=0 // loop_body
    %s14 = ssub.s32 %s9, 1
    %s15 = ssub.s32 %s9, 2
    %s16 = sadd.s32 %s9, 1
    %s17 = ssub.s32 %s9, %s16
    %p18 = scmp.eq.s32.totalorder %s17, 0
    %s20 = sadd.s32 %s19, 1
    %s21 = scalar_select %p18, %s19, %s20
    %p24 = pneg %p18
    %p25 = scmp.eq.s32.totalorder %s9, 1
    %p26 = por %p24, %p25
    %p27 = scmp.ne.s32.totalorder %s19, %s22
    %p28 = scmp.eq.s32.totalorder %s9, 0
    %p29 = por %p27, %p28
    %p30 = scmp.ne.s32.totalorder %s19, %s22
    %p31 = scmp.eq.s32.totalorder %s14, 1
    %p32 = por %p30, %p31
    %p33 = scmp.ne.s32.totalorder %s22, %s23
    %p34 = scmp.eq.s32.totalorder %s14, 0
    %p35 = por %p33, %p34
    %p36 = scmp.ne.s32.totalorder %s22, %s23
    %p37 = scmp.eq.s32.totalorder %s15, 1
    %p38 = por %p36, %p37
    %p40 = scmp.ne.s32.totalorder %s23, %s39
    %p41 = scmp.eq.s32.totalorder %s15, 0
    %p42 = por %p40, %p41
    %s44 = sadd.s32 %s43, 1
    %p47 = scmp.eq.s32.totalorder %s9, 1
    %p48 = scmp.ne.s32.totalorder %s43, %s45
    %p49 = scmp.eq.s32.totalorder %s9, 0
    %p50 = por %p48, %p49
    %p51 = scmp.ne.s32.totalorder %s43, %s45
    %p52 = scmp.eq.s32.totalorder %s14, 1
    %p53 = por %p51, %p52
    %p54 = scmp.ne.s32.totalorder %s45, %s46
    %p55 = scmp.eq.s32.totalorder %s14, 0
    %p56 = por %p54, %p55
    %p57 = scmp.ne.s32.totalorder %s45, %s46
    %p58 = scmp.eq.s32.totalorder %s15, 1
    %p59 = por %p57, %p58
    %p61 = scmp.ne.s32.totalorder %s46, %s60
    %p62 = scmp.eq.s32.totalorder %s15, 0
    %p63 = por %p61, %p62
    %s65 = sadd.s32 %s64, 1
    %p68 = scmp.eq.s32.totalorder %s9, 1
    %p69 = scmp.ne.s32.totalorder %s64, %s66
    %p70 = scmp.eq.s32.totalorder %s9, 0
    %p71 = por %p69, %p70
    %p72 = scmp.ne.s32.totalorder %s64, %s66
    %p73 = scmp.eq.s32.totalorder %s14, 1
    %p74 = por %p72, %p73
    %p75 = scmp.ne.s32.totalorder %s66, %s67
    %p76 = scmp.eq.s32.totalorder %s14, 0
    %p77 = por %p75, %p76
    %p78 = scmp.ne.s32.totalorder %s66, %s67
    %p79 = scmp.eq.s32.totalorder %s15, 1
    %p80 = por %p78, %p79
    %p82 = scmp.ne.s32.totalorder %s67, %s81
    %p83 = scmp.eq.s32.totalorder %s15, 0
    %p84 = por %p82, %p83
    %s85 = ssub.s32 %s9, %s16
    %p86 = scmp.eq.s32.totalorder %s85, 0
    %s88 = sadd.s32 %s87, 1
    %s89 = scalar_select %p86, %s87, %s88
    %p92 = pneg %p86
    %p93 = scmp.eq.s32.totalorder %s9, 1
    %p94 = por %p92, %p93
    %p95 = scmp.ne.s32.totalorder %s87, %s90
    %p96 = scmp.eq.s32.totalorder %s9, 0
    %p97 = por %p95, %p96
    %p98 = scmp.ne.s32.totalorder %s87, %s90
    %p99 = scmp.eq.s32.totalorder %s14, 1
    %p100 = por %p98, %p99
    %p101 = scmp.ne.s32.totalorder %s90, %s91
    %p102 = scmp.eq.s32.totalorder %s14, 0
    %p103 = por %p101, %p102
    %p104 = scmp.ne.s32.totalorder %s90, %s91
    %p105 = scmp.eq.s32.totalorder %s15, 1
    %p106 = por %p104, %p105
    %p108 = scmp.ne.s32.totalorder %s91, %s107
    %p109 = scmp.eq.s32.totalorder %s15, 0
    %p110 = por %p108, %p109
    %p111 = scmp.le.s32.totalorder 1, %s9
    %p112 = scmp.lt.s32.totalorder %s9, 3
    %p113 = pnand %p111, %p112
    %p114 = pneg %p113
    // Predicated region
    $region9: #{medical_cnn_forward.3} parent=5 // pred_check
      _
    $region10: #{medical_cnn_forward.3} parent=5 // pred_check_branch
      %116 = sbr.rel (%p113) target = $region12
    $region11: #{medical_cnn_forward.3} parent=5 // pred_region
      %s117 = ssub.s32 %s9, 1
      // Predicated region
      $region13: #{medical_cnn_forward.3} parent=11 // pred_check
        %p118 = pneg %p56
      $region14: #{medical_cnn_forward.3} parent=11 // pred_check_branch
        %120 = sbr.rel (%p118) target = $region16
      $region15: #{medical_cnn_forward.3} parent=11 // pred_region
        _
      $region16: #{medical_cnn_forward.3} parent=11 // pred_fallthru
        _
      // Predicated region
      $region17: #{medical_cnn_forward.3} parent=11 // pred_check
        %p121 = pneg %p77
      $region18: #{medical_cnn_forward.3} parent=11 // pred_check_branch
        %123 = sbr.rel (%p121) target = $region20
      $region19: #{medical_cnn_forward.3} parent=11 // pred_region
        _
      $region20: #{medical_cnn_forward.3} parent=11 // pred_fallthru
        _
    $region12: #{medical_cnn_forward.3} parent=5 // pred_fallthru
      _
    %p124 = scmp.lt.s32.totalorder %s9, 2
    // Predicated region
    $region21: #{medical_cnn_forward.3} parent=5 // pred_check
      %p125 = pneg %p124
    $region22: #{medical_cnn_forward.3} parent=5 // pred_check_branch
      %127 = sbr.rel (%p125) target = $region24
    $region23: #{medical_cnn_forward.3} parent=5 // pred_region
      // Predicated region
      $region25: #{medical_cnn_forward.3} parent=23 // pred_check
        %p128 = pneg %p29
      $region26: #{medical_cnn_forward.3} parent=23 // pred_check_branch
        %130 = sbr.rel (%p128) target = $region28
      $region27: #{medical_cnn_forward.3} parent=23 // pred_region
        %p131 = scmp.lt.s32.totalorder %s9, 1
        %s132 = scalar_select %p131, %s9, 1
        %s133 = smul.addr %s132, 68
        %s134 = smul.addr %s133, 8
        %s135 = scalar_lea.vmem %s0, %s134
      $region28: #{medical_cnn_forward.3} parent=23 // pred_fallthru
        _
    $region24: #{medical_cnn_forward.3} parent=5 // pred_fallthru
      _
    %p136 = scmp.le.s32.totalorder 1, %s9
    %p137 = scmp.lt.s32.totalorder %s9, 3
    %p138 = pnand %p136, %p137
    %p139 = pneg %p138
    // Predicated region
    $region29: #{medical_cnn_forward.3} parent=5 // pred_check
      _
    $region30: #{medical_cnn_forward.3} parent=5 // pred_check_branch
      %141 = sbr.rel (%p138) target = $region32
    $region31: #{medical_cnn_forward.3} parent=5 // pred_region
      %s142 = ssub.s32 %s9, 1
      %p143 = scmp.lt.s32.totalorder %s14, 1
      %s144 = scalar_select %p143, %s14, 1
      %s145 = smul.addr %s144, 68
      %s146 = smul.addr %s145, 8
      %s147 = scalar_lea.vmem %s0, %s146
      %p148 = pneg %p35
      %p149 = pneg %p32
      %p150 = pneg %p56
      %p151 = pneg %p53
      %p152 = pneg %p77
      %p153 = pneg %p74
      %p154 = pneg %p103
      %p155 = pneg %p100
      %p156 = scmp.lt.s32.totalorder %s14, 1
      %s157 = scalar_select %p156, %s14, 1
      %s158 = smul.addr %s157, 32
      %s159 = smul.addr %s158, 8
      %s160 = scalar_lea.vmem %s3, %s159
      %p161 = scmp.lt.s32.totalorder %s14, 1
      %s162 = scalar_select %p161, %s14, 1
      %s163 = smul.addr %s162, 68
      %s164 = smul.addr %s163, 8
      %s165 = scalar_lea.vmem %s0, %s164
      %p166 = scmp.lt.s32.totalorder %s14, 1
      %s167 = scalar_select %p166, %s14, 1
      %s168 = smul.addr %s167, 32
      %s169 = smul.addr %s168, 8
      %s170 = scalar_lea.vmem %s3, %s169
      %v171 = vld [vmem:[%s165] sm:$0xff]
      %v172 = vld [vmem:[%s165 + $0x8] sm:$0xff]
      %v173 = vld [vmem:[%s165 + $0x10] sm:$0xff]
      %v174 = vld [vmem:[%s165 + $0x18] sm:$0xff]
      %v175 = vld [vmem:[%s165 + $0x20] sm:$0xff]
      %v176 = vld [vmem:[%s165 + $0x28] sm:$0xff]
      %v177 = vld [vmem:[%s165 + $0x30] sm:$0xff]
      %v178 = vld [vmem:[%s165 + $0x38] sm:$0xff]
      %v179 = vld [vmem:[%s165 + $0x40] sm:$0xff]
      %v180 = vld [vmem:[%s165 + $0x48] sm:$0xff]
      %v181 = vld [vmem:[%s165 + $0x50] sm:$0xff]
      %v182 = vld [vmem:[%s165 + $0x58] sm:$0xff]
      %v183 = vld [vmem:[%s165 + $0x60] sm:$0xff]
      %v184 = vld [vmem:[%s165 + $0x68] sm:$0xff]
      %v185 = vld [vmem:[%s165 + $0x70] sm:$0xff]
      %v186 = vld [vmem:[%s165 + $0x78] sm:$0xff]
      %v187 = vld [vmem:[%s165 + $0x80] sm:$0xff]
      %v188 = vld [vmem:[%s165 + $0x88] sm:$0xff]
      %v189 = vld [vmem:[%s165 + $0x90] sm:$0xff]
      %v190 = vld [vmem:[%s165 + $0x98] sm:$0xff]
      %v191 = vld [vmem:[%s165 + $0xa0] sm:$0xff]
      %v192 = vld [vmem:[%s165 + $0xa8] sm:$0xff]
      %v193 = vld [vmem:[%s165 + $0xb0] sm:$0xff]
      %v194 = vld [vmem:[%s165 + $0xb8] sm:$0xff]
      %v195 = vld [vmem:[%s165 + $0xc0] sm:$0xff]
      %v196 = vld [vmem:[%s165 + $0xc8] sm:$0xff]
      %v197 = vld [vmem:[%s165 + $0xd0] sm:$0xff]
      %v198 = vld [vmem:[%s165 + $0xd8] sm:$0xff]
      %v199 = vld [vmem:[%s165 + $0xe0] sm:$0xff]
      %v200 = vld [vmem:[%s165 + $0xe8] sm:$0xff]
      %v201 = vld [vmem:[%s165 + $0xf0] sm:$0xff]
      %v202 = vld [vmem:[%s165 + $0xf8] sm:$0xff]
      %v203 = vld [vmem:[%s165 + $0x100] sm:$0xff]
      %v204 = vld [vmem:[%s165 + $0x108] sm:$0xff]
      %v205 = vld [vmem:[%s165 + $0x110] sm:$0xff]
      %v206 = vld [vmem:[%s165 + $0x118] sm:$0xff]
      %v207 = vld [vmem:[%s165 + $0x120] sm:$0xff]
      %v208 = vld [vmem:[%s165 + $0x128] sm:$0xff]
      %v209 = vld [vmem:[%s165 + $0x130] sm:$0xff]
      %v210 = vld [vmem:[%s165 + $0x138] sm:$0xff]
      %v211 = vld [vmem:[%s165 + $0x140] sm:$0xff]
      %v212 = vld [vmem:[%s165 + $0x148] sm:$0xff]
      %v213 = vld [vmem:[%s165 + $0x150] sm:$0xff]
      %v214 = vld [vmem:[%s165 + $0x158] sm:$0xff]
      %v215 = vld [vmem:[%s165 + $0x160] sm:$0xff]
      %v216 = vld [vmem:[%s165 + $0x168] sm:$0xff]
      %v217 = vld [vmem:[%s165 + $0x170] sm:$0xff]
      %v218 = vld [vmem:[%s165 + $0x178] sm:$0xff]
      %v219 = vld [vmem:[%s165 + $0x180] sm:$0xff]
      %v220 = vld [vmem:[%s165 + $0x188] sm:$0xff]
      %v221 = vld [vmem:[%s165 + $0x190] sm:$0xff]
      %v222 = vld [vmem:[%s165 + $0x198] sm:$0xff]
      %v223 = vld [vmem:[%s165 + $0x1a0] sm:$0xff]
      %v224 = vld [vmem:[%s165 + $0x1a8] sm:$0xff]
      %v225 = vld [vmem:[%s165 + $0x1b0] sm:$0xff]
      %v226 = vld [vmem:[%s165 + $0x1b8] sm:$0xff]
      %v227 = vld [vmem:[%s165 + $0x1c0] sm:$0xff]
      %v228 = vld [vmem:[%s165 + $0x1c8] sm:$0xff]
      %v229 = vld [vmem:[%s165 + $0x1d0] sm:$0xff]
      %v230 = vld [vmem:[%s165 + $0x1d8] sm:$0xff]
      %v231 = vld [vmem:[%s165 + $0x1e0] sm:$0xff]
      %v232 = vld [vmem:[%s165 + $0x1e8] sm:$0xff]
      %v233 = vld [vmem:[%s165 + $0x1f0] sm:$0xff]
      %v234 = vld [vmem:[%s165 + $0x1f8] sm:$0xff]
      %v235 = vld [vmem:[%s165 + $0x200] sm:$0xff]
      %v236 = vld [vmem:[%s165 + $0x208] sm:$0xff]
      %v237 = vld [vmem:[%s165 + $0x210] sm:$0xff]
      %v238 = vld [vmem:[%s165 + $0x218] sm:$0xff]
      %v239 = vld [vmem:[%s1] sm:$0xff]
      %s240 = scalar_lea.vmem %s1, 8
      %v241 = vld [vmem:[%s240] sm:$0xff]
      %vm242 = vcmask 64512
      %v244 = vsel %vm242, %v173, 0
      %v247 = vsel %vm242, %v174, 0
      %v250 = vsel %vm242, %v175, 0
      %v253 = vsel %vm242, %v176, 0
      %v256 = vsel %vm242, %v177, 0
      %v259 = vsel %vm242, %v178, 0
      %v262 = vsel %vm242, %v179, 0
      %v265 = vsel %vm242, %v180, 0
      %v268 = vsel %vm242, %v181, 0
      %v271 = vsel %vm242, %v182, 0
      %v274 = vsel %vm242, %v183, 0
      %v277 = vsel %vm242, %v184, 0
      %v280 = vsel %vm242, %v185, 0
      %v283 = vsel %vm242, %v186, 0
      %v286 = vsel %vm242, %v187, 0
      %v289 = vsel %vm242, %v188, 0
      %v292 = vsel %vm242, %v189, 0
      %v295 = vsel %vm242, %v190, 0
      %v298 = vsel %vm242, %v191, 0
      %v301 = vsel %vm242, %v192, 0
      %v304 = vsel %vm242, %v193, 0
      %v307 = vsel %vm242, %v194, 0
      %v310 = vsel %vm242, %v195, 0
      %v313 = vsel %vm242, %v196, 0
      %v316 = vsel %vm242, %v197, 0
      %v319 = vsel %vm242, %v198, 0
      %v322 = vsel %vm242, %v199, 0
      %v325 = vsel %vm242, %v200, 0
      %v328 = vsel %vm242, %v201, 0
      %v331 = vsel %vm242, %v202, 0
      %v334 = vsel %vm242, %v203, 0
      %v337 = vsel %vm242, %v204, 0
      %v340 = vsel %vm242, %v205, 0
      %v343 = vsel %vm242, %v206, 0
      %v346 = vsel %vm242, %v207, 0
      %v349 = vsel %vm242, %v208, 0
      %v352 = vsel %vm242, %v209, 0
      %v355 = vsel %vm242, %v210, 0
      %v358 = vsel %vm242, %v211, 0
      %v361 = vsel %vm242, %v212, 0
      %v364 = vsel %vm242, %v213, 0
      %v367 = vsel %vm242, %v214, 0
      %v370 = vsel %vm242, %v215, 0
      %v373 = vsel %vm242, %v216, 0
      %v376 = vsel %vm242, %v217, 0
      %v379 = vsel %vm242, %v218, 0
      %v382 = vsel %vm242, %v219, 0
      %v385 = vsel %vm242, %v220, 0
      %v388 = vsel %vm242, %v221, 0
      %v391 = vsel %vm242, %v222, 0
      %v394 = vsel %vm242, %v223, 0
      %v397 = vsel %vm242, %v224, 0
      %v400 = vsel %vm242, %v225, 0
      %v403 = vsel %vm242, %v226, 0
      %v406 = vsel %vm242, %v227, 0
      %v409 = vsel %vm242, %v228, 0
      %v412 = vsel %vm242, %v229, 0
      %v415 = vsel %vm242, %v230, 0
      %v418 = vsel %vm242, %v231, 0
      %v421 = vsel %vm242, %v232, 0
      %v424 = vsel %vm242, %v233, 0
      %v427 = vsel %vm242, %v234, 0
      %v430 = vsel %vm242, %v235, 0
      %v433 = vsel %vm242, %v236, 0
      %435 = vmatprep.subr.mxu0 0.0
      %436 = vmatpush1.msra.mxu0 %v241
      %437 = vmatprep.subr.mxu0 0.0
      %438 = vmatpush1.msra.mxu0 0.0
      %439 = vmatprep.subr.mxu0 0.0
      %440 = vmatpush1.msra.mxu0 0.0
      %441 = vmatprep.subr.mxu0 0.0
      %442 = vmatpush1.msra.mxu0 0.0
      %443 = vmatprep.subr.mxu0 0.0
      %444 = vmatpush1.msra.mxu0 0.0
      %445 = vmatprep.subr.mxu0 0.0
      %446 = vmatpush1.msra.mxu0 0.0
      %447 = vmatprep.subr.mxu0 0.0
      %448 = vmatpush1.msra.mxu0 0.0
      %449 = vmatprep.subr.mxu0 0.0
      %450 = vmatpush1.msra.mxu0 0.0
      %451 = vmatprep.subr.mxu0 0.0
      %452 = vmatpush1.msra.mxu0 0.0
      %453 = vmatprep.subr.mxu0 0.0
      %454 = vmatpush1.msra.mxu0 0.0
      %455 = vmatprep.subr.mxu0 0.0
      %456 = vmatpush1.msra.mxu0 0.0
      %457 = vmatprep.subr.mxu0 0.0
      %458 = vmatpush1.msra.mxu0 0.0
      %459 = vmatprep.subr.mxu0 0.0
      %460 = vmatpush1.msra.mxu0 0.0
      %461 = vmatprep.subr.mxu0 0.0
      %462 = vmatpush1.msra.mxu0 0.0
      %463 = vmatprep.subr.mxu0 0.0
      %464 = vmatpush1.msra.mxu0 0.0
      %465 = vmatprep.subr.mxu0 0.0
      %466 = vmatpush1.msra.mxu0 0.0
      %467 = vmatprep.subr.mxu0 0.0
      %468 = vmatpush1.msra.mxu0 0.0
      %469 = vmatprep.subr.mxu0 0.0
      %470 = vmatpush1.msra.mxu0 0.0
      %471 = vmatprep.subr.mxu0 0.0
      %472 = vmatpush1.msra.mxu0 0.0
      %473 = vmatprep.subr.mxu0 0.0
      %474 = vmatpush1.msra.mxu0 0.0
      %475 = vmatprep.subr.mxu0 0.0
      %476 = vmatpush1.msra.mxu0 0.0
      %477 = vmatprep.subr.mxu0 0.0
      %478 = vmatpush1.msra.mxu0 0.0
      %479 = vmatprep.subr.mxu0 0.0
      %480 = vmatpush1.msra.mxu0 0.0
      %481 = vmatprep.subr.mxu0 0.0
      %482 = vmatpush1.msra.mxu0 0.0
      %483 = vmatprep.subr.mxu0 0.0
      %484 = vmatpush1.msra.mxu0 0.0
      %485 = vmatprep.subr.mxu0 0.0
      %486 = vmatpush1.msra.mxu0 0.0
      %487 = vmatprep.subr.mxu0 0.0
      %488 = vmatpush1.msra.mxu0 0.0
      %489 = vmatprep.subr.mxu0 0.0
      %490 = vmatpush1.msra.mxu0 0.0
      %491 = vmatprep.subr.mxu0 0.0
      %492 = vmatpush1.msra.mxu0 0.0
      %493 = vmatprep.subr.mxu0 0.0
      %494 = vmatpush1.msra.mxu0 0.0
      %495 = vmatprep.subr.mxu0 0.0
      %496 = vmatpush1.msra.mxu0 0.0
      %497 = vmatprep.subr.mxu0 0.0
      %498 = vmatpush1.msra.mxu0 0.0
      %499 = vmatprep.mubr.f32.mxu0 0.0
      %500 = vmatmul.mubr.f32.gmra.mrb[0].mxu0 %v244
      %v501 = vpop.f32.mrb[0].mxu0
      %v502 = vadd.f32 0.0, %v501
      %v503 = vpop.f32.mrb[0].mxu0
      %504 = vmatprep.mubr.f32.mxu0 0.0
      %505 = vmatmul.mubr.f32.gmra.mrb[0].mxu0 %v247
      %v506 = vpop.f32.mrb[0].mxu0
      %v507 = vadd.f32 0.0, %v506
      %v508 = vpop.f32.mrb[0].mxu0
      %509 = vmatprep.mubr.f32.mxu0 0.0
      %510 = vmatmul.mubr.f32.gmra.mrb[0].mxu0 %v250
      %v511 = vpop.f32.mrb[0].mxu0
      %v512 = vadd.f32 0.0, %v511
      %v513 = vpop.f32.mrb[0].mxu0
      %514 = vmatprep.mubr.f32.mxu0 0.0
      %515 = vmatmul.mubr.f32.gmra.mrb[0].mxu0 %v253
      %v516 = vpop.f32.mrb[0].mxu0
      %v517 = vadd.f32 0.0, %v516
      %v518 = vpop.f32.mrb[0].mxu0
      %519 = vmatprep.mubr.f32.mxu0 0.0
      %520 = vmatmul.mubr.f32.gmra.mrb[0].mxu0 %v256
      %v521 = vpop.f32.mrb[0].mxu0
      %v522 = vadd.f32 0.0, %v521
      %v523 = vpop.f32.mrb[0].mxu0
      %524 = vmatprep.mubr.f32.mxu0 0.0
      %525 = vmatmul.mubr.f32.gmra.mrb[0].mxu0 %v259
      %v526 = vpop.f32.mrb[0].mxu0
      %v527 = vadd.f32 0.0, %v526
      %v528 = vpop.f32.mrb[0].mxu0
      %529 = vmatprep.mubr.f32.mxu0 0.0
      %530 = vmatmul.mubr.f32.gmra.mrb[0].mxu0 %v262
      %v531 = vpop.f32.mrb[0].mxu0
      %v532 = vadd.f32 0.0, %v531
      %v533 = vpop.f32.mrb[0].mxu0
      %534 = vmatprep.mubr.f32.mxu0 0.0
      %535 = vmatmul.mubr.f32.gmra.mrb[0].mxu0 %v265
      %v536 = vpop.f32.mrb[0].mxu0
      %v537 = vadd.f32 0.0, %v536
      %v538 = vpop.f32.mrb[0].mxu0
      %539 = vmatprep.mubr.f32.mxu0 0.0
      %540 = vmatmul.mubr.f32.gmra.mrb[0].mxu0 %v268
      %v541 = vpop.f32.mrb[0].mxu0
      %v542 = vadd.f32 0.0, %v541
      %v543 = vpop.f32.mrb[0].mxu0
      %544 = vmatprep.mubr.f32.mxu0 0.0
      %545 = vmatmul.mubr.f32.gmra.mrb[0].mxu0 %v271
      %v546 = vpop.f32.mrb[0].mxu0
      %v547 = vadd.f32 0.0, %v546
      %v548 = vpop.f32.mrb[0].mxu0
      %549 = vmatprep.mubr.f32.mxu0 0.0
      %550 = vmatmul.mubr.f32.gmra.mrb[0].mxu0 %v274
      %v551 = vpop.f32.mrb[0].mxu0
      %v552 = vadd.f32 0.0, %v551
      %v553 = vpop.f32.mrb[0].mxu0
      %554 = vmatprep.mubr.f32.mxu0 0.0
      %555 = vmatmul.mubr.f32.gmra.mrb[0].mxu0 %v277
      %v556 = vpop.f32.mrb[0].mxu0
      %v557 = vadd.f32 0.0, %v556
      %v558 = vpop.f32.mrb[0].mxu0
      %559 = vmatprep.mubr.f32.mxu0 0.0
      %560 = vmatmul.mubr.f32.gmra.mrb[0].mxu0 %v280
      %v561 = vpop.f32.mrb[0].mxu0
      %v562 = vadd.f32 0.0, %v561
      %v563 = vpop.f32.mrb[0].mxu0
      %564 = vmatprep.mubr.f32.mxu0 0.0
      %565 = vmatmul.mubr.f32.gmra.mrb[0].mxu0 %v283
      %v566 = vpop.f32.mrb[0].mxu0
      %v567 = vadd.f32 0.0, %v566
      %v568 = vpop.f32.mrb[0].mxu0
      %569 = vmatprep.mubr.f32.mxu0 0.0
      %570 = vmatmul.mubr.f32.gmra.mrb[0].mxu0 %v286
      %v571 = vpop.f32.mrb[0].mxu0
      %v572 = vadd.f32 0.0, %v571
      %v573 = vpop.f32.mrb[0].mxu0
      %574 = vmatprep.mubr.f32.mxu0 0.0
      %575 = vmatmul.mubr.f32.gmra.mrb[0].mxu0 %v289
      %v576 = vpop.f32.mrb[0].mxu0
      %v577 = vadd.f32 0.0, %v576
      %v578 = vpop.f32.mrb[0].mxu0
      %579 = vmatprep.mubr.f32.mxu0 0.0
      %580 = vmatmul.mubr.f32.gmra.mrb[0].mxu0 %v292
      %v581 = vpop.f32.mrb[0].mxu0
      %v582 = vadd.f32 0.0, %v581
      %v583 = vpop.f32.mrb[0].mxu0
      %584 = vmatprep.mubr.f32.mxu0 0.0
      %585 = vmatmul.mubr.f32.gmra.mrb[0].mxu0 %v295
      %v586 = vpop.f32.mrb[0].mxu0
      %v587 = vadd.f32 0.0, %v586
      %v588 = vpop.f32.mrb[0].mxu0
      %589 = vmatprep.mubr.f32.mxu0 0.0
      %590 = vmatmul.mubr.f32.gmra.mrb[0].mxu0 %v298
      %v591 = vpop.f32.mrb[0].mxu0
      %v592 = vadd.f32 0.0, %v591
      %v593 = vpop.f32.mrb[0].mxu0
      %594 = vmatprep.mubr.f32.mxu0 0.0
      %595 = vmatmul.mubr.f32.gmra.mrb[0].mxu0 %v301
      %v596 = vpop.f32.mrb[0].mxu0
      %v597 = vadd.f32 0.0, %v596
      %v598 = vpop.f32.mrb[0].mxu0
      %599 = vmatprep.mubr.f32.mxu0 0.0
      %600 = vmatmul.mubr.f32.gmra.mrb[0].mxu0 %v304
      %v601 = vpop.f32.mrb[0].mxu0
      %v602 = vadd.f32 0.0, %v601
      %v603 = vpop.f32.mrb[0].mxu0
      %604 = vmatprep.mubr.f32.mxu0 0.0
      %605 = vmatmul.mubr.f32.gmra.mrb[0].mxu0 %v307
      %v606 = vpop.f32.mrb[0].mxu0
      %v607 = vadd.f32 0.0, %v606
      %v608 = vpop.f32.mrb[0].mxu0
      %609 = vmatprep.mubr.f32.mxu0 0.0
      %610 = vmatmul.mubr.f32.gmra.mrb[0].mxu0 %v310
      %v611 = vpop.f32.mrb[0].mxu0
      %v612 = vadd.f32 0.0, %v611
      %v613 = vpop.f32.mrb[0].mxu0
      %614 = vmatprep.mubr.f32.mxu0 0.0
      %615 = vmatmul.mubr.f32.gmra.mrb[0].mxu0 %v313
      %v616 = vpop.f32.mrb[0].mxu0
      %v617 = vadd.f32 0.0, %v616
      %v618 = vpop.f32.mrb[0].mxu0
      %619 = vmatprep.mubr.f32.mxu0 0.0
      %620 = vmatmul.mubr.f32.gmra.mrb[0].mxu0 %v316
      %v621 = vpop.f32.mrb[0].mxu0
      %v622 = vadd.f32 0.0, %v621
      %v623 = vpop.f32.mrb[0].mxu0
      %624 = vmatprep.mubr.f32.mxu0 0.0
      %625 = vmatmul.mubr.f32.gmra.mrb[0].mxu0 %v319
      %v626 = vpop.f32.mrb[0].mxu0
      %v627 = vadd.f32 0.0, %v626
      %v628 = vpop.f32.mrb[0].mxu0
      %629 = vmatprep.mubr.f32.mxu0 0.0
      %630 = vmatmul.mubr.f32.gmra.mrb[0].mxu0 %v322
      %v631 = vpop.f32.mrb[0].mxu0
      %v632 = vadd.f32 0.0, %v631
      %v633 = vpop.f32.mrb[0].mxu0
      %634 = vmatprep.mubr.f32.mxu0 0.0
      %635 = vmatmul.mubr.f32.gmra.mrb[0].mxu0 %v325
      %v636 = vpop.f32.mrb[0].mxu0
      %v637 = vadd.f32 0.0, %v636
      %v638 = vpop.f32.mrb[0].mxu0
      %639 = vmatprep.mubr.f32.mxu0 0.0
      %640 = vmatmul.mubr.f32.gmra.mrb[0].mxu0 %v328
      %v641 = vpop.f32.mrb[0].mxu0
      %v642 = vadd.f32 0.0, %v641
      %v643 = vpop.f32.mrb[0].mxu0
      %644 = vmatprep.mubr.f32.mxu0 0.0
      %645 = vmatmul.mubr.f32.gmra.mrb[0].mxu0 %v331
      %v646 = vpop.f32.mrb[0].mxu0
      %v647 = vadd.f32 0.0, %v646
      %v648 = vpop.f32.mrb[0].mxu0
      %649 = vmatprep.mubr.f32.mxu0 0.0
      %650 = vmatmul.mubr.f32.gmra.mrb[0].mxu0 %v334
      %v651 = vpop.f32.mrb[0].mxu0
      %v652 = vadd.f32 0.0, %v651
      %v653 = vpop.f32.mrb[0].mxu0
      %654 = vmatprep.mubr.f32.mxu0 0.0
      %655 = vmatmul.mubr.f32.gmra.mrb[0].mxu0 %v337
      %v656 = vpop.f32.mrb[0].mxu0
      %v657 = vadd.f32 0.0, %v656
      %v658 = vpop.f32.mrb[0].mxu0
      %659 = vmatprep.mubr.f32.mxu0 0.0
      %660 = vmatmul.mubr.f32.gmra.mrb[0].mxu0 %v340
      %v661 = vpop.f32.mrb[0].mxu0
      %v662 = vadd.f32 0.0, %v661
      %v663 = vpop.f32.mrb[0].mxu0
      %664 = vmatprep.mubr.f32.mxu0 0.0
      %665 = vmatmul.mubr.f32.gmra.mrb[0].mxu0 %v343
      %v666 = vpop.f32.mrb[0].mxu0
      %v667 = vadd.f32 0.0, %v666
      %v668 = vpop.f32.mrb[0].mxu0
      %669 = vmatprep.mubr.f32.mxu0 0.0
      %670 = vmatmul.mubr.f32.gmra.mrb[0].mxu0 %v346
      %v671 = vpop.f32.mrb[0].mxu0
      %v672 = vadd.f32 0.0, %v671
      %v673 = vpop.f32.mrb[0].mxu0
      %674 = vmatprep.mubr.f32.mxu0 0.0
      %675 = vmatmul.mubr.f32.gmra.mrb[0].mxu0 %v349
      %v676 = vpop.f32.mrb[0].mxu0
      %v677 = vadd.f32 0.0, %v676
      %v678 = vpop.f32.mrb[0].mxu0
      %679 = vmatprep.mubr.f32.mxu0 0.0
      %680 = vmatmul.mubr.f32.gmra.mrb[0].mxu0 %v352
      %v681 = vpop.f32.mrb[0].mxu0
      %v682 = vadd.f32 0.0, %v681
      %v683 = vpop.f32.mrb[0].mxu0
      %684 = vmatprep.mubr.f32.mxu0 0.0
      %685 = vmatmul.mubr.f32.gmra.mrb[0].mxu0 %v355
      %v686 = vpop.f32.mrb[0].mxu0
      %v687 = vadd.f32 0.0, %v686
      %v688 = vpop.f32.mrb[0].mxu0
      %689 = vmatprep.mubr.f32.mxu0 0.0
      %690 = vmatmul.mubr.f32.gmra.mrb[0].mxu0 %v358
      %v691 = vpop.f32.mrb[0].mxu0
      %v692 = vadd.f32 0.0, %v691
      %v693 = vpop.f32.mrb[0].mxu0
      %694 = vmatprep.mubr.f32.mxu0 0.0
      %695 = vmatmul.mubr.f32.gmra.mrb[0].mxu0 %v361
      %v696 = vpop.f32.mrb[0].mxu0
      %v697 = vadd.f32 0.0, %v696
      %v698 = vpop.f32.mrb[0].mxu0
      %699 = vmatprep.mubr.f32.mxu0 0.0
      %700 = vmatmul.mubr.f32.gmra.mrb[0].mxu0 %v364
      %v701 = vpop.f32.mrb[0].mxu0
      %v702 = vadd.f32 0.0, %v701
      %v703 = vpop.f32.mrb[0].mxu0
      %704 = vmatprep.mubr.f32.mxu0 0.0
      %705 = vmatmul.mubr.f32.gmra.mrb[0].mxu0 %v367
      %v706 = vpop.f32.mrb[0].mxu0
      %v707 = vadd.f32 0.0, %v706
      %v708 = vpop.f32.mrb[0].mxu0
      %709 = vmatprep.mubr.f32.mxu0 0.0
      %710 = vmatmul.mubr.f32.gmra.mrb[0].mxu0 %v370
      %v711 = vpop.f32.mrb[0].mxu0
      %v712 = vadd.f32 0.0, %v711
      %v713 = vpop.f32.mrb[0].mxu0
      %714 = vmatprep.mubr.f32.mxu0 0.0
      %715 = vmatmul.mubr.f32.gmra.mrb[0].mxu0 %v373
      %v716 = vpop.f32.mrb[0].mxu0
      %v717 = vadd.f32 0.0, %v716
      %v718 = vpop.f32.mrb[0].mxu0
      %719 = vmatprep.mubr.f32.mxu0 0.0
      %720 = vmatmul.mubr.f32.gmra.mrb[0].mxu0 %v376
      %v721 = vpop.f32.mrb[0].mxu0
      %v722 = vadd.f32 0.0, %v721
      %v723 = vpop.f32.mrb[0].mxu0
      %724 = vmatprep.mubr.f32.mxu0 0.0
      %725 = vmatmul.mubr.f32.gmra.mrb[0].mxu0 %v379
      %v726 = vpop.f32.mrb[0].mxu0
      %v727 = vadd.f32 0.0, %v726
      %v728 = vpop.f32.mrb[0].mxu0
      %729 = vmatprep.mubr.f32.mxu0 0.0
      %730 = vmatmul.mubr.f32.gmra.mrb[0].mxu0 %v382
      %v731 = vpop.f32.mrb[0].mxu0
      %v732 = vadd.f32 0.0, %v731
      %v733 = vpop.f32.mrb[0].mxu0
      %734 = vmatprep.mubr.f32.mxu0 0.0
      %735 = vmatmul.mubr.f32.gmra.mrb[0].mxu0 %v385
      %v736 = vpop.f32.mrb[0].mxu0
      %v737 = vadd.f32 0.0, %v736
      %v738 = vpop.f32.mrb[0].mxu0
      %739 = vmatprep.mubr.f32.mxu0 0.0
      %740 = vmatmul.mubr.f32.gmra.mrb[0].mxu0 %v388
      %v741 = vpop.f32.mrb[0].mxu0
      %v742 = vadd.f32 0.0, %v741
      %v743 = vpop.f32.mrb[0].mxu0
      %744 = vmatprep.mubr.f32.mxu0 0.0
      %745 = vmatmul.mubr.f32.gmra.mrb[0].mxu0 %v391
      %v746 = vpop.f32.mrb[0].mxu0
      %v747 = vadd.f32 0.0, %v746
      %v748 = vpop.f32.mrb[0].mxu0
      %749 = vmatprep.mubr.f32.mxu0 0.0
      %750 = vmatmul.mubr.f32.gmra.mrb[0].mxu0 %v394
      %v751 = vpop.f32.mrb[0].mxu0
      %v752 = vadd.f32 0.0, %v751
      %v753 = vpop.f32.mrb[0].mxu0
      %754 = vmatprep.mubr.f32.mxu0 0.0
      %755 = vmatmul.mubr.f32.gmra.mrb[0].mxu0 %v397
      %v756 = vpop.f32.mrb[0].mxu0
      %v757 = vadd.f32 0.0, %v756
      %v758 = vpop.f32.mrb[0].mxu0
      %759 = vmatprep.mubr.f32.mxu0 0.0
      %760 = vmatmul.mubr.f32.gmra.mrb[0].mxu0 %v400
      %v761 = vpop.f32.mrb[0].mxu0
      %v762 = vadd.f32 0.0, %v761
      %v763 = vpop.f32.mrb[0].mxu0
      %764 = vmatprep.mubr.f32.mxu0 0.0
      %765 = vmatmul.mubr.f32.gmra.mrb[0].mxu0 %v403
      %v766 = vpop.f32.mrb[0].mxu0
      %v767 = vadd.f32 0.0, %v766
      %v768 = vpop.f32.mrb[0].mxu0
      %769 = vmatprep.mubr.f32.mxu0 0.0
      %770 = vmatmul.mubr.f32.gmra.mrb[0].mxu0 %v406
      %v771 = vpop.f32.mrb[0].mxu0
      %v772 = vadd.f32 0.0, %v771
      %v773 = vpop.f32.mrb[0].mxu0
      %774 = vmatprep.mubr.f32.mxu0 0.0
      %775 = vmatmul.mubr.f32.gmra.mrb[0].mxu0 %v409
      %v776 = vpop.f32.mrb[0].mxu0
      %v777 = vadd.f32 0.0, %v776
      %v778 = vpop.f32.mrb[0].mxu0
      %779 = vmatprep.mubr.f32.mxu0 0.0
      %780 = vmatmul.mubr.f32.gmra.mrb[0].mxu0 %v412
      %v781 = vpop.f32.mrb[0].mxu0
      %v782 = vadd.f32 0.0, %v781
      %v783 = vpop.f32.mrb[0].mxu0
      %784 = vmatprep.mubr.f32.mxu0 0.0
      %785 = vmatmul.mubr.f32.gmra.mrb[0].mxu0 %v415
      %v786 = vpop.f32.mrb[0].mxu0
      %v787 = vadd.f32 0.0, %v786
      %v788 = vpop.f32.mrb[0].mxu0
      %789 = vmatprep.mubr.f32.mxu0 0.0
      %790 = vmatmul.mubr.f32.gmra.mrb[0].mxu0 %v418
      %v791 = vpop.f32.mrb[0].mxu0
      %v792 = vadd.f32 0.0, %v791
      %v793 = vpop.f32.mrb[0].mxu0
      %794 = vmatprep.mubr.f32.mxu0 0.0
      %795 = vmatmul.mubr.f32.gmra.mrb[0].mxu0 %v421
      %v796 = vpop.f32.mrb[0].mxu0
      %v797 = vadd.f32 0.0, %v796
      %v798 = vpop.f32.mrb[0].mxu0
      %799 = vmatprep.mubr.f32.mxu0 0.0
      %800 = vmatmul.mubr.f32.gmra.mrb[0].mxu0 %v424
      %v801 = vpop.f32.mrb[0].mxu0
      %v802 = vadd.f32 0.0, %v801
      %v803 = vpop.f32.mrb[0].mxu0
      %804 = vmatprep.mubr.f32.mxu0 0.0
      %805 = vmatmul.mubr.f32.gmra.mrb[0].mxu0 %v427
      %v806 = vpop.f32.mrb[0].mxu0
      %v807 = vadd.f32 0.0, %v806
      %v808 = vpop.f32.mrb[0].mxu0
      %809 = vmatprep.mubr.f32.mxu0 0.0
      %810 = vmatmul.mubr.f32.gmra.mrb[0].mxu0 %v430
      %v811 = vpop.f32.mrb[0].mxu0
      %v812 = vadd.f32 0.0, %v811
      %v813 = vpop.f32.mrb[0].mxu0
      %814 = vmatprep.mubr.f32.mxu0 0.0
      %815 = vmatmul.mubr.f32.gmra.mrb[0].mxu0 %v433
      %v816 = vpop.f32.mrb[0].mxu0
      %v817 = vadd.f32 0.0, %v816
      %v818 = vpop.f32.mrb[0].mxu0
      %819 = vdwg.mxu0
      %v821 = vsel %vm242, %v171, 0
      %v824 = vsel %vm242, %v172, 0
      %826 = vmatprep.subr.mxu0 0.0
      %827 = vmatpush1.msra.mxu0 %v239
      %828 = vmatprep.subr.mxu0 0.0
      %829 = vmatpush1.msra.mxu0 0.0
      %830 = vmatprep.subr.mxu0 0.0
      %831 = vmatpush1.msra.mxu0 0.0
      %832 = vmatprep.subr.mxu0 0.0
      %833 = vmatpush1.msra.mxu0 0.0
      %834 = vmatprep.subr.mxu0 0.0
      %835 = vmatpush1.msra.mxu0 0.0
      %836 = vmatprep.subr.mxu0 0.0
      %837 = vmatpush1.msra.mxu0 0.0
      %838 = vmatprep.subr.mxu0 0.0
      %839 = vmatpush1.msra.mxu0 0.0
      %840 = vmatprep.subr.mxu0 0.0
      %841 = vmatpush1.msra.mxu0 0.0
      %842 = vmatprep.subr.mxu0 0.0
      %843 = vmatpush1.msra.mxu0 0.0
      %844 = vmatprep.subr.mxu0 0.0
      %845 = vmatpush1.msra.mxu0 0.0
      %846 = vmatprep.subr.mxu0 0.0
      %847 = vmatpush1.msra.mxu0 0.0
      %848 = vmatprep.subr.mxu0 0.0
      %849 = vmatpush1.msra.mxu0 0.0
      %850 = vmatprep.subr.mxu0 0.0
      %851 = vmatpush1.msra.mxu0 0.0
      %852 = vmatprep.subr.mxu0 0.0
      %853 = vmatpush1.msra.mxu0 0.0
      %854 = vmatprep.subr.mxu0 0.0
      %855 = vmatpush1.msra.mxu0 0.0
      %856 = vmatprep.subr.mxu0 0.0
      %857 = vmatpush1.msra.mxu0 0.0
      %858 = vmatprep.subr.mxu0 0.0
      %859 = vmatpush1.msra.mxu0 0.0
      %860 = vmatprep.subr.mxu0 0.0
      %861 = vmatpush1.msra.mxu0 0.0
      %862 = vmatprep.subr.mxu0 0.0
      %863 = vmatpush1.msra.mxu0 0.0
      %864 = vmatprep.subr.mxu0 0.0
      %865 = vmatpush1.msra.mxu0 0.0
      %866 = vmatprep.subr.mxu0 0.0
      %867 = vmatpush1.msra.mxu0 0.0
      %868 = vmatprep.subr.mxu0 0.0
      %869 = vmatpush1.msra.mxu0 0.0
      %870 = vmatprep.subr.mxu0 0.0
      %871 = vmatpush1.msra.mxu0 0.0
      %872 = vmatprep.subr.mxu0 0.0
      %873 = vmatpush1.msra.mxu0 0.0
      %874 = vmatprep.subr.mxu0 0.0
      %875 = vmatpush1.msra.mxu0 0.0
      %876 = vmatprep.subr.mxu0 0.0
      %877 = vmatpush1.msra.mxu0 0.0
      %878 = vmatprep.subr.mxu0 0.0
      %879 = vmatpush1.msra.mxu0 0.0
      %880 = vmatprep.subr.mxu0 0.0
      %881 = vmatpush1.msra.mxu0 0.0
      %882 = vmatprep.subr.mxu0 0.0
      %883 = vmatpush1.msra.mxu0 0.0
      %884 = vmatprep.subr.mxu0 0.0
      %885 = vmatpush1.msra.mxu0 0.0
      %886 = vmatprep.subr.mxu0 0.0
      %887 = vmatpush1.msra.mxu0 0.0
      %888 = vmatprep.subr.mxu0 0.0
      %889 = vmatpush1.msra.mxu0 0.0
      %890 = vmatprep.mubr.f32.mxu0 0.0
      %891 = vmatmul.mubr.f32.gmra.mrb[0].mxu0 %v821
      %v892 = vpop.f32.mrb[0].mxu0
      %v893 = vadd.f32 %v502, %v892
      %v894 = vpop.f32.mrb[0].mxu0
      %895 = vmatprep.mubr.f32.mxu0 0.0
      %896 = vmatmul.mubr.f32.gmra.mrb[0].mxu0 %v824
      %v897 = vpop.f32.mrb[0].mxu0
      %v898 = vadd.f32 %v507, %v897
      %v899 = vpop.f32.mrb[0].mxu0
      %900 = vmatprep.mubr.f32.mxu0 0.0
      %901 = vmatmul.mubr.f32.gmra.mrb[0].mxu0 %v244
      %v902 = vpop.f32.mrb[0].mxu0
      %v903 = vadd.f32 %v512, %v902
      %v904 = vpop.f32.mrb[0].mxu0
      %905 = vmatprep.mubr.f32.mxu0 0.0
      %906 = vmatmul.mubr.f32.gmra.mrb[0].mxu0 %v247
      %v907 = vpop.f32.mrb[0].mxu0
      %v908 = vadd.f32 %v517, %v907
      %v909 = vpop.f32.mrb[0].mxu0
      %910 = vmatprep.mubr.f32.mxu0 0.0
      %911 = vmatmul.mubr.f32.gmra.mrb[0].mxu0 %v250
      %v912 = vpop.f32.mrb[0].mxu0
      %v913 = vadd.f32 %v522, %v912
      %v914 = vpop.f32.mrb[0].mxu0
      %915 = vmatprep.mubr.f32.mxu0 0.0
      %916 = vmatmul.mubr.f32.gmra.mrb[0].mxu0 %v253
      %v917 = vpop.f32.mrb[0].mxu0
      %v918 = vadd.f32 %v527, %v917
      %v919 = vpop.f32.mrb[0].mxu0
      %920 = vmatprep.mubr.f32.mxu0 0.0
      %921 = vmatmul.mubr.f32.gmra.mrb[0].mxu0 %v256
      %v922 = vpop.f32.mrb[0].mxu0
      %v923 = vadd.f32 %v532, %v922
      %v924 = vpop.f32.mrb[0].mxu0
      %925 = vmatprep.mubr.f32.mxu0 0.0
      %926 = vmatmul.mubr.f32.gmra.mrb[0].mxu0 %v259
      %v927 = vpop.f32.mrb[0].mxu0
      %v928 = vadd.f32 %v537, %v927
      %v929 = vpop.f32.mrb[0].mxu0
      %930 = vmatprep.mubr.f32.mxu0 0.0
      %931 = vmatmul.mubr.f32.gmra.mrb[0].mxu0 %v262
      %v932 = vpop.f32.mrb[0].mxu0
      %v933 = vadd.f32 %v542, %v932
      %v934 = vpop.f32.mrb[0].mxu0
      %935 = vmatprep.mubr.f32.mxu0 0.0
      %936 = vmatmul.mubr.f32.gmra.mrb[0].mxu0 %v265
      %v937 = vpop.f32.mrb[0].mxu0
      %v938 = vadd.f32 %v547, %v937
      %v939 = vpop.f32.mrb[0].mxu0
      %940 = vmatprep.mubr.f32.mxu0 0.0
      %941 = vmatmul.mubr.f32.gmra.mrb[0].mxu0 %v268
      %v942 = vpop.f32.mrb[0].mxu0
      %v943 = vadd.f32 %v552, %v942
      %v944 = vpop.f32.mrb[0].mxu0
      %945 = vmatprep.mubr.f32.mxu0 0.0
      %946 = vmatmul.mubr.f32.gmra.mrb[0].mxu0 %v271
      %v947 = vpop.f32.mrb[0].mxu0
      %v948 = vadd.f32 %v557, %v947
      %v949 = vpop.f32.mrb[0].mxu0
      %950 = vmatprep.mubr.f32.mxu0 0.0
      %951 = vmatmul.mubr.f32.gmra.mrb[0].mxu0 %v274
      %v952 = vpop.f32.mrb[0].mxu0
      %v953 = vadd.f32 %v562, %v952
      %v954 = vpop.f32.mrb[0].mxu0
      %955 = vmatprep.mubr.f32.mxu0 0.0
      %956 = vmatmul.mubr.f32.gmra.mrb[0].mxu0 %v277
      %v957 = vpop.f32.mrb[0].mxu0
      %v958 = vadd.f32 %v567, %v957
      %v959 = vpop.f32.mrb[0].mxu0
      %960 = vmatprep.mubr.f32.mxu0 0.0
      %961 = vmatmul.mubr.f32.gmra.mrb[0].mxu0 %v280
      %v962 = vpop.f32.mrb[0].mxu0
      %v963 = vadd.f32 %v572, %v962
      %v964 = vpop.f32.mrb[0].mxu0
      %965 = vmatprep.mubr.f32.mxu0 0.0
      %966 = vmatmul.mubr.f32.gmra.mrb[0].mxu0 %v283
      %v967 = vpop.f32.mrb[0].mxu0
      %v968 = vadd.f32 %v577, %v967
      %v969 = vpop.f32.mrb[0].mxu0
      %970 = vmatprep.mubr.f32.mxu0 0.0
      %971 = vmatmul.mubr.f32.gmra.mrb[0].mxu0 %v286
      %v972 = vpop.f32.mrb[0].mxu0
      %v973 = vadd.f32 %v582, %v972
      %v974 = vpop.f32.mrb[0].mxu0
      %975 = vmatprep.mubr.f32.mxu0 0.0
      %976 = vmatmul.mubr.f32.gmra.mrb[0].mxu0 %v289
      %v977 = vpop.f32.mrb[0].mxu0
      %v978 = vadd.f32 %v587, %v977
      %v979 = vpop.f32.mrb[0].mxu0
      %980 = vmatprep.mubr.f32.mxu0 0.0
      %981 = vmatmul.mubr.f32.gmra.mrb[0].mxu0 %v292
      %v982 = vpop.f32.mrb[0].mxu0
      %v983 = vadd.f32 %v592, %v982
      %v984 = vpop.f32.mrb[0].mxu0
      %985 = vmatprep.mubr.f32.mxu0 0.0
      %986 = vmatmul.mubr.f32.gmra.mrb[0].mxu0 %v295
      %v987 = vpop.f32.mrb[0].mxu0
      %v988 = vadd.f32 %v597, %v987
      %v989 = vpop.f32.mrb[0].mxu0
      %990 = vmatprep.mubr.f32.mxu0 0.0
      %991 = vmatmul.mubr.f32.gmra.mrb[0].mxu0 %v298
      %v992 = vpop.f32.mrb[0].mxu0
      %v993 = vadd.f32 %v602, %v992
      %v994 = vpop.f32.mrb[0].mxu0
      %995 = vmatprep.mubr.f32.mxu0 0.0
      %996 = vmatmul.mubr.f32.gmra.mrb[0].mxu0 %v301
      %v997 = vpop.f32.mrb[0].mxu0
      %v998 = vadd.f32 %v607, %v997
      %v999 = vpop.f32.mrb[0].mxu0
      %1000 = vmatprep.mubr.f32.mxu0 0.0
      %1001 = vmatmul.mubr.f32.gmra.mrb[0].mxu0 %v304
      %v1002 = vpop.f32.mrb[0].mxu0
      %v1003 = vadd.f32 %v612, %v1002
      %v1004 = vpop.f32.mrb[0].mxu0
      %1005 = vmatprep.mubr.f32.mxu0 0.0
      %1006 = vmatmul.mubr.f32.gmra.mrb[0].mxu0 %v307
      %v1007 = vpop.f32.mrb[0].mxu0
      %v1008 = vadd.f32 %v617, %v1007
      %v1009 = vpop.f32.mrb[0].mxu0
      %1010 = vmatprep.mubr.f32.mxu0 0.0
      %1011 = vmatmul.mubr.f32.gmra.mrb[0].mxu0 %v310
      %v1012 = vpop.f32.mrb[0].mxu0
      %v1013 = vadd.f32 %v622, %v1012
      %v1014 = vpop.f32.mrb[0].mxu0
      %1015 = vmatprep.mubr.f32.mxu0 0.0
      %1016 = vmatmul.mubr.f32.gmra.mrb[0].mxu0 %v313
      %v1017 = vpop.f32.mrb[0].mxu0
      %v1018 = vadd.f32 %v627, %v1017
      %v1019 = vpop.f32.mrb[0].mxu0
      %1020 = vmatprep.mubr.f32.mxu0 0.0
      %1021 = vmatmul.mubr.f32.gmra.mrb[0].mxu0 %v316
      %v1022 = vpop.f32.mrb[0].mxu0
      %v1023 = vadd.f32 %v632, %v1022
      %v1024 = vpop.f32.mrb[0].mxu0
      %1025 = vmatprep.mubr.f32.mxu0 0.0
      %1026 = vmatmul.mubr.f32.gmra.mrb[0].mxu0 %v319
      %v1027 = vpop.f32.mrb[0].mxu0
      %v1028 = vadd.f32 %v637, %v1027
      %v1029 = vpop.f32.mrb[0].mxu0
      %1030 = vmatprep.mubr.f32.mxu0 0.0
      %1031 = vmatmul.mubr.f32.gmra.mrb[0].mxu0 %v322
      %v1032 = vpop.f32.mrb[0].mxu0
      %v1033 = vadd.f32 %v642, %v1032
      %v1034 = vpop.f32.mrb[0].mxu0
      %1035 = vmatprep.mubr.f32.mxu0 0.0
      %1036 = vmatmul.mubr.f32.gmra.mrb[0].mxu0 %v325
      %v1037 = vpop.f32.mrb[0].mxu0
      %v1038 = vadd.f32 %v647, %v1037
      %v1039 = vpop.f32.mrb[0].mxu0
      %1040 = vmatprep.mubr.f32.mxu0 0.0
      %1041 = vmatmul.mubr.f32.gmra.mrb[0].mxu0 %v328
      %v1042 = vpop.f32.mrb[0].mxu0
      %v1043 = vadd.f32 %v652, %v1042
      %v1044 = vpop.f32.mrb[0].mxu0
      %1045 = vmatprep.mubr.f32.mxu0 0.0
      %1046 = vmatmul.mubr.f32.gmra.mrb[0].mxu0 %v331
      %v1047 = vpop.f32.mrb[0].mxu0
      %v1048 = vadd.f32 %v657, %v1047
      %v1049 = vpop.f32.mrb[0].mxu0
      %1050 = vmatprep.mubr.f32.mxu0 0.0
      %1051 = vmatmul.mubr.f32.gmra.mrb[0].mxu0 %v334
      %v1052 = vpop.f32.mrb[0].mxu0
      %v1053 = vadd.f32 %v662, %v1052
      %v1054 = vpop.f32.mrb[0].mxu0
      %1055 = vmatprep.mubr.f32.mxu0 0.0
      %1056 = vmatmul.mubr.f32.gmra.mrb[0].mxu0 %v337
      %v1057 = vpop.f32.mrb[0].mxu0
      %v1058 = vadd.f32 %v667, %v1057
      %v1059 = vpop.f32.mrb[0].mxu0
      %1060 = vmatprep.mubr.f32.mxu0 0.0
      %1061 = vmatmul.mubr.f32.gmra.mrb[0].mxu0 %v340
      %v1062 = vpop.f32.mrb[0].mxu0
      %v1063 = vadd.f32 %v672, %v1062
      %v1064 = vpop.f32.mrb[0].mxu0
      %1065 = vmatprep.mubr.f32.mxu0 0.0
      %1066 = vmatmul.mubr.f32.gmra.mrb[0].mxu0 %v343
      %v1067 = vpop.f32.mrb[0].mxu0
      %v1068 = vadd.f32 %v677, %v1067
      %v1069 = vpop.f32.mrb[0].mxu0
      %1070 = vmatprep.mubr.f32.mxu0 0.0
      %1071 = vmatmul.mubr.f32.gmra.mrb[0].mxu0 %v346
      %v1072 = vpop.f32.mrb[0].mxu0
      %v1073 = vadd.f32 %v682, %v1072
      %v1074 = vpop.f32.mrb[0].mxu0
      %1075 = vmatprep.mubr.f32.mxu0 0.0
      %1076 = vmatmul.mubr.f32.gmra.mrb[0].mxu0 %v349
      %v1077 = vpop.f32.mrb[0].mxu0
      %v1078 = vadd.f32 %v687, %v1077
      %v1079 = vpop.f32.mrb[0].mxu0
      %1080 = vmatprep.mubr.f32.mxu0 0.0
      %1081 = vmatmul.mubr.f32.gmra.mrb[0].mxu0 %v352
      %v1082 = vpop.f32.mrb[0].mxu0
      %v1083 = vadd.f32 %v692, %v1082
      %v1084 = vpop.f32.mrb[0].mxu0
      %1085 = vmatprep.mubr.f32.mxu0 0.0
      %1086 = vmatmul.mubr.f32.gmra.mrb[0].mxu0 %v355
      %v1087 = vpop.f32.mrb[0].mxu0
      %v1088 = vadd.f32 %v697, %v1087
      %v1089 = vpop.f32.mrb[0].mxu0
      %1090 = vmatprep.mubr.f32.mxu0 0.0
      %1091 = vmatmul.mubr.f32.gmra.mrb[0].mxu0 %v358
      %v1092 = vpop.f32.mrb[0].mxu0
      %v1093 = vadd.f32 %v702, %v1092
      %v1094 = vpop.f32.mrb[0].mxu0
      %1095 = vmatprep.mubr.f32.mxu0 0.0
      %1096 = vmatmul.mubr.f32.gmra.mrb[0].mxu0 %v361
      %v1097 = vpop.f32.mrb[0].mxu0
      %v1098 = vadd.f32 %v707, %v1097
      %v1099 = vpop.f32.mrb[0].mxu0
      %1100 = vmatprep.mubr.f32.mxu0 0.0
      %1101 = vmatmul.mubr.f32.gmra.mrb[0].mxu0 %v364
      %v1102 = vpop.f32.mrb[0].mxu0
      %v1103 = vadd.f32 %v712, %v1102
      %v1104 = vpop.f32.mrb[0].mxu0
      %1105 = vmatprep.mubr.f32.mxu0 0.0
      %1106 = vmatmul.mubr.f32.gmra.mrb[0].mxu0 %v367
      %v1107 = vpop.f32.mrb[0].mxu0
      %v1108 = vadd.f32 %v717, %v1107
      %v1109 = vpop.f32.mrb[0].mxu0
      %1110 = vmatprep.mubr.f32.mxu0 0.0
      %1111 = vmatmul.mubr.f32.gmra.mrb[0].mxu0 %v370
      %v1112 = vpop.f32.mrb[0].mxu0
      %v1113 = vadd.f32 %v722, %v1112
      %v1114 = vpop.f32.mrb[0].mxu0
      %1115 = vmatprep.mubr.f32.mxu0 0.0
      %1116 = vmatmul.mubr.f32.gmra.mrb[0].mxu0 %v373
      %v1117 = vpop.f32.mrb[0].mxu0
      %v1118 = vadd.f32 %v727, %v1117
      %v1119 = vpop.f32.mrb[0].mxu0
      %1120 = vmatprep.mubr.f32.mxu0 0.0
      %1121 = vmatmul.mubr.f32.gmra.mrb[0].mxu0 %v376
      %v1122 = vpop.f32.mrb[0].mxu0
      %v1123 = vadd.f32 %v732, %v1122
      %v1124 = vpop.f32.mrb[0].mxu0
      %1125 = vmatprep.mubr.f32.mxu0 0.0
      %1126 = vmatmul.mubr.f32.gmra.mrb[0].mxu0 %v379
      %v1127 = vpop.f32.mrb[0].mxu0
      %v1128 = vadd.f32 %v737, %v1127
      %v1129 = vpop.f32.mrb[0].mxu0
      %1130 = vmatprep.mubr.f32.mxu0 0.0
      %1131 = vmatmul.mubr.f32.gmra.mrb[0].mxu0 %v382
      %v1132 = vpop.f32.mrb[0].mxu0
      %v1133 = vadd.f32 %v742, %v1132
      %v1134 = vpop.f32.mrb[0].mxu0
      %1135 = vmatprep.mubr.f32.mxu0 0.0
      %1136 = vmatmul.mubr.f32.gmra.mrb[0].mxu0 %v385
      %v1137 = vpop.f32.mrb[0].mxu0
      %v1138 = vadd.f32 %v747, %v1137
      %v1139 = vpop.f32.mrb[0].mxu0
      %1140 = vmatprep.mubr.f32.mxu0 0.0
      %1141 = vmatmul.mubr.f32.gmra.mrb[0].mxu0 %v388
      %v1142 = vpop.f32.mrb[0].mxu0
      %v1143 = vadd.f32 %v752, %v1142
      %v1144 = vpop.f32.mrb[0].mxu0
      %1145 = vmatprep.mubr.f32.mxu0 0.0
      %1146 = vmatmul.mubr.f32.gmra.mrb[0].mxu0 %v391
      %v1147 = vpop.f32.mrb[0].mxu0
      %v1148 = vadd.f32 %v757, %v1147
      %v1149 = vpop.f32.mrb[0].mxu0
      %1150 = vmatprep.mubr.f32.mxu0 0.0
      %1151 = vmatmul.mubr.f32.gmra.mrb[0].mxu0 %v394
      %v1152 = vpop.f32.mrb[0].mxu0
      %v1153 = vadd.f32 %v762, %v1152
      %v1154 = vpop.f32.mrb[0].mxu0
      %1155 = vmatprep.mubr.f32.mxu0 0.0
      %1156 = vmatmul.mubr.f32.gmra.mrb[0].mxu0 %v397
      %v1157 = vpop.f32.mrb[0].mxu0
      %v1158 = vadd.f32 %v767, %v1157
      %v1159 = vpop.f32.mrb[0].mxu0
      %1160 = vmatprep.mubr.f32.mxu0 0.0
      %1161 = vmatmul.mubr.f32.gmra.mrb[0].mxu0 %v400
      %v1162 = vpop.f32.mrb[0].mxu0
      %v1163 = vadd.f32 %v772, %v1162
      %v1164 = vpop.f32.mrb[0].mxu0
      %1165 = vmatprep.mubr.f32.mxu0 0.0
      %1166 = vmatmul.mubr.f32.gmra.mrb[0].mxu0 %v403
      %v1167 = vpop.f32.mrb[0].mxu0
      %v1168 = vadd.f32 %v777, %v1167
      %v1169 = vpop.f32.mrb[0].mxu0
      %1170 = vmatprep.mubr.f32.mxu0 0.0
      %1171 = vmatmul.mubr.f32.gmra.mrb[0].mxu0 %v406
      %v1172 = vpop.f32.mrb[0].mxu0
      %v1173 = vadd.f32 %v782, %v1172
      %v1174 = vpop.f32.mrb[0].mxu0
      %1175 = vmatprep.mubr.f32.mxu0 0.0
      %1176 = vmatmul.mubr.f32.gmra.mrb[0].mxu0 %v409
      %v1177 = vpop.f32.mrb[0].mxu0
      %v1178 = vadd.f32 %v787, %v1177
      %v1179 = vpop.f32.mrb[0].mxu0
      %1180 = vmatprep.mubr.f32.mxu0 0.0
      %1181 = vmatmul.mubr.f32.gmra.mrb[0].mxu0 %v412
      %v1182 = vpop.f32.mrb[0].mxu0
      %v1183 = vadd.f32 %v792, %v1182
      %v1184 = vpop.f32.mrb[0].mxu0
      %1185 = vmatprep.mubr.f32.mxu0 0.0
      %1186 = vmatmul.mubr.f32.gmra.mrb[0].mxu0 %v415
      %v1187 = vpop.f32.mrb[0].mxu0
      %v1188 = vadd.f32 %v797, %v1187
      %v1189 = vpop.f32.mrb[0].mxu0
      %1190 = vmatprep.mubr.f32.mxu0 0.0
      %1191 = vmatmul.mubr.f32.gmra.mrb[0].mxu0 %v418
      %v1192 = vpop.f32.mrb[0].mxu0
      %v1193 = vadd.f32 %v802, %v1192
      %v1194 = vpop.f32.mrb[0].mxu0
      %1195 = vmatprep.mubr.f32.mxu0 0.0
      %1196 = vmatmul.mubr.f32.gmra.mrb[0].mxu0 %v421
      %v1197 = vpop.f32.mrb[0].mxu0
      %v1198 = vadd.f32 %v807, %v1197
      %v1199 = vpop.f32.mrb[0].mxu0
      %1200 = vmatprep.mubr.f32.mxu0 0.0
      %1201 = vmatmul.mubr.f32.gmra.mrb[0].mxu0 %v424
      %v1202 = vpop.f32.mrb[0].mxu0
      %v1203 = vadd.f32 %v812, %v1202
      %v1204 = vpop.f32.mrb[0].mxu0
      %1205 = vmatprep.mubr.f32.mxu0 0.0
      %1206 = vmatmul.mubr.f32.gmra.mrb[0].mxu0 %v427
      %v1207 = vpop.f32.mrb[0].mxu0
      %v1208 = vadd.f32 %v817, %v1207
      %v1209 = vpop.f32.mrb[0].mxu0
      %1210 = vdwg.mxu0
      %s1211 = scalar_lea.vmem %s1, 16
      %v1212 = vld [vmem:[%s1211] sm:$0xff]
      %v1214 = vsel %vm242, %v237, 0
      %v1217 = vsel %vm242, %v238, 0
      %1219 = vmatprep.subr.mxu0 0.0
      %1220 = vmatpush1.msra.mxu0 %v1212
      %1221 = vmatprep.subr.mxu0 0.0
      %1222 = vmatpush1.msra.mxu0 0.0
      %1223 = vmatprep.subr.mxu0 0.0
      %1224 = vmatpush1.msra.mxu0 0.0
      %1225 = vmatprep.subr.mxu0 0.0
      %1226 = vmatpush1.msra.mxu0 0.0
      %1227 = vmatprep.subr.mxu0 0.0
      %1228 = vmatpush1.msra.mxu0 0.0
      %1229 = vmatprep.subr.mxu0 0.0
      %1230 = vmatpush1.msra.mxu0 0.0
      %1231 = vmatprep.subr.mxu0 0.0
      %1232 = vmatpush1.msra.mxu0 0.0
      %1233 = vmatprep.subr.mxu0 0.0
      %1234 = vmatpush1.msra.mxu0 0.0
      %1235 = vmatprep.subr.mxu0 0.0
      %1236 = vmatpush1.msra.mxu0 0.0
      %1237 = vmatprep.subr.mxu0 0.0
      %1238 = vmatpush1.msra.mxu0 0.0
      %1239 = vmatprep.subr.mxu0 0.0
      %1240 = vmatpush1.msra.mxu0 0.0
      %1241 = vmatprep.subr.mxu0 0.0
      %1242 = vmatpush1.msra.mxu0 0.0
      %1243 = vmatprep.subr.mxu0 0.0
      %1244 = vmatpush1.msra.mxu0 0.0
      %1245 = vmatprep.subr.mxu0 0.0
      %1246 = vmatpush1.msra.mxu0 0.0
      %1247 = vmatprep.subr.mxu0 0.0
      %1248 = vmatpush1.msra.mxu0 0.0
      %1249 = vmatprep.subr.mxu0 0.0
      %1250 = vmatpush1.msra.mxu0 0.0
      %1251 = vmatprep.subr.mxu0 0.0
      %1252 = vmatpush1.msra.mxu0 0.0
      %1253 = vmatprep.subr.mxu0 0.0
      %1254 = vmatpush1.msra.mxu0 0.0
      %1255 = vmatprep.subr.mxu0 0.0
      %1256 = vmatpush1.msra.mxu0 0.0
      %1257 = vmatprep.subr.mxu0 0.0
      %1258 = vmatpush1.msra.mxu0 0.0
      %1259 = vmatprep.subr.mxu0 0.0
      %1260 = vmatpush1.msra.mxu0 0.0
      %1261 = vmatprep.subr.mxu0 0.0
      %1262 = vmatpush1.msra.mxu0 0.0
      %1263 = vmatprep.subr.mxu0 0.0
      %1264 = vmatpush1.msra.mxu0 0.0
      %1265 = vmatprep.subr.mxu0 0.0
      %1266 = vmatpush1.msra.mxu0 0.0
      %1267 = vmatprep.subr.mxu0 0.0
      %1268 = vmatpush1.msra.mxu0 0.0
      %1269 = vmatprep.subr.mxu0 0.0
      %1270 = vmatpush1.msra.mxu0 0.0
      %1271 = vmatprep.subr.mxu0 0.0
      %1272 = vmatpush1.msra.mxu0 0.0
      %1273 = vmatprep.subr.mxu0 0.0
      %1274 = vmatpush1.msra.mxu0 0.0
      %1275 = vmatprep.subr.mxu0 0.0
      %1276 = vmatpush1.msra.mxu0 0.0
      %1277 = vmatprep.subr.mxu0 0.0
      %1278 = vmatpush1.msra.mxu0 0.0
      %1279 = vmatprep.subr.mxu0 0.0
      %1280 = vmatpush1.msra.mxu0 0.0
      %1281 = vmatprep.subr.mxu0 0.0
      %1282 = vmatpush1.msra.mxu0 0.0
      %1283 = vmatprep.mubr.f32.mxu0 0.0
      %1284 = vmatmul.mubr.f32.gmra.mrb[0].mxu0 %v250
      %v1285 = vpop.f32.mrb[0].mxu0
      %v1286 = vadd.f32 0.0, %v1285
      %v1287 = vpop.f32.mrb[0].mxu0
      %1288 = vmatprep.mubr.f32.mxu0 0.0
      %1289 = vmatmul.mubr.f32.gmra.mrb[0].mxu0 %v253
      %v1290 = vpop.f32.mrb[0].mxu0
      %v1291 = vadd.f32 0.0, %v1290
      %v1292 = vpop.f32.mrb[0].mxu0
      %1293 = vmatprep.mubr.f32.mxu0 0.0
      %1294 = vmatmul.mubr.f32.gmra.mrb[0].mxu0 %v256
      %v1295 = vpop.f32.mrb[0].mxu0
      %v1296 = vadd.f32 0.0, %v1295
      %v1297 = vpop.f32.mrb[0].mxu0
      %1298 = vmatprep.mubr.f32.mxu0 0.0
      %1299 = vmatmul.mubr.f32.gmra.mrb[0].mxu0 %v259
      %v1300 = vpop.f32.mrb[0].mxu0
      %v1301 = vadd.f32 0.0, %v1300
      %v1302 = vpop.f32.mrb[0].mxu0
      %1303 = vmatprep.mubr.f32.mxu0 0.0
      %1304 = vmatmul.mubr.f32.gmra.mrb[0].mxu0 %v262
      %v1305 = vpop.f32.mrb[0].mxu0
      %v1306 = vadd.f32 0.0, %v1305
      %v1307 = vpop.f32.mrb[0].mxu0
      %1308 = vmatprep.mubr.f32.mxu0 0.0
      %1309 = vmatmul.mubr.f32.gmra.mrb[0].mxu0 %v265
      %v1310 = vpop.f32.mrb[0].mxu0
      %v1311 = vadd.f32 0.0, %v1310
      %v1312 = vpop.f32.mrb[0].mxu0
      %1313 = vmatprep.mubr.f32.mxu0 0.0
      %1314 = vmatmul.mubr.f32.gmra.mrb[0].mxu0 %v268
      %v1315 = vpop.f32.mrb[0].mxu0
      %v1316 = vadd.f32 0.0, %v1315
      %v1317 = vpop.f32.mrb[0].mxu0
      %1318 = vmatprep.mubr.f32.mxu0 0.0
      %1319 = vmatmul.mubr.f32.gmra.mrb[0].mxu0 %v271
      %v1320 = vpop.f32.mrb[0].mxu0
      %v1321 = vadd.f32 0.0, %v1320
      %v1322 = vpop.f32.mrb[0].mxu0
      %1323 = vmatprep.mubr.f32.mxu0 0.0
      %1324 = vmatmul.mubr.f32.gmra.mrb[0].mxu0 %v274
      %v1325 = vpop.f32.mrb[0].mxu0
      %v1326 = vadd.f32 0.0, %v1325
      %v1327 = vpop.f32.mrb[0].mxu0
      %1328 = vmatprep.mubr.f32.mxu0 0.0
      %1329 = vmatmul.mubr.f32.gmra.mrb[0].mxu0 %v277
      %v1330 = vpop.f32.mrb[0].mxu0
      %v1331 = vadd.f32 0.0, %v1330
      %v1332 = vpop.f32.mrb[0].mxu0
      %1333 = vmatprep.mubr.f32.mxu0 0.0
      %1334 = vmatmul.mubr.f32.gmra.mrb[0].mxu0 %v280
      %v1335 = vpop.f32.mrb[0].mxu0
      %v1336 = vadd.f32 0.0, %v1335
      %v1337 = vpop.f32.mrb[0].mxu0
      %1338 = vmatprep.mubr.f32.mxu0 0.0
      %1339 = vmatmul.mubr.f32.gmra.mrb[0].mxu0 %v283
      %v1340 = vpop.f32.mrb[0].mxu0
      %v1341 = vadd.f32 0.0, %v1340
      %v1342 = vpop.f32.mrb[0].mxu0
      %1343 = vmatprep.mubr.f32.mxu0 0.0
      %1344 = vmatmul.mubr.f32.gmra.mrb[0].mxu0 %v286
      %v1345 = vpop.f32.mrb[0].mxu0
      %v1346 = vadd.f32 0.0, %v1345
      %v1347 = vpop.f32.mrb[0].mxu0
      %1348 = vmatprep.mubr.f32.mxu0 0.0
      %1349 = vmatmul.mubr.f32.gmra.mrb[0].mxu0 %v289
      %v1350 = vpop.f32.mrb[0].mxu0
      %v1351 = vadd.f32 0.0, %v1350
      %v1352 = vpop.f32.mrb[0].mxu0
      %1353 = vmatprep.mubr.f32.mxu0 0.0
      %1354 = vmatmul.mubr.f32.gmra.mrb[0].mxu0 %v292
      %v1355 = vpop.f32.mrb[0].mxu0
      %v1356 = vadd.f32 0.0, %v1355
      %v1357 = vpop.f32.mrb[0].mxu0
      %1358 = vmatprep.mubr.f32.mxu0 0.0
      %1359 = vmatmul.mubr.f32.gmra.mrb[0].mxu0 %v295
      %v1360 = vpop.f32.mrb[0].mxu0
      %v1361 = vadd.f32 0.0, %v1360
      %v1362 = vpop.f32.mrb[0].mxu0
      %1363 = vmatprep.mubr.f32.mxu0 0.0
      %1364 = vmatmul.mubr.f32.gmra.mrb[0].mxu0 %v298
      %v1365 = vpop.f32.mrb[0].mxu0
      %v1366 = vadd.f32 0.0, %v1365
      %v1367 = vpop.f32.mrb[0].mxu0
      %1368 = vmatprep.mubr.f32.mxu0 0.0
      %1369 = vmatmul.mubr.f32.gmra.mrb[0].mxu0 %v301
      %v1370 = vpop.f32.mrb[0].mxu0
      %v1371 = vadd.f32 0.0, %v1370
      %v1372 = vpop.f32.mrb[0].mxu0
      %1373 = vmatprep.mubr.f32.mxu0 0.0
      %1374 = vmatmul.mubr.f32.gmra.mrb[0].mxu0 %v304
      %v1375 = vpop.f32.mrb[0].mxu0
      %v1376 = vadd.f32 0.0, %v1375
      %v1377 = vpop.f32.mrb[0].mxu0
      %1378 = vmatprep.mubr.f32.mxu0 0.0
      %1379 = vmatmul.mubr.f32.gmra.mrb[0].mxu0 %v307
      %v1380 = vpop.f32.mrb[0].mxu0
      %v1381 = vadd.f32 0.0, %v1380
      %v1382 = vpop.f32.mrb[0].mxu0
      %1383 = vmatprep.mubr.f32.mxu0 0.0
      %1384 = vmatmul.mubr.f32.gmra.mrb[0].mxu0 %v310
      %v1385 = vpop.f32.mrb[0].mxu0
      %v1386 = vadd.f32 0.0, %v1385
      %v1387 = vpop.f32.mrb[0].mxu0
      %1388 = vmatprep.mubr.f32.mxu0 0.0
      %1389 = vmatmul.mubr.f32.gmra.mrb[0].mxu0 %v313
      %v1390 = vpop.f32.mrb[0].mxu0
      %v1391 = vadd.f32 0.0, %v1390
      %v1392 = vpop.f32.mrb[0].mxu0
      %1393 = vmatprep.mubr.f32.mxu0 0.0
      %1394 = vmatmul.mubr.f32.gmra.mrb[0].mxu0 %v316
      %v1395 = vpop.f32.mrb[0].mxu0
      %v1396 = vadd.f32 0.0, %v1395
      %v1397 = vpop.f32.mrb[0].mxu0
      %1398 = vmatprep.mubr.f32.mxu0 0.0
      %1399 = vmatmul.mubr.f32.gmra.mrb[0].mxu0 %v319
      %v1400 = vpop.f32.mrb[0].mxu0
      %v1401 = vadd.f32 0.0, %v1400
      %v1402 = vpop.f32.mrb[0].mxu0
      %1403 = vmatprep.mubr.f32.mxu0 0.0
      %1404 = vmatmul.mubr.f32.gmra.mrb[0].mxu0 %v322
      %v1405 = vpop.f32.mrb[0].mxu0
      %v1406 = vadd.f32 0.0, %v1405
      %v1407 = vpop.f32.mrb[0].mxu0
      %1408 = vmatprep.mubr.f32.mxu0 0.0
      %1409 = vmatmul.mubr.f32.gmra.mrb[0].mxu0 %v325
      %v1410 = vpop.f32.mrb[0].mxu0
      %v1411 = vadd.f32 0.0, %v1410
      %v1412 = vpop.f32.mrb[0].mxu0
      %1413 = vmatprep.mubr.f32.mxu0 0.0
      %1414 = vmatmul.mubr.f32.gmra.mrb[0].mxu0 %v328
      %v1415 = vpop.f32.mrb[0].mxu0
      %v1416 = vadd.f32 0.0, %v1415
      %v1417 = vpop.f32.mrb[0].mxu0
      %1418 = vmatprep.mubr.f32.mxu0 0.0
      %1419 = vmatmul.mubr.f32.gmra.mrb[0].mxu0 %v331
      %v1420 = vpop.f32.mrb[0].mxu0
      %v1421 = vadd.f32 0.0, %v1420
      %v1422 = vpop.f32.mrb[0].mxu0
      %1423 = vmatprep.mubr.f32.mxu0 0.0
      %1424 = vmatmul.mubr.f32.gmra.mrb[0].mxu0 %v334
      %v1425 = vpop.f32.mrb[0].mxu0
      %v1426 = vadd.f32 0.0, %v1425
      %v1427 = vpop.f32.mrb[0].mxu0
      %1428 = vmatprep.mubr.f32.mxu0 0.0
      %1429 = vmatmul.mubr.f32.gmra.mrb[0].mxu0 %v337
      %v1430 = vpop.f32.mrb[0].mxu0
      %v1431 = vadd.f32 0.0, %v1430
      %v1432 = vpop.f32.mrb[0].mxu0
      %1433 = vmatprep.mubr.f32.mxu0 0.0
      %1434 = vmatmul.mubr.f32.gmra.mrb[0].mxu0 %v340
      %v1435 = vpop.f32.mrb[0].mxu0
      %v1436 = vadd.f32 0.0, %v1435
      %v1437 = vpop.f32.mrb[0].mxu0
      %1438 = vmatprep.mubr.f32.mxu0 0.0
      %1439 = vmatmul.mubr.f32.gmra.mrb[0].mxu0 %v343
      %v1440 = vpop.f32.mrb[0].mxu0
      %v1441 = vadd.f32 0.0, %v1440
      %v1442 = vpop.f32.mrb[0].mxu0
      %1443 = vmatprep.mubr.f32.mxu0 0.0
      %1444 = vmatmul.mubr.f32.gmra.mrb[0].mxu0 %v346
      %v1445 = vpop.f32.mrb[0].mxu0
      %v1446 = vadd.f32 0.0, %v1445
      %v1447 = vpop.f32.mrb[0].mxu0
      %1448 = vmatprep.mubr.f32.mxu0 0.0
      %1449 = vmatmul.mubr.f32.gmra.mrb[0].mxu0 %v349
      %v1450 = vpop.f32.mrb[0].mxu0
      %v1451 = vadd.f32 0.0, %v1450
      %v1452 = vpop.f32.mrb[0].mxu0
      %1453 = vmatprep.mubr.f32.mxu0 0.0
      %1454 = vmatmul.mubr.f32.gmra.mrb[0].mxu0 %v352
      %v1455 = vpop.f32.mrb[0].mxu0
      %v1456 = vadd.f32 0.0, %v1455
      %v1457 = vpop.f32.mrb[0].mxu0
      %1458 = vmatprep.mubr.f32.mxu0 0.0
      %1459 = vmatmul.mubr.f32.gmra.mrb[0].mxu0 %v355
      %v1460 = vpop.f32.mrb[0].mxu0
      %v1461 = vadd.f32 0.0, %v1460
      %v1462 = vpop.f32.mrb[0].mxu0
      %1463 = vmatprep.mubr.f32.mxu0 0.0
      %1464 = vmatmul.mubr.f32.gmra.mrb[0].mxu0 %v358
      %v1465 = vpop.f32.mrb[0].mxu0
      %v1466 = vadd.f32 0.0, %v1465
      %v1467 = vpop.f32.mrb[0].mxu0
      %1468 = vmatprep.mubr.f32.mxu0 0.0
      %1469 = vmatmul.mubr.f32.gmra.mrb[0].mxu0 %v361
      %v1470 = vpop.f32.mrb[0].mxu0
      %v1471 = vadd.f32 0.0, %v1470
      %v1472 = vpop.f32.mrb[0].mxu0
      %1473 = vmatprep.mubr.f32.mxu0 0.0
      %1474 = vmatmul.mubr.f32.gmra.mrb[0].mxu0 %v364
      %v1475 = vpop.f32.mrb[0].mxu0
      %v1476 = vadd.f32 0.0, %v1475
      %v1477 = vpop.f32.mrb[0].mxu0
      %1478 = vmatprep.mubr.f32.mxu0 0.0
      %1479 = vmatmul.mubr.f32.gmra.mrb[0].mxu0 %v367
      %v1480 = vpop.f32.mrb[0].mxu0
      %v1481 = vadd.f32 0.0, %v1480
      %v1482 = vpop.f32.mrb[0].mxu0
      %1483 = vmatprep.mubr.f32.mxu0 0.0
      %1484 = vmatmul.mubr.f32.gmra.mrb[0].mxu0 %v370
      %v1485 = vpop.f32.mrb[0].mxu0
      %v1486 = vadd.f32 0.0, %v1485
      %v1487 = vpop.f32.mrb[0].mxu0
      %1488 = vmatprep.mubr.f32.mxu0 0.0
      %1489 = vmatmul.mubr.f32.gmra.mrb[0].mxu0 %v373
      %v1490 = vpop.f32.mrb[0].mxu0
      %v1491 = vadd.f32 0.0, %v1490
      %v1492 = vpop.f32.mrb[0].mxu0
      %1493 = vmatprep.mubr.f32.mxu0 0.0
      %1494 = vmatmul.mubr.f32.gmra.mrb[0].mxu0 %v376
      %v1495 = vpop.f32.mrb[0].mxu0
      %v1496 = vadd.f32 0.0, %v1495
      %v1497 = vpop.f32.mrb[0].mxu0
      %1498 = vmatprep.mubr.f32.mxu0 0.0
      %1499 = vmatmul.mubr.f32.gmra.mrb[0].mxu0 %v379
      %v1500 = vpop.f32.mrb[0].mxu0
      %v1501 = vadd.f32 0.0, %v1500
      %v1502 = vpop.f32.mrb[0].mxu0
      %1503 = vmatprep.mubr.f32.mxu0 0.0
      %1504 = vmatmul.mubr.f32.gmra.mrb[0].mxu0 %v382
      %v1505 = vpop.f32.mrb[0].mxu0
      %v1506 = vadd.f32 0.0, %v1505
      %v1507 = vpop.f32.mrb[0].mxu0
      %1508 = vmatprep.mubr.f32.mxu0 0.0
      %1509 = vmatmul.mubr.f32.gmra.mrb[0].mxu0 %v385
      %v1510 = vpop.f32.mrb[0].mxu0
      %v1511 = vadd.f32 0.0, %v1510
      %v1512 = vpop.f32.mrb[0].mxu0
      %1513 = vmatprep.mubr.f32.mxu0 0.0
      %1514 = vmatmul.mubr.f32.gmra.mrb[0].mxu0 %v388
      %v1515 = vpop.f32.mrb[0].mxu0
      %v1516 = vadd.f32 0.0, %v1515
      %v1517 = vpop.f32.mrb[0].mxu0
      %1518 = vmatprep.mubr.f32.mxu0 0.0
      %1519 = vmatmul.mubr.f32.gmra.mrb[0].mxu0 %v391
      %v1520 = vpop.f32.mrb[0].mxu0
      %v1521 = vadd.f32 0.0, %v1520
      %v1522 = vpop.f32.mrb[0].mxu0
      %1523 = vmatprep.mubr.f32.mxu0 0.0
      %1524 = vmatmul.mubr.f32.gmra.mrb[0].mxu0 %v394
      %v1525 = vpop.f32.mrb[0].mxu0
      %v1526 = vadd.f32 0.0, %v1525
      %v1527 = vpop.f32.mrb[0].mxu0
      %1528 = vmatprep.mubr.f32.mxu0 0.0
      %1529 = vmatmul.mubr.f32.gmra.mrb[0].mxu0 %v397
      %v1530 = vpop.f32.mrb[0].mxu0
      %v1531 = vadd.f32 0.0, %v1530
      %v1532 = vpop.f32.mrb[0].mxu0
      %1533 = vmatprep.mubr.f32.mxu0 0.0
      %1534 = vmatmul.mubr.f32.gmra.mrb[0].mxu0 %v400
      %v1535 = vpop.f32.mrb[0].mxu0
      %v1536 = vadd.f32 0.0, %v1535
      %v1537 = vpop.f32.mrb[0].mxu0
      %1538 = vmatprep.mubr.f32.mxu0 0.0
      %1539 = vmatmul.mubr.f32.gmra.mrb[0].mxu0 %v403
      %v1540 = vpop.f32.mrb[0].mxu0
      %v1541 = vadd.f32 0.0, %v1540
      %v1542 = vpop.f32.mrb[0].mxu0
      %1543 = vmatprep.mubr.f32.mxu0 0.0
      %1544 = vmatmul.mubr.f32.gmra.mrb[0].mxu0 %v406
      %v1545 = vpop.f32.mrb[0].mxu0
      %v1546 = vadd.f32 0.0, %v1545
      %v1547 = vpop.f32.mrb[0].mxu0
      %1548 = vmatprep.mubr.f32.mxu0 0.0
      %1549 = vmatmul.mubr.f32.gmra.mrb[0].mxu0 %v409
      %v1550 = vpop.f32.mrb[0].mxu0
      %v1551 = vadd.f32 0.0, %v1550
      %v1552 = vpop.f32.mrb[0].mxu0
      %1553 = vmatprep.mubr.f32.mxu0 0.0
      %1554 = vmatmul.mubr.f32.gmra.mrb[0].mxu0 %v412
      %v1555 = vpop.f32.mrb[0].mxu0
      %v1556 = vadd.f32 0.0, %v1555
      %v1557 = vpop.f32.mrb[0].mxu0
      %1558 = vmatprep.mubr.f32.mxu0 0.0
      %1559 = vmatmul.mubr.f32.gmra.mrb[0].mxu0 %v415
      %v1560 = vpop.f32.mrb[0].mxu0
      %v1561 = vadd.f32 0.0, %v1560
      %v1562 = vpop.f32.mrb[0].mxu0
      %1563 = vmatprep.mubr.f32.mxu0 0.0
      %1564 = vmatmul.mubr.f32.gmra.mrb[0].mxu0 %v418
      %v1565 = vpop.f32.mrb[0].mxu0
      %v1566 = vadd.f32 0.0, %v1565
      %v1567 = vpop.f32.mrb[0].mxu0
      %1568 = vmatprep.mubr.f32.mxu0 0.0
      %1569 = vmatmul.mubr.f32.gmra.mrb[0].mxu0 %v421
      %v1570 = vpop.f32.mrb[0].mxu0
      %v1571 = vadd.f32 0.0, %v1570
      %v1572 = vpop.f32.mrb[0].mxu0
      %1573 = vmatprep.mubr.f32.mxu0 0.0
      %1574 = vmatmul.mubr.f32.gmra.mrb[0].mxu0 %v424
      %v1575 = vpop.f32.mrb[0].mxu0
      %v1576 = vadd.f32 0.0, %v1575
      %v1577 = vpop.f32.mrb[0].mxu0
      %1578 = vmatprep.mubr.f32.mxu0 0.0
      %1579 = vmatmul.mubr.f32.gmra.mrb[0].mxu0 %v427
      %v1580 = vpop.f32.mrb[0].mxu0
      %v1581 = vadd.f32 0.0, %v1580
      %v1582 = vpop.f32.mrb[0].mxu0
      %1583 = vmatprep.mubr.f32.mxu0 0.0
      %1584 = vmatmul.mubr.f32.gmra.mrb[0].mxu0 %v430
      %v1585 = vpop.f32.mrb[0].mxu0
      %v1586 = vadd.f32 0.0, %v1585
      %v1587 = vpop.f32.mrb[0].mxu0
      %1588 = vmatprep.mubr.f32.mxu0 0.0
      %1589 = vmatmul.mubr.f32.gmra.mrb[0].mxu0 %v433
      %v1590 = vpop.f32.mrb[0].mxu0
      %v1591 = vadd.f32 0.0, %v1590
      %v1592 = vpop.f32.mrb[0].mxu0
      %1593 = vmatprep.mubr.f32.mxu0 0.0
      %1594 = vmatmul.mubr.f32.gmra.mrb[0].mxu0 %v1214
      %v1595 = vpop.f32.mrb[0].mxu0
      %v1596 = vadd.f32 0.0, %v1595
      %v1597 = vpop.f32.mrb[0].mxu0
      %1598 = vmatprep.mubr.f32.mxu0 0.0
      %1599 = vmatmul.mubr.f32.gmra.mrb[0].mxu0 %v1217
      %v1600 = vpop.f32.mrb[0].mxu0
      %v1601 = vadd.f32 0.0, %v1600
      %v1602 = vpop.f32.mrb[0].mxu0
      %1603 = vdwg.mxu0
      %v1604 = vadd.f32 %v893, %v1286
      %v1605 = vadd.f32 %v898, %v1291
      %v1606 = vadd.f32 %v903, %v1296
      %v1607 = vadd.f32 %v908, %v1301
      %v1608 = vadd.f32 %v913, %v1306
      %v1609 = vadd.f32 %v918, %v1311
      %v1610 = vadd.f32 %v923, %v1316
      %v1611 = vadd.f32 %v928, %v1321
      %v1612 = vadd.f32 %v933, %v1326
      %v1613 = vadd.f32 %v938, %v1331
      %v1614 = vadd.f32 %v943, %v1336
      %v1615 = vadd.f32 %v948, %v1341
      %v1616 = vadd.f32 %v953, %v1346
      %v1617 = vadd.f32 %v958, %v1351
      %v1618 = vadd.f32 %v963, %v1356
      %v1619 = vadd.f32 %v968, %v1361
      %v1620 = vadd.f32 %v973, %v1366
      %v1621 = vadd.f32 %v978, %v1371
      %v1622 = vadd.f32 %v983, %v1376
      %v1623 = vadd.f32 %v988, %v1381
      %v1624 = vadd.f32 %v993, %v1386
      %v1625 = vadd.f32 %v998, %v1391
      %v1626 = vadd.f32 %v1003, %v1396
      %v1627 = vadd.f32 %v1008, %v1401
      %v1628 = vadd.f32 %v1013, %v1406
      %v1629 = vadd.f32 %v1018, %v1411
      %v1630 = vadd.f32 %v1023, %v1416
      %v1631 = vadd.f32 %v1028, %v1421
      %v1632 = vadd.f32 %v1033, %v1426
      %v1633 = vadd.f32 %v1038, %v1431
      %v1634 = vadd.f32 %v1043, %v1436
      %v1635 = vadd.f32 %v1048, %v1441
      %v1636 = vadd.f32 %v1053, %v1446
      %v1637 = vadd.f32 %v1058, %v1451
      %v1638 = vadd.f32 %v1063, %v1456
      %v1639 = vadd.f32 %v1068, %v1461
      %v1640 = vadd.f32 %v1073, %v1466
      %v1641 = vadd.f32 %v1078, %v1471
      %v1642 = vadd.f32 %v1083, %v1476
      %v1643 = vadd.f32 %v1088, %v1481
      %v1644 = vadd.f32 %v1093, %v1486
      %v1645 = vadd.f32 %v1098, %v1491
      %v1646 = vadd.f32 %v1103, %v1496
      %v1647 = vadd.f32 %v1108, %v1501
      %v1648 = vadd.f32 %v1113, %v1506
      %v1649 = vadd.f32 %v1118, %v1511
      %v1650 = vadd.f32 %v1123, %v1516
      %v1651 = vadd.f32 %v1128, %v1521
      %v1652 = vadd.f32 %v1133, %v1526
      %v1653 = vadd.f32 %v1138, %v1531
      %v1654 = vadd.f32 %v1143, %v1536
      %v1655 = vadd.f32 %v1148, %v1541
      %v1656 = vadd.f32 %v1153, %v1546
      %v1657 = vadd.f32 %v1158, %v1551
      %v1658 = vadd.f32 %v1163, %v1556
      %v1659 = vadd.f32 %v1168, %v1561
      %v1660 = vadd.f32 %v1173, %v1566
      %v1661 = vadd.f32 %v1178, %v1571
      %v1662 = vadd.f32 %v1183, %v1576
      %v1663 = vadd.f32 %v1188, %v1581
      %v1664 = vadd.f32 %v1193, %v1586
      %v1665 = vadd.f32 %v1198, %v1591
      %v1666 = vadd.f32 %v1203, %v1596
      %v1667 = vadd.f32 %v1208, %v1601
      %v1668 = vld [vmem:[%s2] sm:$0x1]
      %v1670 = vlaneseq
      %v1671 = vshrl.u32 %v1670, 7
      %v1672 = vsub.s32 0, %v1671
      %v1673 = vrot.slane %v1668, %v1672
      %v1675 = vadd.f32 %v1604, %v1673
      %v1676 = vadd.f32 %v1605, %v1673
      %v1677 = vadd.f32 %v1606, %v1673
      %v1678 = vadd.f32 %v1607, %v1673
      %v1679 = vadd.f32 %v1608, %v1673
      %v1680 = vadd.f32 %v1609, %v1673
      %v1681 = vadd.f32 %v1610, %v1673
      %v1682 = vadd.f32 %v1611, %v1673
      %v1683 = vadd.f32 %v1612, %v1673
      %v1684 = vadd.f32 %v1613, %v1673
      %v1685 = vadd.f32 %v1614, %v1673
      %v1686 = vadd.f32 %v1615, %v1673
      %v1687 = vadd.f32 %v1616, %v1673
      %v1688 = vadd.f32 %v1617, %v1673
      %v1689 = vadd.f32 %v1618, %v1673
      %v1690 = vadd.f32 %v1619, %v1673
      %v1691 = vadd.f32 %v1620, %v1673
      %v1692 = vadd.f32 %v1621, %v1673
      %v1693 = vadd.f32 %v1622, %v1673
      %v1694 = vadd.f32 %v1623, %v1673
      %v1695 = vadd.f32 %v1624, %v1673
      %v1696 = vadd.f32 %v1625, %v1673
      %v1697 = vadd.f32 %v1626, %v1673
      %v1698 = vadd.f32 %v1627, %v1673
      %v1699 = vadd.f32 %v1628, %v1673
      %v1700 = vadd.f32 %v1629, %v1673
      %v1701 = vadd.f32 %v1630, %v1673
      %v1702 = vadd.f32 %v1631, %v1673
      %v1703 = vadd.f32 %v1632, %v1673
      %v1704 = vadd.f32 %v1633, %v1673
      %v1705 = vadd.f32 %v1634, %v1673
      %v1706 = vadd.f32 %v1635, %v1673
      %v1707 = vadd.f32 %v1636, %v1673
      %v1708 = vadd.f32 %v1637, %v1673
      %v1709 = vadd.f32 %v1638, %v1673
      %v1710 = vadd.f32 %v1639, %v1673
      %v1711 = vadd.f32 %v1640, %v1673
      %v1712 = vadd.f32 %v1641, %v1673
      %v1713 = vadd.f32 %v1642, %v1673
      %v1714 = vadd.f32 %v1643, %v1673
      %v1715 = vadd.f32 %v1644, %v1673
      %v1716 = vadd.f32 %v1645, %v1673
      %v1717 = vadd.f32 %v1646, %v1673
      %v1718 = vadd.f32 %v1647, %v1673
      %v1719 = vadd.f32 %v1648, %v1673
      %v1720 = vadd.f32 %v1649, %v1673
      %v1721 = vadd.f32 %v1650, %v1673
      %v1722 = vadd.f32 %v1651, %v1673
      %v1723 = vadd.f32 %v1652, %v1673
      %v1724 = vadd.f32 %v1653, %v1673
      %v1725 = vadd.f32 %v1654, %v1673
      %v1726 = vadd.f32 %v1655, %v1673
      %v1727 = vadd.f32 %v1656, %v1673
      %v1728 = vadd.f32 %v1657, %v1673
      %v1729 = vadd.f32 %v1658, %v1673
      %v1730 = vadd.f32 %v1659, %v1673
      %v1731 = vadd.f32 %v1660, %v1673
      %v1732 = vadd.f32 %v1661, %v1673
      %v1733 = vadd.f32 %v1662, %v1673
      %v1734 = vadd.f32 %v1663, %v1673
      %v1735 = vadd.f32 %v1664, %v1673
      %v1736 = vadd.f32 %v1665, %v1673
      %v1737 = vadd.f32 %v1666, %v1673
      %v1738 = vadd.f32 %v1667, %v1673
      %v1739 = vmax.f32 %v1675, 0.0
      %v1740 = vmax.f32 %v1676, 0.0
      %v1741 = vmax.f32 %v1677, 0.0
      %v1742 = vmax.f32 %v1678, 0.0
      %v1743 = vmax.f32 %v1679, 0.0
      %v1744 = vmax.f32 %v1680, 0.0
      %v1745 = vmax.f32 %v1681, 0.0
      %v1746 = vmax.f32 %v1682, 0.0
      %v1747 = vmax.f32 %v1683, 0.0
      %v1748 = vmax.f32 %v1684, 0.0
      %v1749 = vmax.f32 %v1685, 0.0
      %v1750 = vmax.f32 %v1686, 0.0
      %v1751 = vmax.f32 %v1687, 0.0
      %v1752 = vmax.f32 %v1688, 0.0
      %v1753 = vmax.f32 %v1689, 0.0
      %v1754 = vmax.f32 %v1690, 0.0
      %v1755 = vmax.f32 %v1691, 0.0
      %v1756 = vmax.f32 %v1692, 0.0
      %v1757 = vmax.f32 %v1693, 0.0
      %v1758 = vmax.f32 %v1694, 0.0
      %v1759 = vmax.f32 %v1695, 0.0
      %v1760 = vmax.f32 %v1696, 0.0
      %v1761 = vmax.f32 %v1697, 0.0
      %v1762 = vmax.f32 %v1698, 0.0
      %v1763 = vmax.f32 %v1699, 0.0
      %v1764 = vmax.f32 %v1700, 0.0
      %v1765 = vmax.f32 %v1701, 0.0
      %v1766 = vmax.f32 %v1702, 0.0
      %v1767 = vmax.f32 %v1703, 0.0
      %v1768 = vmax.f32 %v1704, 0.0
      %v1769 = vmax.f32 %v1705, 0.0
      %v1770 = vmax.f32 %v1706, 0.0
      %v1771 = vmax.f32 %v1707, 0.0
      %v1772 = vmax.f32 %v1708, 0.0
      %v1773 = vmax.f32 %v1709, 0.0
      %v1774 = vmax.f32 %v1710, 0.0
      %v1775 = vmax.f32 %v1711, 0.0
      %v1776 = vmax.f32 %v1712, 0.0
      %v1777 = vmax.f32 %v1713, 0.0
      %v1778 = vmax.f32 %v1714, 0.0
      %v1779 = vmax.f32 %v1715, 0.0
      %v1780 = vmax.f32 %v1716, 0.0
      %v1781 = vmax.f32 %v1717, 0.0
      %v1782 = vmax.f32 %v1718, 0.0
      %v1783 = vmax.f32 %v1719, 0.0
      %v1784 = vmax.f32 %v1720, 0.0
      %v1785 = vmax.f32 %v1721, 0.0
      %v1786 = vmax.f32 %v1722, 0.0
      %v1787 = vmax.f32 %v1723, 0.0
      %v1788 = vmax.f32 %v1724, 0.0
      %v1789 = vmax.f32 %v1725, 0.0
      %v1790 = vmax.f32 %v1726, 0.0
      %v1791 = vmax.f32 %v1727, 0.0
      %v1792 = vmax.f32 %v1728, 0.0
      %v1793 = vmax.f32 %v1729, 0.0
      %v1794 = vmax.f32 %v1730, 0.0
      %v1795 = vmax.f32 %v1731, 0.0
      %v1796 = vmax.f32 %v1732, 0.0
      %v1797 = vmax.f32 %v1733, 0.0
      %v1798 = vmax.f32 %v1734, 0.0
      %v1799 = vmax.f32 %v1735, 0.0
      %v1800 = vmax.f32 %v1736, 0.0
      %v1801 = vmax.f32 %v1737, 0.0
      %v1802 = vmax.f32 %v1738, 0.0
      %1867 = vrot.lane.b32.xlu0 %v1739, 96
      %v1868 = vpop.permute.xlu0 %1867
      %1869 = vrot.lane.b32.xlu0 %v1740, 96
      %v1870 = vpop.permute.xlu0 %1869
      %1871 = vrot.lane.b32.xlu0 %v1741, 96
      %v1872 = vpop.permute.xlu0 %1871
      %1873 = vrot.lane.b32.xlu0 %v1742, 96
      %v1874 = vpop.permute.xlu0 %1873
      %1875 = vrot.lane.b32.xlu0 %v1743, 96
      %v1876 = vpop.permute.xlu0 %1875
      %1877 = vrot.lane.b32.xlu0 %v1744, 96
      %v1878 = vpop.permute.xlu0 %1877
      %1879 = vrot.lane.b32.xlu0 %v1745, 96
      %v1880 = vpop.permute.xlu0 %1879
      %1881 = vrot.lane.b32.xlu0 %v1746, 96
      %v1882 = vpop.permute.xlu0 %1881
      %1883 = vrot.lane.b32.xlu0 %v1747, 96
      %v1884 = vpop.permute.xlu0 %1883
      %1885 = vrot.lane.b32.xlu0 %v1748, 96
      %v1886 = vpop.permute.xlu0 %1885
      %1887 = vrot.lane.b32.xlu0 %v1749, 96
      %v1888 = vpop.permute.xlu0 %1887
      %1889 = vrot.lane.b32.xlu0 %v1750, 96
      %v1890 = vpop.permute.xlu0 %1889
      %1891 = vrot.lane.b32.xlu0 %v1751, 96
      %v1892 = vpop.permute.xlu0 %1891
      %1893 = vrot.lane.b32.xlu0 %v1752, 96
      %v1894 = vpop.permute.xlu0 %1893
      %1895 = vrot.lane.b32.xlu0 %v1753, 96
      %v1896 = vpop.permute.xlu0 %1895
      %1897 = vrot.lane.b32.xlu0 %v1754, 96
      %v1898 = vpop.permute.xlu0 %1897
      %1899 = vrot.lane.b32.xlu0 %v1755, 96
      %v1900 = vpop.permute.xlu0 %1899
      %1901 = vrot.lane.b32.xlu0 %v1756, 96
      %v1902 = vpop.permute.xlu0 %1901
      %1903 = vrot.lane.b32.xlu0 %v1757, 96
      %v1904 = vpop.permute.xlu0 %1903
      %1905 = vrot.lane.b32.xlu0 %v1758, 96
      %v1906 = vpop.permute.xlu0 %1905
      %1907 = vrot.lane.b32.xlu0 %v1759, 96
      %v1908 = vpop.permute.xlu0 %1907
      %1909 = vrot.lane.b32.xlu0 %v1760, 96
      %v1910 = vpop.permute.xlu0 %1909
      %1911 = vrot.lane.b32.xlu0 %v1761, 96
      %v1912 = vpop.permute.xlu0 %1911
      %1913 = vrot.lane.b32.xlu0 %v1762, 96
      %v1914 = vpop.permute.xlu0 %1913
      %1915 = vrot.lane.b32.xlu0 %v1763, 96
      %v1916 = vpop.permute.xlu0 %1915
      %1917 = vrot.lane.b32.xlu0 %v1764, 96
      %v1918 = vpop.permute.xlu0 %1917
      %1919 = vrot.lane.b32.xlu0 %v1765, 96
      %v1920 = vpop.permute.xlu0 %1919
      %1921 = vrot.lane.b32.xlu0 %v1766, 96
      %v1922 = vpop.permute.xlu0 %1921
      %1923 = vrot.lane.b32.xlu0 %v1767, 96
      %v1924 = vpop.permute.xlu0 %1923
      %1925 = vrot.lane.b32.xlu0 %v1768, 96
      %v1926 = vpop.permute.xlu0 %1925
      %1927 = vrot.lane.b32.xlu0 %v1769, 96
      %v1928 = vpop.permute.xlu0 %1927
      %1929 = vrot.lane.b32.xlu0 %v1770, 96
      %v1930 = vpop.permute.xlu0 %1929
      %1931 = vrot.lane.b32.xlu0 %v1771, 96
      %v1932 = vpop.permute.xlu0 %1931
      %1933 = vrot.lane.b32.xlu0 %v1772, 96
      %v1934 = vpop.permute.xlu0 %1933
      %1935 = vrot.lane.b32.xlu0 %v1773, 96
      %v1936 = vpop.permute.xlu0 %1935
      %1937 = vrot.lane.b32.xlu0 %v1774, 96
      %v1938 = vpop.permute.xlu0 %1937
      %1939 = vrot.lane.b32.xlu0 %v1775, 96
      %v1940 = vpop.permute.xlu0 %1939
      %1941 = vrot.lane.b32.xlu0 %v1776, 96
      %v1942 = vpop.permute.xlu0 %1941
      %1943 = vrot.lane.b32.xlu0 %v1777, 96
      %v1944 = vpop.permute.xlu0 %1943
      %1945 = vrot.lane.b32.xlu0 %v1778, 96
      %v1946 = vpop.permute.xlu0 %1945
      %1947 = vrot.lane.b32.xlu0 %v1779, 96
      %v1948 = vpop.permute.xlu0 %1947
      %1949 = vrot.lane.b32.xlu0 %v1780, 96
      %v1950 = vpop.permute.xlu0 %1949
      %1951 = vrot.lane.b32.xlu0 %v1781, 96
      %v1952 = vpop.permute.xlu0 %1951
      %1953 = vrot.lane.b32.xlu0 %v1782, 96
      %v1954 = vpop.permute.xlu0 %1953
      %1955 = vrot.lane.b32.xlu0 %v1783, 96
      %v1956 = vpop.permute.xlu0 %1955
      %1957 = vrot.lane.b32.xlu0 %v1784, 96
      %v1958 = vpop.permute.xlu0 %1957
      %1959 = vrot.lane.b32.xlu0 %v1785, 96
      %v1960 = vpop.permute.xlu0 %1959
      %1961 = vrot.lane.b32.xlu0 %v1786, 96
      %v1962 = vpop.permute.xlu0 %1961
      %1963 = vrot.lane.b32.xlu0 %v1787, 96
      %v1964 = vpop.permute.xlu0 %1963
      %1965 = vrot.lane.b32.xlu0 %v1788, 96
      %v1966 = vpop.permute.xlu0 %1965
      %1967 = vrot.lane.b32.xlu0 %v1789, 96
      %v1968 = vpop.permute.xlu0 %1967
      %1969 = vrot.lane.b32.xlu0 %v1790, 96
      %v1970 = vpop.permute.xlu0 %1969
      %1971 = vrot.lane.b32.xlu0 %v1791, 96
      %v1972 = vpop.permute.xlu0 %1971
      %1973 = vrot.lane.b32.xlu0 %v1792, 96
      %v1974 = vpop.permute.xlu0 %1973
      %1975 = vrot.lane.b32.xlu0 %v1793, 96
      %v1976 = vpop.permute.xlu0 %1975
      %1977 = vrot.lane.b32.xlu0 %v1794, 96
      %v1978 = vpop.permute.xlu0 %1977
      %1979 = vrot.lane.b32.xlu0 %v1795, 96
      %v1980 = vpop.permute.xlu0 %1979
      %1981 = vrot.lane.b32.xlu0 %v1796, 96
      %v1982 = vpop.permute.xlu0 %1981
      %1983 = vrot.lane.b32.xlu0 %v1797, 96
      %v1984 = vpop.permute.xlu0 %1983
      %1985 = vrot.lane.b32.xlu0 %v1798, 96
      %v1986 = vpop.permute.xlu0 %1985
      %1987 = vrot.lane.b32.xlu0 %v1799, 96
      %v1988 = vpop.permute.xlu0 %1987
      %1989 = vrot.lane.b32.xlu0 %v1800, 96
      %v1990 = vpop.permute.xlu0 %1989
      %1991 = vrot.lane.b32.xlu0 %v1801, 96
      %v1992 = vpop.permute.xlu0 %1991
      %1993 = vrot.lane.b32.xlu0 %v1802, 96
      %v1994 = vpop.permute.xlu0 %1993
      %v2059 = vmax.f32 %v1739, %v1868
      %v2060 = vmax.f32 %v1740, %v1870
      %v2061 = vmax.f32 %v1741, %v1872
      %v2062 = vmax.f32 %v1742, %v1874
      %v2063 = vmax.f32 %v1743, %v1876
      %v2064 = vmax.f32 %v1744, %v1878
      %v2065 = vmax.f32 %v1745, %v1880
      %v2066 = vmax.f32 %v1746, %v1882
      %v2067 = vmax.f32 %v1747, %v1884
      %v2068 = vmax.f32 %v1748, %v1886
      %v2069 = vmax.f32 %v1749, %v1888
      %v2070 = vmax.f32 %v1750, %v1890
      %v2071 = vmax.f32 %v1751, %v1892
      %v2072 = vmax.f32 %v1752, %v1894
      %v2073 = vmax.f32 %v1753, %v1896
      %v2074 = vmax.f32 %v1754, %v1898
      %v2075 = vmax.f32 %v1755, %v1900
      %v2076 = vmax.f32 %v1756, %v1902
      %v2077 = vmax.f32 %v1757, %v1904
      %v2078 = vmax.f32 %v1758, %v1906
      %v2079 = vmax.f32 %v1759, %v1908
      %v2080 = vmax.f32 %v1760, %v1910
      %v2081 = vmax.f32 %v1761, %v1912
      %v2082 = vmax.f32 %v1762, %v1914
      %v2083 = vmax.f32 %v1763, %v1916
      %v2084 = vmax.f32 %v1764, %v1918
      %v2085 = vmax.f32 %v1765, %v1920
      %v2086 = vmax.f32 %v1766, %v1922
      %v2087 = vmax.f32 %v1767, %v1924
      %v2088 = vmax.f32 %v1768, %v1926
      %v2089 = vmax.f32 %v1769, %v1928
      %v2090 = vmax.f32 %v1770, %v1930
      %v2091 = vmax.f32 %v1771, %v1932
      %v2092 = vmax.f32 %v1772, %v1934
      %v2093 = vmax.f32 %v1773, %v1936
      %v2094 = vmax.f32 %v1774, %v1938
      %v2095 = vmax.f32 %v1775, %v1940
      %v2096 = vmax.f32 %v1776, %v1942
      %v2097 = vmax.f32 %v1777, %v1944
      %v2098 = vmax.f32 %v1778, %v1946
      %v2099 = vmax.f32 %v1779, %v1948
      %v2100 = vmax.f32 %v1780, %v1950
      %v2101 = vmax.f32 %v1781, %v1952
      %v2102 = vmax.f32 %v1782, %v1954
      %v2103 = vmax.f32 %v1783, %v1956
      %v2104 = vmax.f32 %v1784, %v1958
      %v2105 = vmax.f32 %v1785, %v1960
      %v2106 = vmax.f32 %v1786, %v1962
      %v2107 = vmax.f32 %v1787, %v1964
      %v2108 = vmax.f32 %v1788, %v1966
      %v2109 = vmax.f32 %v1789, %v1968
      %v2110 = vmax.f32 %v1790, %v1970
      %v2111 = vmax.f32 %v1791, %v1972
      %v2112 = vmax.f32 %v1792, %v1974
      %v2113 = vmax.f32 %v1793, %v1976
      %v2114 = vmax.f32 %v1794, %v1978
      %v2115 = vmax.f32 %v1795, %v1980
      %v2116 = vmax.f32 %v1796, %v1982
      %v2117 = vmax.f32 %v1797, %v1984
      %v2118 = vmax.f32 %v1798, %v1986
      %v2119 = vmax.f32 %v1799, %v1988
      %v2120 = vmax.f32 %v1800, %v1990
      %v2121 = vmax.f32 %v1801, %v1992
      %v2122 = vmax.f32 %v1802, %v1994
      %v2123 = vmax.f32 %v2059, %v2061
      %v2124 = vmax.f32 %v2060, %v2062
      %v2125 = vmax.f32 %v2063, %v2065
      %v2126 = vmax.f32 %v2064, %v2066
      %v2127 = vmax.f32 %v2067, %v2069
      %v2128 = vmax.f32 %v2068, %v2070
      %v2129 = vmax.f32 %v2071, %v2073
      %v2130 = vmax.f32 %v2072, %v2074
      %v2131 = vmax.f32 %v2075, %v2077
      %v2132 = vmax.f32 %v2076, %v2078
      %v2133 = vmax.f32 %v2079, %v2081
      %v2134 = vmax.f32 %v2080, %v2082
      %v2135 = vmax.f32 %v2083, %v2085
      %v2136 = vmax.f32 %v2084, %v2086
      %v2137 = vmax.f32 %v2087, %v2089
      %v2138 = vmax.f32 %v2088, %v2090
      %v2139 = vmax.f32 %v2091, %v2093
      %v2140 = vmax.f32 %v2092, %v2094
      %v2141 = vmax.f32 %v2095, %v2097
      %v2142 = vmax.f32 %v2096, %v2098
      %v2143 = vmax.f32 %v2099, %v2101
      %v2144 = vmax.f32 %v2100, %v2102
      %v2145 = vmax.f32 %v2103, %v2105
      %v2146 = vmax.f32 %v2104, %v2106
      %v2147 = vmax.f32 %v2107, %v2109
      %v2148 = vmax.f32 %v2108, %v2110
      %v2149 = vmax.f32 %v2111, %v2113
      %v2150 = vmax.f32 %v2112, %v2114
      %v2151 = vmax.f32 %v2115, %v2117
      %v2152 = vmax.f32 %v2116, %v2118
      %v2153 = vmax.f32 %v2119, %v2121
      %v2154 = vmax.f32 %v2120, %v2122
      %vm2155 = vcmask 261120
      %2156 = vst.msk [vmem:[%s170] sm:$0xff] %vm2155, %v2123
      %2157 = vst.msk [vmem:[%s170 + $0x8] sm:$0xff] %vm2155, %v2124
      %2158 = vst.msk [vmem:[%s170 + $0x10] sm:$0xff] %vm2155, %v2125
      %2159 = vst.msk [vmem:[%s170 + $0x18] sm:$0xff] %vm2155, %v2126
      %2160 = vst.msk [vmem:[%s170 + $0x20] sm:$0xff] %vm2155, %v2127
      %2161 = vst.msk [vmem:[%s170 + $0x28] sm:$0xff] %vm2155, %v2128
      %2162 = vst.msk [vmem:[%s170 + $0x30] sm:$0xff] %vm2155, %v2129
      %2163 = vst.msk [vmem:[%s170 + $0x38] sm:$0xff] %vm2155, %v2130
      %2164 = vst.msk [vmem:[%s170 + $0x40] sm:$0xff] %vm2155, %v2131
      %2165 = vst.msk [vmem:[%s170 + $0x48] sm:$0xff] %vm2155, %v2132
      %2166 = vst.msk [vmem:[%s170 + $0x50] sm:$0xff] %vm2155, %v2133
      %2167 = vst.msk [vmem:[%s170 + $0x58] sm:$0xff] %vm2155, %v2134
      %2168 = vst.msk [vmem:[%s170 + $0x60] sm:$0xff] %vm2155, %v2135
      %2169 = vst.msk [vmem:[%s170 + $0x68] sm:$0xff] %vm2155, %v2136
      %2170 = vst.msk [vmem:[%s170 + $0x70] sm:$0xff] %vm2155, %v2137
      %2171 = vst.msk [vmem:[%s170 + $0x78] sm:$0xff] %vm2155, %v2138
      %2172 = vst.msk [vmem:[%s170 + $0x80] sm:$0xff] %vm2155, %v2139
      %2173 = vst.msk [vmem:[%s170 + $0x88] sm:$0xff] %vm2155, %v2140
      %2174 = vst.msk [vmem:[%s170 + $0x90] sm:$0xff] %vm2155, %v2141
      %2175 = vst.msk [vmem:[%s170 + $0x98] sm:$0xff] %vm2155, %v2142
      %2176 = vst.msk [vmem:[%s170 + $0xa0] sm:$0xff] %vm2155, %v2143
      %2177 = vst.msk [vmem:[%s170 + $0xa8] sm:$0xff] %vm2155, %v2144
      %2178 = vst.msk [vmem:[%s170 + $0xb0] sm:$0xff] %vm2155, %v2145
      %2179 = vst.msk [vmem:[%s170 + $0xb8] sm:$0xff] %vm2155, %v2146
      %2180 = vst.msk [vmem:[%s170 + $0xc0] sm:$0xff] %vm2155, %v2147
      %2181 = vst.msk [vmem:[%s170 + $0xc8] sm:$0xff] %vm2155, %v2148
      %2182 = vst.msk [vmem:[%s170 + $0xd0] sm:$0xff] %vm2155, %v2149
      %2183 = vst.msk [vmem:[%s170 + $0xd8] sm:$0xff] %vm2155, %v2150
      %2184 = vst.msk [vmem:[%s170 + $0xe0] sm:$0xff] %vm2155, %v2151
      %2185 = vst.msk [vmem:[%s170 + $0xe8] sm:$0xff] %vm2155, %v2152
      %2186 = vst.msk [vmem:[%s170 + $0xf0] sm:$0xff] %vm2155, %v2153
      %2187 = vst.msk [vmem:[%s170 + $0xf8] sm:$0xff] %vm2155, %v2154
      %p2188 = scmp.lt.s32.totalorder %s14, 1
      %s2189 = scalar_select %p2188, %s14, 1
      %s2190 = smul.addr %s2189, 32
      %s2191 = smul.addr %s2190, 8
      %s2192 = scalar_lea.vmem %s3, %s2191
      // Predicated region
      $region33: #{medical_cnn_forward.3} parent=31 // pred_check
        %p2193 = pneg %p100
      $region34: #{medical_cnn_forward.3} parent=31 // pred_check_branch
        %2195 = sbr.rel (%p2193) target = $region36
      $region35: #{medical_cnn_forward.3} parent=31 // pred_region
        _
      $region36: #{medical_cnn_forward.3} parent=31 // pred_fallthru
        _
    $region32: #{medical_cnn_forward.3} parent=5 // pred_fallthru
      _
    %p2196 = scmp.le.s32.totalorder 2, %s9
    // Predicated region
    $region37: #{medical_cnn_forward.3} parent=5 // pred_check
      %p2197 = pneg %p2196
    $region38: #{medical_cnn_forward.3} parent=5 // pred_check_branch
      %2199 = sbr.rel (%p2197) target = $region40
    $region39: #{medical_cnn_forward.3} parent=5 // pred_region
      %s2200 = ssub.s32 %s9, 2
      // Predicated region
      $region41: #{medical_cnn_forward.3} parent=39 // pred_check
        %p2201 = pneg %p106
      $region42: #{medical_cnn_forward.3} parent=39 // pred_check_branch
        %2203 = sbr.rel (%p2201) target = $region44
      $region43: #{medical_cnn_forward.3} parent=39 // pred_region
        %p2204 = scmp.lt.s32.totalorder %s15, 1
        %s2205 = scalar_select %p2204, %s15, 1
        %s2206 = smul.addr %s2205, 32
        %s2207 = smul.addr %s2206, 8
        %s2208 = scalar_lea.vmem %s3, %s2207
      $region44: #{medical_cnn_forward.3} parent=39 // pred_fallthru
        _
    $region40: #{medical_cnn_forward.3} parent=5 // pred_fallthru
      _
  $region6: #{medical_cnn_forward.3} parent=0 // loop_footer
    %s13 = sadd.s32 1, %s9
  $region7: #{medical_cnn_forward.3} parent=0 // loop_footer_branch
    %8 = sbr.rel target = $region3
  $region8: #{medical_cnn_forward.3} parent=0 // loop_exit
    _

// kernel: medical_cnn_forward.4
$region0: #{medical_cnn_forward.4}
  #allocation0 [shape = 'u32[]', space=smem, size = 0x4, offset = 0x4, fixed_abs, tag = 'smem constant byte address 0x4 - core index']
  #allocation1 [shape = 'u32[144,128]{1,0:T(1,128)}', space=vmem, size = 0x12000, scoped, tag = 'internal scratch']
  %s0 = inlined_call_operand.vmem [shape: f32[2,18,8,128], index: 0, kind: input, shape index: {}]
  %s1 = inlined_call_operand.vmem [shape: f32[3,128,128], index: 1, kind: input, shape index: {}]
  %s2 = inlined_call_operand.vmem [shape: f32[1,128], index: 2, kind: input, shape index: {}]
  %s3 = inlined_call_operand.vmem [shape: f32[2,8,8,64], index: 3, kind: output, shape index: {}]
  %s4 = sld [smem:[#allocation0]]
  $region45: #{medical_cnn_forward.4} parent=0
    _
  %s6 = ssub.s32 1, %s4
  %s7 = scalar_select 0, %s6, %s4
  loop: start=0, step=1, limit=4
  $region2: #{medical_cnn_forward.4} parent=0 // loop_pre_header
    _
  $region3: #{medical_cnn_forward.4} parent=0 // loop_header
    %s9 = sphi 0, %s13
    %p10 = scmp.ge.s32.totalorder %s9, 4
    %s19 = sphi 0, %s21
    %s22 = sphi 0, %s19
    %s23 = sphi 0, %s22
    %s39 = sphi 0, %s23
    %s43 = sphi 0, %s43
    %s45 = sphi 0, %s43
    %s46 = sphi 0, %s45
    %s60 = sphi 0, %s46
    %s64 = sphi 0, %s64
    %s66 = sphi 0, %s64
    %s67 = sphi 0, %s66
    %s81 = sphi 0, %s67
    %s87 = sphi 0, %s89
    %s90 = sphi 0, %s87
    %s91 = sphi 0, %s90
    %s107 = sphi 0, %s91
  $region4: #{medical_cnn_forward.4} parent=0 // loop_header_branch
    %12 = sbr.rel (%p10) target = $region8
  $region5: #{medical_cnn_forward.4} parent=0 // loop_body
    %s14 = ssub.s32 %s9, 1
    %s15 = ssub.s32 %s9, 2
    %s16 = sadd.s32 %s9, 1
    %s17 = ssub.s32 %s9, %s16
    %p18 = scmp.eq.s32.totalorder %s17, 0
    %s20 = sadd.s32 %s19, 1
    %s21 = scalar_select %p18, %s19, %s20
    %p24 = pneg %p18
    %p25 = scmp.eq.s32.totalorder %s9, 1
    %p26 = por %p24, %p25
    %p27 = scmp.ne.s32.totalorder %s19, %s22
    %p28 = scmp.eq.s32.totalorder %s9, 0
    %p29 = por %p27, %p28
    %p30 = scmp.ne.s32.totalorder %s19, %s22
    %p31 = scmp.eq.s32.totalorder %s14, 1
    %p32 = por %p30, %p31
    %p33 = scmp.ne.s32.totalorder %s22, %s23
    %p34 = scmp.eq.s32.totalorder %s14, 0
    %p35 = por %p33, %p34
    %p36 = scmp.ne.s32.totalorder %s22, %s23
    %p37 = scmp.eq.s32.totalorder %s15, 1
    %p38 = por %p36, %p37
    %p40 = scmp.ne.s32.totalorder %s23, %s39
    %p41 = scmp.eq.s32.totalorder %s15, 0
    %p42 = por %p40, %p41
    %s44 = sadd.s32 %s43, 1
    %p47 = scmp.eq.s32.totalorder %s9, 1
    %p48 = scmp.ne.s32.totalorder %s43, %s45
    %p49 = scmp.eq.s32.totalorder %s9, 0
    %p50 = por %p48, %p49
    %p51 = scmp.ne.s32.totalorder %s43, %s45
    %p52 = scmp.eq.s32.totalorder %s14, 1
    %p53 = por %p51, %p52
    %p54 = scmp.ne.s32.totalorder %s45, %s46
    %p55 = scmp.eq.s32.totalorder %s14, 0
    %p56 = por %p54, %p55
    %p57 = scmp.ne.s32.totalorder %s45, %s46
    %p58 = scmp.eq.s32.totalorder %s15, 1
    %p59 = por %p57, %p58
    %p61 = scmp.ne.s32.totalorder %s46, %s60
    %p62 = scmp.eq.s32.totalorder %s15, 0
    %p63 = por %p61, %p62
    %s65 = sadd.s32 %s64, 1
    %p68 = scmp.eq.s32.totalorder %s9, 1
    %p69 = scmp.ne.s32.totalorder %s64, %s66
    %p70 = scmp.eq.s32.totalorder %s9, 0
    %p71 = por %p69, %p70
    %p72 = scmp.ne.s32.totalorder %s64, %s66
    %p73 = scmp.eq.s32.totalorder %s14, 1
    %p74 = por %p72, %p73
    %p75 = scmp.ne.s32.totalorder %s66, %s67
    %p76 = scmp.eq.s32.totalorder %s14, 0
    %p77 = por %p75, %p76
    %p78 = scmp.ne.s32.totalorder %s66, %s67
    %p79 = scmp.eq.s32.totalorder %s15, 1
    %p80 = por %p78, %p79
    %p82 = scmp.ne.s32.totalorder %s67, %s81
    %p83 = scmp.eq.s32.totalorder %s15, 0
    %p84 = por %p82, %p83
    %s85 = ssub.s32 %s9, %s16
    %p86 = scmp.eq.s32.totalorder %s85, 0
    %s88 = sadd.s32 %s87, 1
    %s89 = scalar_select %p86, %s87, %s88
    %p92 = pneg %p86
    %p93 = scmp.eq.s32.totalorder %s9, 1
    %p94 = por %p92, %p93
    %p95 = scmp.ne.s32.totalorder %s87, %s90
    %p96 = scmp.eq.s32.totalorder %s9, 0
    %p97 = por %p95, %p96
    %p98 = scmp.ne.s32.totalorder %s87, %s90
    %p99 = scmp.eq.s32.totalorder %s14, 1
    %p100 = por %p98, %p99
    %p101 = scmp.ne.s32.totalorder %s90, %s91
    %p102 = scmp.eq.s32.totalorder %s14, 0
    %p103 = por %p101, %p102
    %p104 = scmp.ne.s32.totalorder %s90, %s91
    %p105 = scmp.eq.s32.totalorder %s15, 1
    %p106 = por %p104, %p105
    %p108 = scmp.ne.s32.totalorder %s91, %s107
    %p109 = scmp.eq.s32.totalorder %s15, 0
    %p110 = por %p108, %p109
    %p111 = scmp.le.s32.totalorder 1, %s9
    %p112 = scmp.lt.s32.totalorder %s9, 3
    %p113 = pnand %p111, %p112
    %p114 = pneg %p113
    // Predicated region
    $region9: #{medical_cnn_forward.4} parent=5 // pred_check
      _
    $region10: #{medical_cnn_forward.4} parent=5 // pred_check_branch
      %116 = sbr.rel (%p113) target = $region12
    $region11: #{medical_cnn_forward.4} parent=5 // pred_region
      %s117 = ssub.s32 %s9, 1
      // Predicated region
      $region13: #{medical_cnn_forward.4} parent=11 // pred_check
        %p118 = pneg %p56
      $region14: #{medical_cnn_forward.4} parent=11 // pred_check_branch
        %120 = sbr.rel (%p118) target = $region16
      $region15: #{medical_cnn_forward.4} parent=11 // pred_region
        _
      $region16: #{medical_cnn_forward.4} parent=11 // pred_fallthru
        _
      // Predicated region
      $region17: #{medical_cnn_forward.4} parent=11 // pred_check
        %p121 = pneg %p77
      $region18: #{medical_cnn_forward.4} parent=11 // pred_check_branch
        %123 = sbr.rel (%p121) target = $region20
      $region19: #{medical_cnn_forward.4} parent=11 // pred_region
        _
      $region20: #{medical_cnn_forward.4} parent=11 // pred_fallthru
        _
    $region12: #{medical_cnn_forward.4} parent=5 // pred_fallthru
      _
    %p124 = scmp.lt.s32.totalorder %s9, 2
    // Predicated region
    $region21: #{medical_cnn_forward.4} parent=5 // pred_check
      %p125 = pneg %p124
    $region22: #{medical_cnn_forward.4} parent=5 // pred_check_branch
      %127 = sbr.rel (%p125) target = $region24
    $region23: #{medical_cnn_forward.4} parent=5 // pred_region
      // Predicated region
      $region25: #{medical_cnn_forward.4} parent=23 // pred_check
        %p128 = pneg %p29
      $region26: #{medical_cnn_forward.4} parent=23 // pred_check_branch
        %130 = sbr.rel (%p128) target = $region28
      $region27: #{medical_cnn_forward.4} parent=23 // pred_region
        %p131 = scmp.lt.s32.totalorder %s9, 1
        %s132 = scalar_select %p131, %s9, 1
        %s133 = smul.addr %s132, 18
        %s134 = smul.addr %s133, 8
        %s135 = scalar_lea.vmem %s0, %s134
      $region28: #{medical_cnn_forward.4} parent=23 // pred_fallthru
        _
    $region24: #{medical_cnn_forward.4} parent=5 // pred_fallthru
      _
    %p136 = scmp.le.s32.totalorder 1, %s9
    %p137 = scmp.lt.s32.totalorder %s9, 3
    %p138 = pnand %p136, %p137
    %p139 = pneg %p138
    // Predicated region
    $region29: #{medical_cnn_forward.4} parent=5 // pred_check
      _
    $region30: #{medical_cnn_forward.4} parent=5 // pred_check_branch
      %141 = sbr.rel (%p138) target = $region32
    $region31: #{medical_cnn_forward.4} parent=5 // pred_region
      %s142 = ssub.s32 %s9, 1
      %p143 = scmp.lt.s32.totalorder %s14, 1
      %s144 = scalar_select %p143, %s14, 1
      %s145 = smul.addr %s144, 18
      %s146 = smul.addr %s145, 8
      %s147 = scalar_lea.vmem %s0, %s146
      %p148 = pneg %p35
      %p149 = pneg %p32
      %p150 = pneg %p56
      %p151 = pneg %p53
      %p152 = pneg %p77
      %p153 = pneg %p74
      %p154 = pneg %p103
      %p155 = pneg %p100
      %p156 = scmp.lt.s32.totalorder %s14, 1
      %s157 = scalar_select %p156, %s14, 1
      %s158 = smul.addr %s157, 8
      %s159 = smul.addr %s158, 8
      %s160 = scalar_lea.vmem %s3, %s159
      %p161 = scmp.lt.s32.totalorder %s14, 1
      %s162 = scalar_select %p161, %s14, 1
      %s163 = smul.addr %s162, 18
      %s164 = smul.addr %s163, 8
      %s165 = scalar_lea.vmem %s0, %s164
      %p166 = scmp.lt.s32.totalorder %s14, 1
      %s167 = scalar_select %p166, %s14, 1
      %s168 = smul.addr %s167, 8
      %s169 = smul.addr %s168, 8
      %s170 = scalar_lea.vmem %s3, %s169
      %v171 = vld [vmem:[%s165] sm:$0xff]
      %v172 = vld [vmem:[%s165 + $0x8] sm:$0xff]
      %v173 = vld [vmem:[%s165 + $0x10] sm:$0xff]
      %v174 = vld [vmem:[%s165 + $0x18] sm:$0xff]
      %v175 = vld [vmem:[%s165 + $0x20] sm:$0xff]
      %v176 = vld [vmem:[%s165 + $0x28] sm:$0xff]
      %v177 = vld [vmem:[%s165 + $0x30] sm:$0xff]
      %v178 = vld [vmem:[%s165 + $0x38] sm:$0xff]
      %v179 = vld [vmem:[%s165 + $0x40] sm:$0xff]
      %v180 = vld [vmem:[%s165 + $0x48] sm:$0xff]
      %v181 = vld [vmem:[%s165 + $0x50] sm:$0xff]
      %v182 = vld [vmem:[%s165 + $0x58] sm:$0xff]
      %v183 = vld [vmem:[%s165 + $0x60] sm:$0xff]
      %v184 = vld [vmem:[%s165 + $0x68] sm:$0xff]
      %v185 = vld [vmem:[%s165 + $0x70] sm:$0xff]
      %v186 = vld [vmem:[%s165 + $0x78] sm:$0xff]
      %v187 = vld [vmem:[%s165 + $0x80] sm:$0xff]
      %v188 = vld [vmem:[%s165 + $0x88] sm:$0xff]
      %v189 = vld [vmem:[%s1] sm:$0xff]
      %v190 = vld [vmem:[%s1 + $0x8] sm:$0xff]
      %v191 = vld [vmem:[%s1 + $0x10] sm:$0xff]
      %v192 = vld [vmem:[%s1 + $0x18] sm:$0xff]
      %v193 = vld [vmem:[%s1 + $0x20] sm:$0xff]
      %v194 = vld [vmem:[%s1 + $0x28] sm:$0xff]
      %v195 = vld [vmem:[%s1 + $0x30] sm:$0xff]
      %v196 = vld [vmem:[%s1 + $0x38] sm:$0xff]
      %v197 = vld [vmem:[%s1 + $0x40] sm:$0xff]
      %v198 = vld [vmem:[%s1 + $0x48] sm:$0xff]
      %v199 = vld [vmem:[%s1 + $0x50] sm:$0xff]
      %v200 = vld [vmem:[%s1 + $0x58] sm:$0xff]
      %v201 = vld [vmem:[%s1 + $0x60] sm:$0xff]
      %v202 = vld [vmem:[%s1 + $0x68] sm:$0xff]
      %v203 = vld [vmem:[%s1 + $0x70] sm:$0xff]
      %v204 = vld [vmem:[%s1 + $0x78] sm:$0xff]
      %s205 = scalar_lea.vmem %s1, 128
      %v206 = vld [vmem:[%s205] sm:$0xff]
      %v207 = vld [vmem:[%s205 + $0x8] sm:$0xff]
      %v208 = vld [vmem:[%s205 + $0x10] sm:$0xff]
      %v209 = vld [vmem:[%s205 + $0x18] sm:$0xff]
      %v210 = vld [vmem:[%s205 + $0x20] sm:$0xff]
      %v211 = vld [vmem:[%s205 + $0x28] sm:$0xff]
      %v212 = vld [vmem:[%s205 + $0x30] sm:$0xff]
      %v213 = vld [vmem:[%s205 + $0x38] sm:$0xff]
      %v214 = vld [vmem:[%s205 + $0x40] sm:$0xff]
      %v215 = vld [vmem:[%s205 + $0x48] sm:$0xff]
      %v216 = vld [vmem:[%s205 + $0x50] sm:$0xff]
      %v217 = vld [vmem:[%s205 + $0x58] sm:$0xff]
      %v218 = vld [vmem:[%s205 + $0x60] sm:$0xff]
      %v219 = vld [vmem:[%s205 + $0x68] sm:$0xff]
      %v220 = vld [vmem:[%s205 + $0x70] sm:$0xff]
      %v221 = vld [vmem:[%s205 + $0x78] sm:$0xff]
      %222 = vmatprep.subr.mxu0 0.0
      %223 = vmatpush1.msra.mxu0 %v206
      %224 = vmatprep.subr.mxu0 0.0
      %225 = vmatpush1.msra.mxu0 %v207
      %226 = vmatprep.subr.mxu0 0.0
      %227 = vmatpush1.msra.mxu0 %v208
      %228 = vmatprep.subr.mxu0 0.0
      %229 = vmatpush1.msra.mxu0 %v209
      %230 = vmatprep.subr.mxu0 0.0
      %231 = vmatpush1.msra.mxu0 %v210
      %232 = vmatprep.subr.mxu0 0.0
      %233 = vmatpush1.msra.mxu0 %v211
      %234 = vmatprep.subr.mxu0 0.0
      %235 = vmatpush1.msra.mxu0 %v212
      %236 = vmatprep.subr.mxu0 0.0
      %237 = vmatpush1.msra.mxu0 %v213
      %238 = vmatprep.subr.mxu0 0.0
      %239 = vmatpush1.msra.mxu0 %v214
      %240 = vmatprep.subr.mxu0 0.0
      %241 = vmatpush1.msra.mxu0 %v215
      %242 = vmatprep.subr.mxu0 0.0
      %243 = vmatpush1.msra.mxu0 %v216
      %244 = vmatprep.subr.mxu0 0.0
      %245 = vmatpush1.msra.mxu0 %v217
      %246 = vmatprep.subr.mxu0 0.0
      %247 = vmatpush1.msra.mxu0 %v218
      %248 = vmatprep.subr.mxu0 0.0
      %249 = vmatpush1.msra.mxu0 %v219
      %250 = vmatprep.subr.mxu0 0.0
      %251 = vmatpush1.msra.mxu0 %v220
      %252 = vmatprep.subr.mxu0 0.0
      %253 = vmatpush1.msra.mxu0 %v221
      %254 = vmatprep.subr.mxu0 0.0
      %255 = vmatpush1.msra.mxu0 0.0
      %256 = vmatprep.subr.mxu0 0.0
      %257 = vmatpush1.msra.mxu0 0.0
      %258 = vmatprep.subr.mxu0 0.0
      %259 = vmatpush1.msra.mxu0 0.0
      %260 = vmatprep.subr.mxu0 0.0
      %261 = vmatpush1.msra.mxu0 0.0
      %262 = vmatprep.subr.mxu0 0.0
      %263 = vmatpush1.msra.mxu0 0.0
      %264 = vmatprep.subr.mxu0 0.0
      %265 = vmatpush1.msra.mxu0 0.0
      %266 = vmatprep.subr.mxu0 0.0
      %267 = vmatpush1.msra.mxu0 0.0
      %268 = vmatprep.subr.mxu0 0.0
      %269 = vmatpush1.msra.mxu0 0.0
      %270 = vmatprep.subr.mxu0 0.0
      %271 = vmatpush1.msra.mxu0 0.0
      %272 = vmatprep.subr.mxu0 0.0
      %273 = vmatpush1.msra.mxu0 0.0
      %274 = vmatprep.subr.mxu0 0.0
      %275 = vmatpush1.msra.mxu0 0.0
      %276 = vmatprep.subr.mxu0 0.0
      %277 = vmatpush1.msra.mxu0 0.0
      %278 = vmatprep.subr.mxu0 0.0
      %279 = vmatpush1.msra.mxu0 0.0
      %280 = vmatprep.subr.mxu0 0.0
      %281 = vmatpush1.msra.mxu0 0.0
      %282 = vmatprep.subr.mxu0 0.0
      %283 = vmatpush1.msra.mxu0 0.0
      %284 = vmatprep.subr.mxu0 0.0
      %285 = vmatpush1.msra.mxu0 0.0
      %286 = vmatprep.mubr.f32.mxu0 0.0
      %287 = vmatmul.mubr.f32.gmra.mrb[0].mxu0 %v172
      %v288 = vpop.f32.mrb[0].mxu0
      %v289 = vadd.f32 0.0, %v288
      %v290 = vpop.f32.mrb[0].mxu0
      %291 = vmatprep.mubr.f32.mxu0 0.0
      %292 = vmatmul.mubr.f32.gmra.mrb[0].mxu0 %v173
      %v293 = vpop.f32.mrb[0].mxu0
      %v294 = vadd.f32 0.0, %v293
      %v295 = vpop.f32.mrb[0].mxu0
      %296 = vmatprep.mubr.f32.mxu0 0.0
      %297 = vmatmul.mubr.f32.gmra.mrb[0].mxu0 %v174
      %v298 = vpop.f32.mrb[0].mxu0
      %v299 = vadd.f32 0.0, %v298
      %v300 = vpop.f32.mrb[0].mxu0
      %301 = vmatprep.mubr.f32.mxu0 0.0
      %302 = vmatmul.mubr.f32.gmra.mrb[0].mxu0 %v175
      %v303 = vpop.f32.mrb[0].mxu0
      %v304 = vadd.f32 0.0, %v303
      %v305 = vpop.f32.mrb[0].mxu0
      %306 = vmatprep.mubr.f32.mxu0 0.0
      %307 = vmatmul.mubr.f32.gmra.mrb[0].mxu0 %v176
      %v308 = vpop.f32.mrb[0].mxu0
      %v309 = vadd.f32 0.0, %v308
      %v310 = vpop.f32.mrb[0].mxu0
      %311 = vmatprep.mubr.f32.mxu0 0.0
      %312 = vmatmul.mubr.f32.gmra.mrb[0].mxu0 %v177
      %v313 = vpop.f32.mrb[0].mxu0
      %v314 = vadd.f32 0.0, %v313
      %v315 = vpop.f32.mrb[0].mxu0
      %316 = vmatprep.mubr.f32.mxu0 0.0
      %317 = vmatmul.mubr.f32.gmra.mrb[0].mxu0 %v178
      %v318 = vpop.f32.mrb[0].mxu0
      %v319 = vadd.f32 0.0, %v318
      %v320 = vpop.f32.mrb[0].mxu0
      %321 = vmatprep.mubr.f32.mxu0 0.0
      %322 = vmatmul.mubr.f32.gmra.mrb[0].mxu0 %v179
      %v323 = vpop.f32.mrb[0].mxu0
      %v324 = vadd.f32 0.0, %v323
      %v325 = vpop.f32.mrb[0].mxu0
      %326 = vmatprep.mubr.f32.mxu0 0.0
      %327 = vmatmul.mubr.f32.gmra.mrb[0].mxu0 %v180
      %v328 = vpop.f32.mrb[0].mxu0
      %v329 = vadd.f32 0.0, %v328
      %v330 = vpop.f32.mrb[0].mxu0
      %331 = vmatprep.mubr.f32.mxu0 0.0
      %332 = vmatmul.mubr.f32.gmra.mrb[0].mxu0 %v181
      %v333 = vpop.f32.mrb[0].mxu0
      %v334 = vadd.f32 0.0, %v333
      %v335 = vpop.f32.mrb[0].mxu0
      %336 = vmatprep.mubr.f32.mxu0 0.0
      %337 = vmatmul.mubr.f32.gmra.mrb[0].mxu0 %v182
      %v338 = vpop.f32.mrb[0].mxu0
      %v339 = vadd.f32 0.0, %v338
      %v340 = vpop.f32.mrb[0].mxu0
      %341 = vmatprep.mubr.f32.mxu0 0.0
      %342 = vmatmul.mubr.f32.gmra.mrb[0].mxu0 %v183
      %v343 = vpop.f32.mrb[0].mxu0
      %v344 = vadd.f32 0.0, %v343
      %v345 = vpop.f32.mrb[0].mxu0
      %346 = vmatprep.mubr.f32.mxu0 0.0
      %347 = vmatmul.mubr.f32.gmra.mrb[0].mxu0 %v184
      %v348 = vpop.f32.mrb[0].mxu0
      %v349 = vadd.f32 0.0, %v348
      %v350 = vpop.f32.mrb[0].mxu0
      %351 = vmatprep.mubr.f32.mxu0 0.0
      %352 = vmatmul.mubr.f32.gmra.mrb[0].mxu0 %v185
      %v353 = vpop.f32.mrb[0].mxu0
      %v354 = vadd.f32 0.0, %v353
      %v355 = vpop.f32.mrb[0].mxu0
      %356 = vmatprep.mubr.f32.mxu0 0.0
      %357 = vmatmul.mubr.f32.gmra.mrb[0].mxu0 %v186
      %v358 = vpop.f32.mrb[0].mxu0
      %v359 = vadd.f32 0.0, %v358
      %v360 = vpop.f32.mrb[0].mxu0
      %361 = vmatprep.mubr.f32.mxu0 0.0
      %362 = vmatmul.mubr.f32.gmra.mrb[0].mxu0 %v187
      %v363 = vpop.f32.mrb[0].mxu0
      %v364 = vadd.f32 0.0, %v363
      %v365 = vpop.f32.mrb[0].mxu0
      %366 = vdwg.mxu0
      %367 = vmatprep.subr.mxu0 0.0
      %368 = vmatpush1.msra.mxu0 %v189
      %369 = vmatprep.subr.mxu0 0.0
      %370 = vmatpush1.msra.mxu0 %v190
      %371 = vmatprep.subr.mxu0 0.0
      %372 = vmatpush1.msra.mxu0 %v191
      %373 = vmatprep.subr.mxu0 0.0
      %374 = vmatpush1.msra.mxu0 %v192
      %375 = vmatprep.subr.mxu0 0.0
      %376 = vmatpush1.msra.mxu0 %v193
      %377 = vmatprep.subr.mxu0 0.0
      %378 = vmatpush1.msra.mxu0 %v194
      %379 = vmatprep.subr.mxu0 0.0
      %380 = vmatpush1.msra.mxu0 %v195
      %381 = vmatprep.subr.mxu0 0.0
      %382 = vmatpush1.msra.mxu0 %v196
      %383 = vmatprep.subr.mxu0 0.0
      %384 = vmatpush1.msra.mxu0 %v197
      %385 = vmatprep.subr.mxu0 0.0
      %386 = vmatpush1.msra.mxu0 %v198
      %387 = vmatprep.subr.mxu0 0.0
      %388 = vmatpush1.msra.mxu0 %v199
      %389 = vmatprep.subr.mxu0 0.0
      %390 = vmatpush1.msra.mxu0 %v200
      %391 = vmatprep.subr.mxu0 0.0
      %392 = vmatpush1.msra.mxu0 %v201
      %393 = vmatprep.subr.mxu0 0.0
      %394 = vmatpush1.msra.mxu0 %v202
      %395 = vmatprep.subr.mxu0 0.0
      %396 = vmatpush1.msra.mxu0 %v203
      %397 = vmatprep.subr.mxu0 0.0
      %398 = vmatpush1.msra.mxu0 %v204
      %399 = vmatprep.subr.mxu0 0.0
      %400 = vmatpush1.msra.mxu0 0.0
      %401 = vmatprep.subr.mxu0 0.0
      %402 = vmatpush1.msra.mxu0 0.0
      %403 = vmatprep.subr.mxu0 0.0
      %404 = vmatpush1.msra.mxu0 0.0
      %405 = vmatprep.subr.mxu0 0.0
      %406 = vmatpush1.msra.mxu0 0.0
      %407 = vmatprep.subr.mxu0 0.0
      %408 = vmatpush1.msra.mxu0 0.0
      %409 = vmatprep.subr.mxu0 0.0
      %410 = vmatpush1.msra.mxu0 0.0
      %411 = vmatprep.subr.mxu0 0.0
      %412 = vmatpush1.msra.mxu0 0.0
      %413 = vmatprep.subr.mxu0 0.0
      %414 = vmatpush1.msra.mxu0 0.0
      %415 = vmatprep.subr.mxu0 0.0
      %416 = vmatpush1.msra.mxu0 0.0
      %417 = vmatprep.subr.mxu0 0.0
      %418 = vmatpush1.msra.mxu0 0.0
      %419 = vmatprep.subr.mxu0 0.0
      %420 = vmatpush1.msra.mxu0 0.0
      %421 = vmatprep.subr.mxu0 0.0
      %422 = vmatpush1.msra.mxu0 0.0
      %423 = vmatprep.subr.mxu0 0.0
      %424 = vmatpush1.msra.mxu0 0.0
      %425 = vmatprep.subr.mxu0 0.0
      %426 = vmatpush1.msra.mxu0 0.0
      %427 = vmatprep.subr.mxu0 0.0
      %428 = vmatpush1.msra.mxu0 0.0
      %429 = vmatprep.subr.mxu0 0.0
      %430 = vmatpush1.msra.mxu0 0.0
      %431 = vmatprep.mubr.f32.mxu0 0.0
      %432 = vmatmul.mubr.f32.gmra.mrb[0].mxu0 %v171
      %v433 = vpop.f32.mrb[0].mxu0
      %v434 = vadd.f32 %v289, %v433
      %v435 = vpop.f32.mrb[0].mxu0
      %436 = vmatprep.mubr.f32.mxu0 0.0
      %437 = vmatmul.mubr.f32.gmra.mrb[0].mxu0 %v172
      %v438 = vpop.f32.mrb[0].mxu0
      %v439 = vadd.f32 %v294, %v438
      %v440 = vpop.f32.mrb[0].mxu0
      %441 = vmatprep.mubr.f32.mxu0 0.0
      %442 = vmatmul.mubr.f32.gmra.mrb[0].mxu0 %v173
      %v443 = vpop.f32.mrb[0].mxu0
      %v444 = vadd.f32 %v299, %v443
      %v445 = vpop.f32.mrb[0].mxu0
      %446 = vmatprep.mubr.f32.mxu0 0.0
      %447 = vmatmul.mubr.f32.gmra.mrb[0].mxu0 %v174
      %v448 = vpop.f32.mrb[0].mxu0
      %v449 = vadd.f32 %v304, %v448
      %v450 = vpop.f32.mrb[0].mxu0
      %451 = vmatprep.mubr.f32.mxu0 0.0
      %452 = vmatmul.mubr.f32.gmra.mrb[0].mxu0 %v175
      %v453 = vpop.f32.mrb[0].mxu0
      %v454 = vadd.f32 %v309, %v453
      %v455 = vpop.f32.mrb[0].mxu0
      %456 = vmatprep.mubr.f32.mxu0 0.0
      %457 = vmatmul.mubr.f32.gmra.mrb[0].mxu0 %v176
      %v458 = vpop.f32.mrb[0].mxu0
      %v459 = vadd.f32 %v314, %v458
      %v460 = vpop.f32.mrb[0].mxu0
      %461 = vmatprep.mubr.f32.mxu0 0.0
      %462 = vmatmul.mubr.f32.gmra.mrb[0].mxu0 %v177
      %v463 = vpop.f32.mrb[0].mxu0
      %v464 = vadd.f32 %v319, %v463
      %v465 = vpop.f32.mrb[0].mxu0
      %466 = vmatprep.mubr.f32.mxu0 0.0
      %467 = vmatmul.mubr.f32.gmra.mrb[0].mxu0 %v178
      %v468 = vpop.f32.mrb[0].mxu0
      %v469 = vadd.f32 %v324, %v468
      %v470 = vpop.f32.mrb[0].mxu0
      %471 = vmatprep.mubr.f32.mxu0 0.0
      %472 = vmatmul.mubr.f32.gmra.mrb[0].mxu0 %v179
      %v473 = vpop.f32.mrb[0].mxu0
      %v474 = vadd.f32 %v329, %v473
      %v475 = vpop.f32.mrb[0].mxu0
      %476 = vmatprep.mubr.f32.mxu0 0.0
      %477 = vmatmul.mubr.f32.gmra.mrb[0].mxu0 %v180
      %v478 = vpop.f32.mrb[0].mxu0
      %v479 = vadd.f32 %v334, %v478
      %v480 = vpop.f32.mrb[0].mxu0
      %481 = vmatprep.mubr.f32.mxu0 0.0
      %482 = vmatmul.mubr.f32.gmra.mrb[0].mxu0 %v181
      %v483 = vpop.f32.mrb[0].mxu0
      %v484 = vadd.f32 %v339, %v483
      %v485 = vpop.f32.mrb[0].mxu0
      %486 = vmatprep.mubr.f32.mxu0 0.0
      %487 = vmatmul.mubr.f32.gmra.mrb[0].mxu0 %v182
      %v488 = vpop.f32.mrb[0].mxu0
      %v489 = vadd.f32 %v344, %v488
      %v490 = vpop.f32.mrb[0].mxu0
      %491 = vmatprep.mubr.f32.mxu0 0.0
      %492 = vmatmul.mubr.f32.gmra.mrb[0].mxu0 %v183
      %v493 = vpop.f32.mrb[0].mxu0
      %v494 = vadd.f32 %v349, %v493
      %v495 = vpop.f32.mrb[0].mxu0
      %496 = vmatprep.mubr.f32.mxu0 0.0
      %497 = vmatmul.mubr.f32.gmra.mrb[0].mxu0 %v184
      %v498 = vpop.f32.mrb[0].mxu0
      %v499 = vadd.f32 %v354, %v498
      %v500 = vpop.f32.mrb[0].mxu0
      %501 = vmatprep.mubr.f32.mxu0 0.0
      %502 = vmatmul.mubr.f32.gmra.mrb[0].mxu0 %v185
      %v503 = vpop.f32.mrb[0].mxu0
      %v504 = vadd.f32 %v359, %v503
      %v505 = vpop.f32.mrb[0].mxu0
      %506 = vmatprep.mubr.f32.mxu0 0.0
      %507 = vmatmul.mubr.f32.gmra.mrb[0].mxu0 %v186
      %v508 = vpop.f32.mrb[0].mxu0
      %v509 = vadd.f32 %v364, %v508
      %v510 = vpop.f32.mrb[0].mxu0
      %511 = vdwg.mxu0
      %s512 = scalar_lea.vmem %s1, 256
      %v513 = vld [vmem:[%s512] sm:$0xff]
      %v514 = vld [vmem:[%s512 + $0x8] sm:$0xff]
      %v515 = vld [vmem:[%s512 + $0x10] sm:$0xff]
      %v516 = vld [vmem:[%s512 + $0x18] sm:$0xff]
      %v517 = vld [vmem:[%s512 + $0x20] sm:$0xff]
      %v518 = vld [vmem:[%s512 + $0x28] sm:$0xff]
      %v519 = vld [vmem:[%s512 + $0x30] sm:$0xff]
      %v520 = vld [vmem:[%s512 + $0x38] sm:$0xff]
      %v521 = vld [vmem:[%s512 + $0x40] sm:$0xff]
      %v522 = vld [vmem:[%s512 + $0x48] sm:$0xff]
      %v523 = vld [vmem:[%s512 + $0x50] sm:$0xff]
      %v524 = vld [vmem:[%s512 + $0x58] sm:$0xff]
      %v525 = vld [vmem:[%s512 + $0x60] sm:$0xff]
      %v526 = vld [vmem:[%s512 + $0x68] sm:$0xff]
      %v527 = vld [vmem:[%s512 + $0x70] sm:$0xff]
      %v528 = vld [vmem:[%s512 + $0x78] sm:$0xff]
      %529 = vmatprep.subr.mxu0 0.0
      %530 = vmatpush1.msra.mxu0 %v513
      %531 = vmatprep.subr.mxu0 0.0
      %532 = vmatpush1.msra.mxu0 %v514
      %533 = vmatprep.subr.mxu0 0.0
      %534 = vmatpush1.msra.mxu0 %v515
      %535 = vmatprep.subr.mxu0 0.0
      %536 = vmatpush1.msra.mxu0 %v516
      %537 = vmatprep.subr.mxu0 0.0
      %538 = vmatpush1.msra.mxu0 %v517
      %539 = vmatprep.subr.mxu0 0.0
      %540 = vmatpush1.msra.mxu0 %v518
      %541 = vmatprep.subr.mxu0 0.0
      %542 = vmatpush1.msra.mxu0 %v519
      %543 = vmatprep.subr.mxu0 0.0
      %544 = vmatpush1.msra.mxu0 %v520
      %545 = vmatprep.subr.mxu0 0.0
      %546 = vmatpush1.msra.mxu0 %v521
      %547 = vmatprep.subr.mxu0 0.0
      %548 = vmatpush1.msra.mxu0 %v522
      %549 = vmatprep.subr.mxu0 0.0
      %550 = vmatpush1.msra.mxu0 %v523
      %551 = vmatprep.subr.mxu0 0.0
      %552 = vmatpush1.msra.mxu0 %v524
      %553 = vmatprep.subr.mxu0 0.0
      %554 = vmatpush1.msra.mxu0 %v525
      %555 = vmatprep.subr.mxu0 0.0
      %556 = vmatpush1.msra.mxu0 %v526
      %557 = vmatprep.subr.mxu0 0.0
      %558 = vmatpush1.msra.mxu0 %v527
      %559 = vmatprep.subr.mxu0 0.0
      %560 = vmatpush1.msra.mxu0 %v528
      %561 = vmatprep.subr.mxu0 0.0
      %562 = vmatpush1.msra.mxu0 0.0
      %563 = vmatprep.subr.mxu0 0.0
      %564 = vmatpush1.msra.mxu0 0.0
      %565 = vmatprep.subr.mxu0 0.0
      %566 = vmatpush1.msra.mxu0 0.0
      %567 = vmatprep.subr.mxu0 0.0
      %568 = vmatpush1.msra.mxu0 0.0
      %569 = vmatprep.subr.mxu0 0.0
      %570 = vmatpush1.msra.mxu0 0.0
      %571 = vmatprep.subr.mxu0 0.0
      %572 = vmatpush1.msra.mxu0 0.0
      %573 = vmatprep.subr.mxu0 0.0
      %574 = vmatpush1.msra.mxu0 0.0
      %575 = vmatprep.subr.mxu0 0.0
      %576 = vmatpush1.msra.mxu0 0.0
      %577 = vmatprep.subr.mxu0 0.0
      %578 = vmatpush1.msra.mxu0 0.0
      %579 = vmatprep.subr.mxu0 0.0
      %580 = vmatpush1.msra.mxu0 0.0
      %581 = vmatprep.subr.mxu0 0.0
      %582 = vmatpush1.msra.mxu0 0.0
      %583 = vmatprep.subr.mxu0 0.0
      %584 = vmatpush1.msra.mxu0 0.0
      %585 = vmatprep.subr.mxu0 0.0
      %586 = vmatpush1.msra.mxu0 0.0
      %587 = vmatprep.subr.mxu0 0.0
      %588 = vmatpush1.msra.mxu0 0.0
      %589 = vmatprep.subr.mxu0 0.0
      %590 = vmatpush1.msra.mxu0 0.0
      %591 = vmatprep.subr.mxu0 0.0
      %592 = vmatpush1.msra.mxu0 0.0
      %593 = vmatprep.mubr.f32.mxu0 0.0
      %594 = vmatmul.mubr.f32.gmra.mrb[0].mxu0 %v173
      %v595 = vpop.f32.mrb[0].mxu0
      %v596 = vadd.f32 0.0, %v595
      %v597 = vpop.f32.mrb[0].mxu0
      %598 = vmatprep.mubr.f32.mxu0 0.0
      %599 = vmatmul.mubr.f32.gmra.mrb[0].mxu0 %v174
      %v600 = vpop.f32.mrb[0].mxu0
      %v601 = vadd.f32 0.0, %v600
      %v602 = vpop.f32.mrb[0].mxu0
      %603 = vmatprep.mubr.f32.mxu0 0.0
      %604 = vmatmul.mubr.f32.gmra.mrb[0].mxu0 %v175
      %v605 = vpop.f32.mrb[0].mxu0
      %v606 = vadd.f32 0.0, %v605
      %v607 = vpop.f32.mrb[0].mxu0
      %608 = vmatprep.mubr.f32.mxu0 0.0
      %609 = vmatmul.mubr.f32.gmra.mrb[0].mxu0 %v176
      %v610 = vpop.f32.mrb[0].mxu0
      %v611 = vadd.f32 0.0, %v610
      %v612 = vpop.f32.mrb[0].mxu0
      %613 = vmatprep.mubr.f32.mxu0 0.0
      %614 = vmatmul.mubr.f32.gmra.mrb[0].mxu0 %v177
      %v615 = vpop.f32.mrb[0].mxu0
      %v616 = vadd.f32 0.0, %v615
      %v617 = vpop.f32.mrb[0].mxu0
      %618 = vmatprep.mubr.f32.mxu0 0.0
      %619 = vmatmul.mubr.f32.gmra.mrb[0].mxu0 %v178
      %v620 = vpop.f32.mrb[0].mxu0
      %v621 = vadd.f32 0.0, %v620
      %v622 = vpop.f32.mrb[0].mxu0
      %623 = vmatprep.mubr.f32.mxu0 0.0
      %624 = vmatmul.mubr.f32.gmra.mrb[0].mxu0 %v179
      %v625 = vpop.f32.mrb[0].mxu0
      %v626 = vadd.f32 0.0, %v625
      %v627 = vpop.f32.mrb[0].mxu0
      %628 = vmatprep.mubr.f32.mxu0 0.0
      %629 = vmatmul.mubr.f32.gmra.mrb[0].mxu0 %v180
      %v630 = vpop.f32.mrb[0].mxu0
      %v631 = vadd.f32 0.0, %v630
      %v632 = vpop.f32.mrb[0].mxu0
      %633 = vmatprep.mubr.f32.mxu0 0.0
      %634 = vmatmul.mubr.f32.gmra.mrb[0].mxu0 %v181
      %v635 = vpop.f32.mrb[0].mxu0
      %v636 = vadd.f32 0.0, %v635
      %v637 = vpop.f32.mrb[0].mxu0
      %638 = vmatprep.mubr.f32.mxu0 0.0
      %639 = vmatmul.mubr.f32.gmra.mrb[0].mxu0 %v182
      %v640 = vpop.f32.mrb[0].mxu0
      %v641 = vadd.f32 0.0, %v640
      %v642 = vpop.f32.mrb[0].mxu0
      %643 = vmatprep.mubr.f32.mxu0 0.0
      %644 = vmatmul.mubr.f32.gmra.mrb[0].mxu0 %v183
      %v645 = vpop.f32.mrb[0].mxu0
      %v646 = vadd.f32 0.0, %v645
      %v647 = vpop.f32.mrb[0].mxu0
      %648 = vmatprep.mubr.f32.mxu0 0.0
      %649 = vmatmul.mubr.f32.gmra.mrb[0].mxu0 %v184
      %v650 = vpop.f32.mrb[0].mxu0
      %v651 = vadd.f32 0.0, %v650
      %v652 = vpop.f32.mrb[0].mxu0
      %653 = vmatprep.mubr.f32.mxu0 0.0
      %654 = vmatmul.mubr.f32.gmra.mrb[0].mxu0 %v185
      %v655 = vpop.f32.mrb[0].mxu0
      %v656 = vadd.f32 0.0, %v655
      %v657 = vpop.f32.mrb[0].mxu0
      %658 = vmatprep.mubr.f32.mxu0 0.0
      %659 = vmatmul.mubr.f32.gmra.mrb[0].mxu0 %v186
      %v660 = vpop.f32.mrb[0].mxu0
      %v661 = vadd.f32 0.0, %v660
      %v662 = vpop.f32.mrb[0].mxu0
      %663 = vmatprep.mubr.f32.mxu0 0.0
      %664 = vmatmul.mubr.f32.gmra.mrb[0].mxu0 %v187
      %v665 = vpop.f32.mrb[0].mxu0
      %v666 = vadd.f32 0.0, %v665
      %v667 = vpop.f32.mrb[0].mxu0
      %668 = vmatprep.mubr.f32.mxu0 0.0
      %669 = vmatmul.mubr.f32.gmra.mrb[0].mxu0 %v188
      %v670 = vpop.f32.mrb[0].mxu0
      %v671 = vadd.f32 0.0, %v670
      %v672 = vpop.f32.mrb[0].mxu0
      %673 = vdwg.mxu0
      %v674 = vadd.f32 %v434, %v596
      %v675 = vadd.f32 %v439, %v601
      %v676 = vadd.f32 %v444, %v606
      %v677 = vadd.f32 %v449, %v611
      %v678 = vadd.f32 %v454, %v616
      %v679 = vadd.f32 %v459, %v621
      %v680 = vadd.f32 %v464, %v626
      %v681 = vadd.f32 %v469, %v631
      %v682 = vadd.f32 %v474, %v636
      %v683 = vadd.f32 %v479, %v641
      %v684 = vadd.f32 %v484, %v646
      %v685 = vadd.f32 %v489, %v651
      %v686 = vadd.f32 %v494, %v656
      %v687 = vadd.f32 %v499, %v661
      %v688 = vadd.f32 %v504, %v666
      %v689 = vadd.f32 %v509, %v671
      %v690 = vld [vmem:[%s2] sm:$0x1]
      %v692 = vlaneseq
      %v693 = vshrl.u32 %v692, 7
      %v694 = vsub.s32 0, %v693
      %v695 = vrot.slane %v690, %v694
      %v697 = vadd.f32 %v674, %v695
      %v698 = vadd.f32 %v675, %v695
      %v699 = vadd.f32 %v676, %v695
      %v700 = vadd.f32 %v677, %v695
      %v701 = vadd.f32 %v678, %v695
      %v702 = vadd.f32 %v679, %v695
      %v703 = vadd.f32 %v680, %v695
      %v704 = vadd.f32 %v681, %v695
      %v705 = vadd.f32 %v682, %v695
      %v706 = vadd.f32 %v683, %v695
      %v707 = vadd.f32 %v684, %v695
      %v708 = vadd.f32 %v685, %v695
      %v709 = vadd.f32 %v686, %v695
      %v710 = vadd.f32 %v687, %v695
      %v711 = vadd.f32 %v688, %v695
      %v712 = vadd.f32 %v689, %v695
      %v713 = vmax.f32 %v697, 0.0
      %v714 = vmax.f32 %v698, 0.0
      %v715 = vmax.f32 %v699, 0.0
      %v716 = vmax.f32 %v700, 0.0
      %v717 = vmax.f32 %v701, 0.0
      %v718 = vmax.f32 %v702, 0.0
      %v719 = vmax.f32 %v703, 0.0
      %v720 = vmax.f32 %v704, 0.0
      %v721 = vmax.f32 %v705, 0.0
      %v722 = vmax.f32 %v706, 0.0
      %v723 = vmax.f32 %v707, 0.0
      %v724 = vmax.f32 %v708, 0.0
      %v725 = vmax.f32 %v709, 0.0
      %v726 = vmax.f32 %v710, 0.0
      %v727 = vmax.f32 %v711, 0.0
      %v728 = vmax.f32 %v712, 0.0
      %745 = vrot.lane.b32.xlu0 %v713, 64
      %v746 = vpop.permute.xlu0 %745
      %747 = vrot.lane.b32.xlu0 %v714, 64
      %v748 = vpop.permute.xlu0 %747
      %749 = vrot.lane.b32.xlu0 %v715, 64
      %v750 = vpop.permute.xlu0 %749
      %751 = vrot.lane.b32.xlu0 %v716, 64
      %v752 = vpop.permute.xlu0 %751
      %753 = vrot.lane.b32.xlu0 %v717, 64
      %v754 = vpop.permute.xlu0 %753
      %755 = vrot.lane.b32.xlu0 %v718, 64
      %v756 = vpop.permute.xlu0 %755
      %757 = vrot.lane.b32.xlu0 %v719, 64
      %v758 = vpop.permute.xlu0 %757
      %759 = vrot.lane.b32.xlu0 %v720, 64
      %v760 = vpop.permute.xlu0 %759
      %761 = vrot.lane.b32.xlu0 %v721, 64
      %v762 = vpop.permute.xlu0 %761
      %763 = vrot.lane.b32.xlu0 %v722, 64
      %v764 = vpop.permute.xlu0 %763
      %765 = vrot.lane.b32.xlu0 %v723, 64
      %v766 = vpop.permute.xlu0 %765
      %767 = vrot.lane.b32.xlu0 %v724, 64
      %v768 = vpop.permute.xlu0 %767
      %769 = vrot.lane.b32.xlu0 %v725, 64
      %v770 = vpop.permute.xlu0 %769
      %771 = vrot.lane.b32.xlu0 %v726, 64
      %v772 = vpop.permute.xlu0 %771
      %773 = vrot.lane.b32.xlu0 %v727, 64
      %v774 = vpop.permute.xlu0 %773
      %775 = vrot.lane.b32.xlu0 %v728, 64
      %v776 = vpop.permute.xlu0 %775
      %v793 = vmax.f32 %v713, %v746
      %v794 = vmax.f32 %v714, %v748
      %v795 = vmax.f32 %v715, %v750
      %v796 = vmax.f32 %v716, %v752
      %v797 = vmax.f32 %v717, %v754
      %v798 = vmax.f32 %v718, %v756
      %v799 = vmax.f32 %v719, %v758
      %v800 = vmax.f32 %v720, %v760
      %v801 = vmax.f32 %v721, %v762
      %v802 = vmax.f32 %v722, %v764
      %v803 = vmax.f32 %v723, %v766
      %v804 = vmax.f32 %v724, %v768
      %v805 = vmax.f32 %v725, %v770
      %v806 = vmax.f32 %v726, %v772
      %v807 = vmax.f32 %v727, %v774
      %v808 = vmax.f32 %v728, %v776
      %v809 = vmax.f32 %v793, %v794
      %v810 = vmax.f32 %v795, %v796
      %v811 = vmax.f32 %v797, %v798
      %v812 = vmax.f32 %v799, %v800
      %v813 = vmax.f32 %v801, %v802
      %v814 = vmax.f32 %v803, %v804
      %v815 = vmax.f32 %v805, %v806
      %v816 = vmax.f32 %v807, %v808
      %vm817 = vcmask 523264
      %818 = vst.msk [vmem:[%s170] sm:$0xff] %vm817, %v809
      %819 = vst.msk [vmem:[%s170 + $0x8] sm:$0xff] %vm817, %v810
      %820 = vst.msk [vmem:[%s170 + $0x10] sm:$0xff] %vm817, %v811
      %821 = vst.msk [vmem:[%s170 + $0x18] sm:$0xff] %vm817, %v812
      %822 = vst.msk [vmem:[%s170 + $0x20] sm:$0xff] %vm817, %v813
      %823 = vst.msk [vmem:[%s170 + $0x28] sm:$0xff] %vm817, %v814
      %824 = vst.msk [vmem:[%s170 + $0x30] sm:$0xff] %vm817, %v815
      %825 = vst.msk [vmem:[%s170 + $0x38] sm:$0xff] %vm817, %v816
      %p826 = scmp.lt.s32.totalorder %s14, 1
      %s827 = scalar_select %p826, %s14, 1
      %s828 = smul.addr %s827, 8
      %s829 = smul.addr %s828, 8
      %s830 = scalar_lea.vmem %s3, %s829
      // Predicated region
      $region33: #{medical_cnn_forward.4} parent=31 // pred_check
        %p831 = pneg %p100
      $region34: #{medical_cnn_forward.4} parent=31 // pred_check_branch
        %833 = sbr.rel (%p831) target = $region36
      $region35: #{medical_cnn_forward.4} parent=31 // pred_region
        _
      $region36: #{medical_cnn_forward.4} parent=31 // pred_fallthru
        _
    $region32: #{medical_cnn_forward.4} parent=5 // pred_fallthru
      _
    %p834 = scmp.le.s32.totalorder 2, %s9
    // Predicated region
    $region37: #{medical_cnn_forward.4} parent=5 // pred_check
      %p835 = pneg %p834
    $region38: #{medical_cnn_forward.4} parent=5 // pred_check_branch
      %837 = sbr.rel (%p835) target = $region40
    $region39: #{medical_cnn_forward.4} parent=5 // pred_region
      %s838 = ssub.s32 %s9, 2
      // Predicated region
      $region41: #{medical_cnn_forward.4} parent=39 // pred_check
        %p839 = pneg %p106
      $region42: #{medical_cnn_forward.4} parent=39 // pred_check_branch
        %841 = sbr.rel (%p839) target = $region44
      $region43: #{medical_cnn_forward.4} parent=39 // pred_region
        %p842 = scmp.lt.s32.totalorder %s15, 1
        %s843 = scalar_select %p842, %s15, 1
        %s844 = smul.addr %s843, 8
        %s845 = smul.addr %s844, 8
        %s846 = scalar_lea.vmem %s3, %s845
      $region44: #{medical_cnn_forward.4} parent=39 // pred_fallthru
        _
    $region40: #{medical_cnn_forward.4} parent=5 // pred_fallthru
      _
  $region6: #{medical_cnn_forward.4} parent=0 // loop_footer
    %s13 = sadd.s32 1, %s9
  $region7: #{medical_cnn_forward.4} parent=0 // loop_footer_branch
    %8 = sbr.rel target = $region3
  $region8: #{medical_cnn_forward.4} parent=0 // loop_exit
    _

// kernel: medical_cnn_forward.5
$region0: #{medical_cnn_forward.5}
  #allocation0 [shape = 'u32[]', space=smem, size = 0x4, offset = 0x4, fixed_abs, tag = 'smem constant byte address 0x4 - core index']
  #allocation1 [shape = 'u32[144,128]{1,0:T(1,128)}', space=vmem, size = 0x12000, scoped, tag = 'internal scratch']
  #allocation2 [shape = 'f32[2,512]{1,0:T(2,128)}', space=vmem, size = 0x1000, scoped, tag = 'scratch operand']
  %s0 = inlined_call_operand.vmem [shape: bf16[2,4096], index: 0, kind: input, shape index: {}]
  %s1 = inlined_call_operand.vmem [shape: bf16[4096,512], index: 1, kind: input, shape index: {}]
  %s2 = inlined_call_operand.vmem [shape: f32[1,512], index: 2, kind: input, shape index: {}]
  %s3 = inlined_call_operand.vmem [shape: f32[512,2], index: 3, kind: input, shape index: {}]
  %s4 = inlined_call_operand.vmem [shape: f32[1,2], index: 4, kind: input, shape index: {}]
  %s5 = inlined_call_operand.hbm [shape: f32[2,2], index: 5, kind: output, shape index: {}]
  %s6 = sld [smem:[#allocation0]]
  $region61: #{medical_cnn_forward.5} parent=0
    _
  %s8 = ssub.s32 1, %s6
  %s9 = scalar_select 0, %s8, %s6
  $region1: #{medical_cnn_forward.5} parent=0
    #allocation3 [shape = 'u8[1024]{0}', space=vmem, size = 0x400, scoped, tag = 'output window, operand 0, single buffered']
    #allocation4 [shape = 's32[2]{0}', space=sflag, size = 0x8, scoped, tag = 'scoped memory for medical_cnn_forward.5']
    %10 = vsyncpa [#allocation4], 0
    loop: start=0, step=1, limit=6
    $region2: #{medical_cnn_forward.5} parent=1 // loop_pre_header
      _
    $region3: #{medical_cnn_forward.5} parent=1 // loop_header
      %s12 = sphi 0, %s16
      %p13 = scmp.ge.s32.totalorder %s12, 6
      %s22 = sphi 0, %s24
      %s25 = sphi 0, %s22
      %s26 = sphi 0, %s25
      %s42 = sphi 0, %s26
      %s48 = sphi 0, %s50
      %s51 = sphi 0, %s48
      %s52 = sphi 0, %s51
      %s68 = sphi 0, %s52
      %s72 = sphi 0, %s72
      %s74 = sphi 0, %s72
      %s75 = sphi 0, %s74
      %s89 = sphi 0, %s75
      %s93 = sphi 0, %s93
      %s95 = sphi 0, %s93
      %s96 = sphi 0, %s95
      %s110 = sphi 0, %s96
      %s114 = sphi 0, %s114
      %s116 = sphi 0, %s114
      %s117 = sphi 0, %s116
      %s131 = sphi 0, %s117
      %s135 = sphi 0, %s135
      %s137 = sphi 0, %s135
      %s138 = sphi 0, %s137
      %s152 = sphi 0, %s138
    $region4: #{medical_cnn_forward.5} parent=1 // loop_header_branch
      %15 = sbr.rel (%p13) target = $region8
    $region5: #{medical_cnn_forward.5} parent=1 // loop_body
      %s17 = ssub.s32 %s12, 1
      %s18 = ssub.s32 %s12, 2
      %s19 = sadd.s32 %s12, 1
      %s20 = ssub.s32 %s12, %s19
      %p21 = scmp.eq.s32.totalorder %s20, 0
      %s23 = sadd.s32 %s22, 1
      %s24 = scalar_select %p21, %s22, %s23
      %p27 = pneg %p21
      %p28 = scmp.eq.s32.totalorder %s12, 3
      %p29 = por %p27, %p28
      %p30 = scmp.ne.s32.totalorder %s22, %s25
      %p31 = scmp.eq.s32.totalorder %s12, 0
      %p32 = por %p30, %p31
      %p33 = scmp.ne.s32.totalorder %s22, %s25
      %p34 = scmp.eq.s32.totalorder %s17, 3
      %p35 = por %p33, %p34
      %p36 = scmp.ne.s32.totalorder %s25, %s26
      %p37 = scmp.eq.s32.totalorder %s17, 0
      %p38 = por %p36, %p37
      %p39 = scmp.ne.s32.totalorder %s25, %s26
      %p40 = scmp.eq.s32.totalorder %s18, 3
      %p41 = por %p39, %p40
      %p43 = scmp.ne.s32.totalorder %s26, %s42
      %p44 = scmp.eq.s32.totalorder %s18, 0
      %p45 = por %p43, %p44
      %s46 = ssub.s32 %s12, %s19
      %p47 = scmp.eq.s32.totalorder %s46, 0
      %s49 = sadd.s32 %s48, 1
      %s50 = scalar_select %p47, %s48, %s49
      %p53 = pneg %p47
      %p54 = scmp.eq.s32.totalorder %s12, 3
      %p55 = por %p53, %p54
      %p56 = scmp.ne.s32.totalorder %s48, %s51
      %p57 = scmp.eq.s32.totalorder %s12, 0
      %p58 = por %p56, %p57
      %p59 = scmp.ne.s32.totalorder %s48, %s51
      %p60 = scmp.eq.s32.totalorder %s17, 3
      %p61 = por %p59, %p60
      %p62 = scmp.ne.s32.totalorder %s51, %s52
      %p63 = scmp.eq.s32.totalorder %s17, 0
      %p64 = por %p62, %p63
      %p65 = scmp.ne.s32.totalorder %s51, %s52
      %p66 = scmp.eq.s32.totalorder %s18, 3
      %p67 = por %p65, %p66
      %p69 = scmp.ne.s32.totalorder %s52, %s68
      %p70 = scmp.eq.s32.totalorder %s18, 0
      %p71 = por %p69, %p70
      %s73 = sadd.s32 %s72, 1
      %p76 = scmp.eq.s32.totalorder %s12, 3
      %p77 = scmp.ne.s32.totalorder %s72, %s74
      %p78 = scmp.eq.s32.totalorder %s12, 0
      %p79 = por %p77, %p78
      %p80 = scmp.ne.s32.totalorder %s72, %s74
      %p81 = scmp.eq.s32.totalorder %s17, 3
      %p82 = por %p80, %p81
      %p83 = scmp.ne.s32.totalorder %s74, %s75
      %p84 = scmp.eq.s32.totalorder %s17, 0
      %p85 = por %p83, %p84
      %p86 = scmp.ne.s32.totalorder %s74, %s75
      %p87 = scmp.eq.s32.totalorder %s18, 3
      %p88 = por %p86, %p87
      %p90 = scmp.ne.s32.totalorder %s75, %s89
      %p91 = scmp.eq.s32.totalorder %s18, 0
      %p92 = por %p90, %p91
      %s94 = sadd.s32 %s93, 1
      %p97 = scmp.eq.s32.totalorder %s12, 3
      %p98 = scmp.ne.s32.totalorder %s93, %s95
      %p99 = scmp.eq.s32.totalorder %s12, 0
      %p100 = por %p98, %p99
      %p101 = scmp.ne.s32.totalorder %s93, %s95
      %p102 = scmp.eq.s32.totalorder %s17, 3
      %p103 = por %p101, %p102
      %p104 = scmp.ne.s32.totalorder %s95, %s96
      %p105 = scmp.eq.s32.totalorder %s17, 0
      %p106 = por %p104, %p105
      %p107 = scmp.ne.s32.totalorder %s95, %s96
      %p108 = scmp.eq.s32.totalorder %s18, 3
      %p109 = por %p107, %p108
      %p111 = scmp.ne.s32.totalorder %s96, %s110
      %p112 = scmp.eq.s32.totalorder %s18, 0
      %p113 = por %p111, %p112
      %s115 = sadd.s32 %s114, 1
      %p118 = scmp.eq.s32.totalorder %s12, 3
      %p119 = scmp.ne.s32.totalorder %s114, %s116
      %p120 = scmp.eq.s32.totalorder %s12, 0
      %p121 = por %p119, %p120
      %p122 = scmp.ne.s32.totalorder %s114, %s116
      %p123 = scmp.eq.s32.totalorder %s17, 3
      %p124 = por %p122, %p123
      %p125 = scmp.ne.s32.totalorder %s116, %s117
      %p126 = scmp.eq.s32.totalorder %s17, 0
      %p127 = por %p125, %p126
      %p128 = scmp.ne.s32.totalorder %s116, %s117
      %p129 = scmp.eq.s32.totalorder %s18, 3
      %p130 = por %p128, %p129
      %p132 = scmp.ne.s32.totalorder %s117, %s131
      %p133 = scmp.eq.s32.totalorder %s18, 0
      %p134 = por %p132, %p133
      %s136 = sadd.s32 %s135, 1
      %p139 = scmp.eq.s32.totalorder %s12, 3
      %p140 = scmp.ne.s32.totalorder %s135, %s137
      %p141 = scmp.eq.s32.totalorder %s12, 0
      %p142 = por %p140, %p141
      %p143 = scmp.ne.s32.totalorder %s135, %s137
      %p144 = scmp.eq.s32.totalorder %s17, 3
      %p145 = por %p143, %p144
      %p146 = scmp.ne.s32.totalorder %s137, %s138
      %p147 = scmp.eq.s32.totalorder %s17, 0
      %p148 = por %p146, %p147
      %p149 = scmp.ne.s32.totalorder %s137, %s138
      %p150 = scmp.eq.s32.totalorder %s18, 3
      %p151 = por %p149, %p150
      %p153 = scmp.ne.s32.totalorder %s138, %s152
      %p154 = scmp.eq.s32.totalorder %s18, 0
      %p155 = por %p153, %p154
      %p156 = scmp.le.s32.totalorder 1, %s12
      %p157 = scmp.lt.s32.totalorder %s12, 5
      %p158 = pnand %p156, %p157
      %p159 = pneg %p158
      // Predicated region
      $region9: #{medical_cnn_forward.5} parent=5 // pred_check
        _
      $region10: #{medical_cnn_forward.5} parent=5 // pred_check_branch
        %161 = sbr.rel (%p158) target = $region12
      $region11: #{medical_cnn_forward.5} parent=5 // pred_region
        %s162 = ssub.s32 %s12, 1
        // Predicated region
        $region13: #{medical_cnn_forward.5} parent=11 // pred_check
          %p163 = pneg %p85
        $region14: #{medical_cnn_forward.5} parent=11 // pred_check_branch
          %165 = sbr.rel (%p163) target = $region16
        $region15: #{medical_cnn_forward.5} parent=11 // pred_region
          _
        $region16: #{medical_cnn_forward.5} parent=11 // pred_fallthru
          _
        // Predicated region
        $region17: #{medical_cnn_forward.5} parent=11 // pred_check
          %p166 = pneg %p106
        $region18: #{medical_cnn_forward.5} parent=11 // pred_check_branch
          %168 = sbr.rel (%p166) target = $region20
        $region19: #{medical_cnn_forward.5} parent=11 // pred_region
          _
        $region20: #{medical_cnn_forward.5} parent=11 // pred_fallthru
          _
        // Predicated region
        $region21: #{medical_cnn_forward.5} parent=11 // pred_check
          %p169 = pneg %p127
        $region22: #{medical_cnn_forward.5} parent=11 // pred_check_branch
          %171 = sbr.rel (%p169) target = $region24
        $region23: #{medical_cnn_forward.5} parent=11 // pred_region
          _
        $region24: #{medical_cnn_forward.5} parent=11 // pred_fallthru
          _
      $region12: #{medical_cnn_forward.5} parent=5 // pred_fallthru
        _
      %p172 = scmp.lt.s32.totalorder %s12, 4
      // Predicated region
      $region25: #{medical_cnn_forward.5} parent=5 // pred_check
        %p173 = pneg %p172
      $region26: #{medical_cnn_forward.5} parent=5 // pred_check_branch
        %175 = sbr.rel (%p173) target = $region28
      $region27: #{medical_cnn_forward.5} parent=5 // pred_region
        // Predicated region
        $region29: #{medical_cnn_forward.5} parent=27 // pred_check
          %p176 = pneg %p32
        $region30: #{medical_cnn_forward.5} parent=27 // pred_check_branch
          %178 = sbr.rel (%p176) target = $region32
        $region31: #{medical_cnn_forward.5} parent=27 // pred_region
          %s179 = smul.u32 8, %s12
          %p180 = scmp.lt.s32.totalorder %s179, 31
          %s181 = scalar_select %p180, %s179, 31
          %s182 = scalar_lea.vmem %s0, %s181
          %s183 = smul.u32 8, %s12
        $region32: #{medical_cnn_forward.5} parent=27 // pred_fallthru
          _
        // Predicated region
        $region33: #{medical_cnn_forward.5} parent=27 // pred_check
          %p184 = pneg %p58
        $region34: #{medical_cnn_forward.5} parent=27 // pred_check_branch
          %186 = sbr.rel (%p184) target = $region36
        $region35: #{medical_cnn_forward.5} parent=27 // pred_region
          %s187 = smul.u32 128, %s12
          %p188 = scmp.lt.s32.totalorder %s187, 511
          %s189 = scalar_select %p188, %s187, 511
          %s190 = smul.addr %s189, 4
          %s191 = smul.addr %s190, 4
          %s192 = scalar_lea.vmem %s1, %s191
          %s193 = smul.u32 128, %s12
        $region36: #{medical_cnn_forward.5} parent=27 // pred_fallthru
          _
      $region28: #{medical_cnn_forward.5} parent=5 // pred_fallthru
        _
      %p194 = scmp.le.s32.totalorder 1, %s12
      %p195 = scmp.lt.s32.totalorder %s12, 5
      %p196 = pnand %p194, %p195
      %p197 = pneg %p196
      // Predicated region
      $region37: #{medical_cnn_forward.5} parent=5 // pred_check
        _
      $region38: #{medical_cnn_forward.5} parent=5 // pred_check_branch
        %199 = sbr.rel (%p196) target = $region40
      $region39: #{medical_cnn_forward.5} parent=5 // pred_region
        %s200 = ssub.s32 %s12, 1
        %s201 = smul.u32 8, %s17
        %p202 = scmp.lt.s32.totalorder %s201, 31
        %s203 = scalar_select %p202, %s201, 31
        %s204 = scalar_lea.vmem %s0, %s203
        %p205 = pneg %p38
        %p206 = pneg %p35
        %s207 = smul.u32 128, %s17
        %p208 = scmp.lt.s32.totalorder %s207, 511
        %s209 = scalar_select %p208, %s207, 511
        %s210 = smul.addr %s209, 4
        %s211 = smul.addr %s210, 4
        %s212 = scalar_lea.vmem %s1, %s211
        %p213 = pneg %p64
        %p214 = pneg %p61
        %p215 = pneg %p85
        %p216 = pneg %p82
        %p217 = pneg %p106
        %p218 = pneg %p103
        %p219 = pneg %p127
        %p220 = pneg %p124
        %p221 = pneg %p148
        %p222 = pneg %p145
        %s223 = smul.u32 8, %s17
        %p224 = scmp.lt.s32.totalorder %s223, 31
        %s225 = scalar_select %p224, %s223, 31
        %s226 = scalar_lea.vmem %s0, %s225
        %s227 = smul.u32 8, %s17
        %s228 = smul.u32 128, %s17
        %p229 = scmp.lt.s32.totalorder %s228, 511
        %s230 = scalar_select %p229, %s228, 511
        %s231 = smul.addr %s230, 4
        %s232 = smul.addr %s231, 4
        %s233 = scalar_lea.vmem %s1, %s232
        %s234 = smul.u32 128, %s17
        %p235 = scmp.eq.s32.totalorder %s17, 0
        // Predicated region
        $region41: #{medical_cnn_forward.5} parent=39 // pred_check
          %p236 = pneg %p235
        $region42: #{medical_cnn_forward.5} parent=39 // pred_check_branch
          %238 = sbr.rel (%p236) target = $region44
        $region43: #{medical_cnn_forward.5} parent=39 // pred_region
          %239 = vst [vmem:[#allocation2] sm:$0xff] 0.0
        $region44: #{medical_cnn_forward.5} parent=39 // pred_fallthru
          _
        %v240 = vld [vmem:[#allocation2] sm:$0xff]
        %v241 = vld [vmem:[%s226] sm:$0xff]
        %v242 = vld [vmem:[%s233] sm:$0xff]
        %v243 = vld [vmem:[%s233 + $0x8] sm:$0xff]
        %v244 = vld [vmem:[%s233 + $0x10] sm:$0xff]
        %v245 = vld [vmem:[%s233 + $0x18] sm:$0xff]
        %v246 = vld [vmem:[%s233 + $0x20] sm:$0xff]
        %v247 = vld [vmem:[%s233 + $0x28] sm:$0xff]
        %v248 = vld [vmem:[%s233 + $0x30] sm:$0xff]
        %v249 = vld [vmem:[%s233 + $0x38] sm:$0xff]
        %v250 = vld [vmem:[%s233 + $0x40] sm:$0xff]
        %v251 = vld [vmem:[%s233 + $0x48] sm:$0xff]
        %v252 = vld [vmem:[%s233 + $0x50] sm:$0xff]
        %v253 = vld [vmem:[%s233 + $0x58] sm:$0xff]
        %v254 = vld [vmem:[%s233 + $0x60] sm:$0xff]
        %v255 = vld [vmem:[%s233 + $0x68] sm:$0xff]
        %v256 = vld [vmem:[%s233 + $0x70] sm:$0xff]
        %v257 = vld [vmem:[%s233 + $0x78] sm:$0xff]
        %v258 = vld [vmem:[%s233 + $0x80] sm:$0xff]
        %v259 = vld [vmem:[%s233 + $0x88] sm:$0xff]
        %v260 = vld [vmem:[%s233 + $0x90] sm:$0xff]
        %v261 = vld [vmem:[%s233 + $0x98] sm:$0xff]
        %v262 = vld [vmem:[%s233 + $0xa0] sm:$0xff]
        %v263 = vld [vmem:[%s233 + $0xa8] sm:$0xff]
        %v264 = vld [vmem:[%s233 + $0xb0] sm:$0xff]
        %v265 = vld [vmem:[%s233 + $0xb8] sm:$0xff]
        %v266 = vld [vmem:[%s233 + $0xc0] sm:$0xff]
        %v267 = vld [vmem:[%s233 + $0xc8] sm:$0xff]
        %v268 = vld [vmem:[%s233 + $0xd0] sm:$0xff]
        %v269 = vld [vmem:[%s233 + $0xd8] sm:$0xff]
        %v270 = vld [vmem:[%s233 + $0xe0] sm:$0xff]
        %v271 = vld [vmem:[%s233 + $0xe8] sm:$0xff]
        %v272 = vld [vmem:[%s233 + $0xf0] sm:$0xff]
        %v273 = vld [vmem:[%s233 + $0xf8] sm:$0xff]
        %v274 = vld [vmem:[%s233 + $0x100] sm:$0xff]
        %v275 = vld [vmem:[%s233 + $0x108] sm:$0xff]
        %v276 = vld [vmem:[%s233 + $0x110] sm:$0xff]
        %v277 = vld [vmem:[%s233 + $0x118] sm:$0xff]
        %v278 = vld [vmem:[%s233 + $0x120] sm:$0xff]
        %v279 = vld [vmem:[%s233 + $0x128] sm:$0xff]
        %v280 = vld [vmem:[%s233 + $0x130] sm:$0xff]
        %v281 = vld [vmem:[%s233 + $0x138] sm:$0xff]
        %v282 = vld [vmem:[%s233 + $0x140] sm:$0xff]
        %v283 = vld [vmem:[%s233 + $0x148] sm:$0xff]
        %v284 = vld [vmem:[%s233 + $0x150] sm:$0xff]
        %v285 = vld [vmem:[%s233 + $0x158] sm:$0xff]
        %v286 = vld [vmem:[%s233 + $0x160] sm:$0xff]
        %v287 = vld [vmem:[%s233 + $0x168] sm:$0xff]
        %v288 = vld [vmem:[%s233 + $0x170] sm:$0xff]
        %v289 = vld [vmem:[%s233 + $0x178] sm:$0xff]
        %v290 = vld [vmem:[%s233 + $0x180] sm:$0xff]
        %v291 = vld [vmem:[%s233 + $0x188] sm:$0xff]
        %v292 = vld [vmem:[%s233 + $0x190] sm:$0xff]
        %v293 = vld [vmem:[%s233 + $0x198] sm:$0xff]
        %v294 = vld [vmem:[%s233 + $0x1a0] sm:$0xff]
        %v295 = vld [vmem:[%s233 + $0x1a8] sm:$0xff]
        %v296 = vld [vmem:[%s233 + $0x1b0] sm:$0xff]
        %v297 = vld [vmem:[%s233 + $0x1b8] sm:$0xff]
        %v298 = vld [vmem:[%s233 + $0x1c0] sm:$0xff]
        %v299 = vld [vmem:[%s233 + $0x1c8] sm:$0xff]
        %v300 = vld [vmem:[%s233 + $0x1d0] sm:$0xff]
        %v301 = vld [vmem:[%s233 + $0x1d8] sm:$0xff]
        %v302 = vld [vmem:[%s233 + $0x1e0] sm:$0xff]
        %v303 = vld [vmem:[%s233 + $0x1e8] sm:$0xff]
        %v304 = vld [vmem:[%s233 + $0x1f0] sm:$0xff]
        %v305 = vld [vmem:[%s233 + $0x1f8] sm:$0xff]
        %v306 = vld [vmem:[%s233 + $0x200] sm:$0xff]
        %v307 = vld [vmem:[%s233 + $0x208] sm:$0xff]
        %v308 = vld [vmem:[%s233 + $0x210] sm:$0xff]
        %v309 = vld [vmem:[%s233 + $0x218] sm:$0xff]
        %v310 = vld [vmem:[%s233 + $0x220] sm:$0xff]
        %v311 = vld [vmem:[%s233 + $0x228] sm:$0xff]
        %v312 = vld [vmem:[%s233 + $0x230] sm:$0xff]
        %v313 = vld [vmem:[%s233 + $0x238] sm:$0xff]
        %v314 = vld [vmem:[%s233 + $0x240] sm:$0xff]
        %v315 = vld [vmem:[%s233 + $0x248] sm:$0xff]
        %v316 = vld [vmem:[%s233 + $0x250] sm:$0xff]
        %v317 = vld [vmem:[%s233 + $0x258] sm:$0xff]
        %v318 = vld [vmem:[%s233 + $0x260] sm:$0xff]
        %v319 = vld [vmem:[%s233 + $0x268] sm:$0xff]
        %v320 = vld [vmem:[%s233 + $0x270] sm:$0xff]
        %v321 = vld [vmem:[%s233 + $0x278] sm:$0xff]
        %v322 = vld [vmem:[%s233 + $0x280] sm:$0xff]
        %v323 = vld [vmem:[%s233 + $0x288] sm:$0xff]
        %v324 = vld [vmem:[%s233 + $0x290] sm:$0xff]
        %v325 = vld [vmem:[%s233 + $0x298] sm:$0xff]
        %v326 = vld [vmem:[%s233 + $0x2a0] sm:$0xff]
        %v327 = vld [vmem:[%s233 + $0x2a8] sm:$0xff]
        %v328 = vld [vmem:[%s233 + $0x2b0] sm:$0xff]
        %v329 = vld [vmem:[%s233 + $0x2b8] sm:$0xff]
        %v330 = vld [vmem:[%s233 + $0x2c0] sm:$0xff]
        %v331 = vld [vmem:[%s233 + $0x2c8] sm:$0xff]
        %v332 = vld [vmem:[%s233 + $0x2d0] sm:$0xff]
        %v333 = vld [vmem:[%s233 + $0x2d8] sm:$0xff]
        %v334 = vld [vmem:[%s233 + $0x2e0] sm:$0xff]
        %v335 = vld [vmem:[%s233 + $0x2e8] sm:$0xff]
        %v336 = vld [vmem:[%s233 + $0x2f0] sm:$0xff]
        %v337 = vld [vmem:[%s233 + $0x2f8] sm:$0xff]
        %v338 = vld [vmem:[%s233 + $0x300] sm:$0xff]
        %v339 = vld [vmem:[%s233 + $0x308] sm:$0xff]
        %v340 = vld [vmem:[%s233 + $0x310] sm:$0xff]
        %v341 = vld [vmem:[%s233 + $0x318] sm:$0xff]
        %v342 = vld [vmem:[%s233 + $0x320] sm:$0xff]
        %v343 = vld [vmem:[%s233 + $0x328] sm:$0xff]
        %v344 = vld [vmem:[%s233 + $0x330] sm:$0xff]
        %v345 = vld [vmem:[%s233 + $0x338] sm:$0xff]
        %v346 = vld [vmem:[%s233 + $0x340] sm:$0xff]
        %v347 = vld [vmem:[%s233 + $0x348] sm:$0xff]
        %v348 = vld [vmem:[%s233 + $0x350] sm:$0xff]
        %v349 = vld [vmem:[%s233 + $0x358] sm:$0xff]
        %v350 = vld [vmem:[%s233 + $0x360] sm:$0xff]
        %v351 = vld [vmem:[%s233 + $0x368] sm:$0xff]
        %v352 = vld [vmem:[%s233 + $0x370] sm:$0xff]
        %v353 = vld [vmem:[%s233 + $0x378] sm:$0xff]
        %v354 = vld [vmem:[%s233 + $0x380] sm:$0xff]
        %v355 = vld [vmem:[%s233 + $0x388] sm:$0xff]
        %v356 = vld [vmem:[%s233 + $0x390] sm:$0xff]
        %v357 = vld [vmem:[%s233 + $0x398] sm:$0xff]
        %v358 = vld [vmem:[%s233 + $0x3a0] sm:$0xff]
        %v359 = vld [vmem:[%s233 + $0x3a8] sm:$0xff]
        %v360 = vld [vmem:[%s233 + $0x3b0] sm:$0xff]
        %v361 = vld [vmem:[%s233 + $0x3b8] sm:$0xff]
        %v362 = vld [vmem:[%s233 + $0x3c0] sm:$0xff]
        %v363 = vld [vmem:[%s233 + $0x3c8] sm:$0xff]
        %v364 = vld [vmem:[%s233 + $0x3d0] sm:$0xff]
        %v365 = vld [vmem:[%s233 + $0x3d8] sm:$0xff]
        %v366 = vld [vmem:[%s233 + $0x3e0] sm:$0xff]
        %v367 = vld [vmem:[%s233 + $0x3e8] sm:$0xff]
        %v368 = vld [vmem:[%s233 + $0x3f0] sm:$0xff]
        %v369 = vld [vmem:[%s233 + $0x3f8] sm:$0xff]
        %v370 = vld [vmem:[%s233 + $0x400] sm:$0xff]
        %v371 = vld [vmem:[%s233 + $0x408] sm:$0xff]
        %v372 = vld [vmem:[%s233 + $0x410] sm:$0xff]
        %v373 = vld [vmem:[%s233 + $0x418] sm:$0xff]
        %v374 = vld [vmem:[%s233 + $0x420] sm:$0xff]
        %v375 = vld [vmem:[%s233 + $0x428] sm:$0xff]
        %v376 = vld [vmem:[%s233 + $0x430] sm:$0xff]
        %v377 = vld [vmem:[%s233 + $0x438] sm:$0xff]
        %v378 = vld [vmem:[%s233 + $0x440] sm:$0xff]
        %v379 = vld [vmem:[%s233 + $0x448] sm:$0xff]
        %v380 = vld [vmem:[%s233 + $0x450] sm:$0xff]
        %v381 = vld [vmem:[%s233 + $0x458] sm:$0xff]
        %v382 = vld [vmem:[%s233 + $0x460] sm:$0xff]
        %v383 = vld [vmem:[%s233 + $0x468] sm:$0xff]
        %v384 = vld [vmem:[%s233 + $0x470] sm:$0xff]
        %v385 = vld [vmem:[%s233 + $0x478] sm:$0xff]
        %v386 = vld [vmem:[%s233 + $0x480] sm:$0xff]
        %v387 = vld [vmem:[%s233 + $0x488] sm:$0xff]
        %v388 = vld [vmem:[%s233 + $0x490] sm:$0xff]
        %v389 = vld [vmem:[%s233 + $0x498] sm:$0xff]
        %v390 = vld [vmem:[%s233 + $0x4a0] sm:$0xff]
        %v391 = vld [vmem:[%s233 + $0x4a8] sm:$0xff]
        %v392 = vld [vmem:[%s233 + $0x4b0] sm:$0xff]
        %v393 = vld [vmem:[%s233 + $0x4b8] sm:$0xff]
        %v394 = vld [vmem:[%s233 + $0x4c0] sm:$0xff]
        %v395 = vld [vmem:[%s233 + $0x4c8] sm:$0xff]
        %v396 = vld [vmem:[%s233 + $0x4d0] sm:$0xff]
        %v397 = vld [vmem:[%s233 + $0x4d8] sm:$0xff]
        %v398 = vld [vmem:[%s233 + $0x4e0] sm:$0xff]
        %v399 = vld [vmem:[%s233 + $0x4e8] sm:$0xff]
        %v400 = vld [vmem:[%s233 + $0x4f0] sm:$0xff]
        %v401 = vld [vmem:[%s233 + $0x4f8] sm:$0xff]
        %v402 = vld [vmem:[%s233 + $0x500] sm:$0xff]
        %v403 = vld [vmem:[%s233 + $0x508] sm:$0xff]
        %v404 = vld [vmem:[%s233 + $0x510] sm:$0xff]
        %v405 = vld [vmem:[%s233 + $0x518] sm:$0xff]
        %v406 = vld [vmem:[%s233 + $0x520] sm:$0xff]
        %v407 = vld [vmem:[%s233 + $0x528] sm:$0xff]
        %v408 = vld [vmem:[%s233 + $0x530] sm:$0xff]
        %v409 = vld [vmem:[%s233 + $0x538] sm:$0xff]
        %v410 = vld [vmem:[%s233 + $0x540] sm:$0xff]
        %v411 = vld [vmem:[%s233 + $0x548] sm:$0xff]
        %v412 = vld [vmem:[%s233 + $0x550] sm:$0xff]
        %v413 = vld [vmem:[%s233 + $0x558] sm:$0xff]
        %v414 = vld [vmem:[%s233 + $0x560] sm:$0xff]
        %v415 = vld [vmem:[%s233 + $0x568] sm:$0xff]
        %v416 = vld [vmem:[%s233 + $0x570] sm:$0xff]
        %v417 = vld [vmem:[%s233 + $0x578] sm:$0xff]
        %v418 = vld [vmem:[%s233 + $0x580] sm:$0xff]
        %v419 = vld [vmem:[%s233 + $0x588] sm:$0xff]
        %v420 = vld [vmem:[%s233 + $0x590] sm:$0xff]
        %v421 = vld [vmem:[%s233 + $0x598] sm:$0xff]
        %v422 = vld [vmem:[%s233 + $0x5a0] sm:$0xff]
        %v423 = vld [vmem:[%s233 + $0x5a8] sm:$0xff]
        %v424 = vld [vmem:[%s233 + $0x5b0] sm:$0xff]
        %v425 = vld [vmem:[%s233 + $0x5b8] sm:$0xff]
        %v426 = vld [vmem:[%s233 + $0x5c0] sm:$0xff]
        %v427 = vld [vmem:[%s233 + $0x5c8] sm:$0xff]
        %v428 = vld [vmem:[%s233 + $0x5d0] sm:$0xff]
        %v429 = vld [vmem:[%s233 + $0x5d8] sm:$0xff]
        %v430 = vld [vmem:[%s233 + $0x5e0] sm:$0xff]
        %v431 = vld [vmem:[%s233 + $0x5e8] sm:$0xff]
        %v432 = vld [vmem:[%s233 + $0x5f0] sm:$0xff]
        %v433 = vld [vmem:[%s233 + $0x5f8] sm:$0xff]
        %v434 = vld [vmem:[%s233 + $0x600] sm:$0xff]
        %v435 = vld [vmem:[%s233 + $0x608] sm:$0xff]
        %v436 = vld [vmem:[%s233 + $0x610] sm:$0xff]
        %v437 = vld [vmem:[%s233 + $0x618] sm:$0xff]
        %v438 = vld [vmem:[%s233 + $0x620] sm:$0xff]
        %v439 = vld [vmem:[%s233 + $0x628] sm:$0xff]
        %v440 = vld [vmem:[%s233 + $0x630] sm:$0xff]
        %v441 = vld [vmem:[%s233 + $0x638] sm:$0xff]
        %v442 = vld [vmem:[%s233 + $0x640] sm:$0xff]
        %v443 = vld [vmem:[%s233 + $0x648] sm:$0xff]
        %v444 = vld [vmem:[%s233 + $0x650] sm:$0xff]
        %v445 = vld [vmem:[%s233 + $0x658] sm:$0xff]
        %v446 = vld [vmem:[%s233 + $0x660] sm:$0xff]
        %v447 = vld [vmem:[%s233 + $0x668] sm:$0xff]
        %v448 = vld [vmem:[%s233 + $0x670] sm:$0xff]
        %v449 = vld [vmem:[%s233 + $0x678] sm:$0xff]
        %v450 = vld [vmem:[%s233 + $0x680] sm:$0xff]
        %v451 = vld [vmem:[%s233 + $0x688] sm:$0xff]
        %v452 = vld [vmem:[%s233 + $0x690] sm:$0xff]
        %v453 = vld [vmem:[%s233 + $0x698] sm:$0xff]
        %v454 = vld [vmem:[%s233 + $0x6a0] sm:$0xff]
        %v455 = vld [vmem:[%s233 + $0x6a8] sm:$0xff]
        %v456 = vld [vmem:[%s233 + $0x6b0] sm:$0xff]
        %v457 = vld [vmem:[%s233 + $0x6b8] sm:$0xff]
        %v458 = vld [vmem:[%s233 + $0x6c0] sm:$0xff]
        %v459 = vld [vmem:[%s233 + $0x6c8] sm:$0xff]
        %v460 = vld [vmem:[%s233 + $0x6d0] sm:$0xff]
        %v461 = vld [vmem:[%s233 + $0x6d8] sm:$0xff]
        %v462 = vld [vmem:[%s233 + $0x6e0] sm:$0xff]
        %v463 = vld [vmem:[%s233 + $0x6e8] sm:$0xff]
        %v464 = vld [vmem:[%s233 + $0x6f0] sm:$0xff]
        %v465 = vld [vmem:[%s233 + $0x6f8] sm:$0xff]
        %v466 = vld [vmem:[%s233 + $0x700] sm:$0xff]
        %v467 = vld [vmem:[%s233 + $0x708] sm:$0xff]
        %v468 = vld [vmem:[%s233 + $0x710] sm:$0xff]
        %v469 = vld [vmem:[%s233 + $0x718] sm:$0xff]
        %v470 = vld [vmem:[%s233 + $0x720] sm:$0xff]
        %v471 = vld [vmem:[%s233 + $0x728] sm:$0xff]
        %v472 = vld [vmem:[%s233 + $0x730] sm:$0xff]
        %v473 = vld [vmem:[%s233 + $0x738] sm:$0xff]
        %v474 = vld [vmem:[%s233 + $0x740] sm:$0xff]
        %v475 = vld [vmem:[%s233 + $0x748] sm:$0xff]
        %v476 = vld [vmem:[%s233 + $0x750] sm:$0xff]
        %v477 = vld [vmem:[%s233 + $0x758] sm:$0xff]
        %v478 = vld [vmem:[%s233 + $0x760] sm:$0xff]
        %v479 = vld [vmem:[%s233 + $0x768] sm:$0xff]
        %v480 = vld [vmem:[%s233 + $0x770] sm:$0xff]
        %v481 = vld [vmem:[%s233 + $0x778] sm:$0xff]
        %v482 = vld [vmem:[%s233 + $0x780] sm:$0xff]
        %v483 = vld [vmem:[%s233 + $0x788] sm:$0xff]
        %v484 = vld [vmem:[%s233 + $0x790] sm:$0xff]
        %v485 = vld [vmem:[%s233 + $0x798] sm:$0xff]
        %v486 = vld [vmem:[%s233 + $0x7a0] sm:$0xff]
        %v487 = vld [vmem:[%s233 + $0x7a8] sm:$0xff]
        %v488 = vld [vmem:[%s233 + $0x7b0] sm:$0xff]
        %v489 = vld [vmem:[%s233 + $0x7b8] sm:$0xff]
        %v490 = vld [vmem:[%s233 + $0x7c0] sm:$0xff]
        %v491 = vld [vmem:[%s233 + $0x7c8] sm:$0xff]
        %v492 = vld [vmem:[%s233 + $0x7d0] sm:$0xff]
        %v493 = vld [vmem:[%s233 + $0x7d8] sm:$0xff]
        %v494 = vld [vmem:[%s233 + $0x7e0] sm:$0xff]
        %v495 = vld [vmem:[%s233 + $0x7e8] sm:$0xff]
        %v496 = vld [vmem:[%s233 + $0x7f0] sm:$0xff]
        %v497 = vld [vmem:[%s233 + $0x7f8] sm:$0xff]
        %v499 = vcombine.high %v241, %v241
        %v501 = vunpack.c.l.s4 1966171168
        %v502 = vunpack.c.0.s8 %v501
        %v503 = vlaneseq
        %v504 = vshrl.u32 %v503, 7
        %v505 = vsub.s32 %v502, %v504
        %v506 = vrot.slane %v241, %v505
        %v508 = vunpack.c.l.s4 1966171168
        %v509 = vunpack.c.0.s8 %v508
        %v510 = vlaneseq
        %v511 = vshrl.u32 %v510, 7
        %v512 = vsub.s32 %v509, %v511
        %v513 = vrot.slane %v499, %v512
        %v514 = vcombine.high %v506, %v506
        %v515 = vcombine.high %v513, %v513
        %v517 = vunpack.c.l.s4 1966171168
        %v518 = vunpack.c.0.s8 %v517
        %v519 = vlaneseq
        %v520 = vshrl.u32 %v519, 7
        %v521 = vsub.s32 %v518, %v520
        %v522 = vrot.slane %v506, %v521
        %v524 = vunpack.c.l.s4 1966171168
        %v525 = vunpack.c.0.s8 %v524
        %v526 = vlaneseq
        %v527 = vshrl.u32 %v526, 7
        %v528 = vsub.s32 %v525, %v527
        %v529 = vrot.slane %v513, %v528
        %v531 = vunpack.c.l.s4 1966171168
        %v532 = vunpack.c.0.s8 %v531
        %v533 = vlaneseq
        %v534 = vshrl.u32 %v533, 7
        %v535 = vsub.s32 %v532, %v534
        %v536 = vrot.slane %v514, %v535
        %v538 = vunpack.c.l.s4 1966171168
        %v539 = vunpack.c.0.s8 %v538
        %v540 = vlaneseq
        %v541 = vshrl.u32 %v540, 7
        %v542 = vsub.s32 %v539, %v541
        %v543 = vrot.slane %v515, %v542
        %v544 = vcombine.high %v522, %v522
        %v545 = vcombine.high %v529, %v529
        %v546 = vcombine.high %v536, %v536
        %v547 = vcombine.high %v543, %v543
        %v812 = vunpack.c.l.b16 %v242
        %v813 = vunpack.c.h.b16 %v242
        %v814 = vunpack.c.l.b16 %v243
        %v815 = vunpack.c.h.b16 %v243
        %v816 = vunpack.c.l.b16 %v244
        %v817 = vunpack.c.h.b16 %v244
        %v818 = vunpack.c.l.b16 %v245
        %v819 = vunpack.c.h.b16 %v245
        %v820 = vunpack.c.l.b16 %v246
        %v821 = vunpack.c.h.b16 %v246
        %v822 = vunpack.c.l.b16 %v247
        %v823 = vunpack.c.h.b16 %v247
        %v824 = vunpack.c.l.b16 %v248
        %v825 = vunpack.c.h.b16 %v248
        %v826 = vunpack.c.l.b16 %v249
        %v827 = vunpack.c.h.b16 %v249
        %v828 = vunpack.c.l.b16 %v250
        %v829 = vunpack.c.h.b16 %v250
        %v830 = vunpack.c.l.b16 %v251
        %v831 = vunpack.c.h.b16 %v251
        %v832 = vunpack.c.l.b16 %v252
        %v833 = vunpack.c.h.b16 %v252
        %v834 = vunpack.c.l.b16 %v253
        %v835 = vunpack.c.h.b16 %v253
        %v836 = vunpack.c.l.b16 %v254
        %v837 = vunpack.c.h.b16 %v254
        %v838 = vunpack.c.l.b16 %v255
        %v839 = vunpack.c.h.b16 %v255
        %v840 = vunpack.c.l.b16 %v256
        %v841 = vunpack.c.h.b16 %v256
        %v842 = vunpack.c.l.b16 %v257
        %v843 = vunpack.c.h.b16 %v257
        %v844 = vunpack.c.l.b16 %v258
        %v845 = vunpack.c.h.b16 %v258
        %v846 = vunpack.c.l.b16 %v259
        %v847 = vunpack.c.h.b16 %v259
        %v848 = vunpack.c.l.b16 %v260
        %v849 = vunpack.c.h.b16 %v260
        %v850 = vunpack.c.l.b16 %v261
        %v851 = vunpack.c.h.b16 %v261
        %v852 = vunpack.c.l.b16 %v262
        %v853 = vunpack.c.h.b16 %v262
        %v854 = vunpack.c.l.b16 %v263
        %v855 = vunpack.c.h.b16 %v263
        %v856 = vunpack.c.l.b16 %v264
        %v857 = vunpack.c.h.b16 %v264
        %v858 = vunpack.c.l.b16 %v265
        %v859 = vunpack.c.h.b16 %v265
        %v860 = vunpack.c.l.b16 %v266
        %v861 = vunpack.c.h.b16 %v266
        %v862 = vunpack.c.l.b16 %v267
        %v863 = vunpack.c.h.b16 %v267
        %v864 = vunpack.c.l.b16 %v268
        %v865 = vunpack.c.h.b16 %v268
        %v866 = vunpack.c.l.b16 %v269
        %v867 = vunpack.c.h.b16 %v269
        %v868 = vunpack.c.l.b16 %v270
        %v869 = vunpack.c.h.b16 %v270
        %v870 = vunpack.c.l.b16 %v271
        %v871 = vunpack.c.h.b16 %v271
        %v872 = vunpack.c.l.b16 %v272
        %v873 = vunpack.c.h.b16 %v272
        %v874 = vunpack.c.l.b16 %v273
        %v875 = vunpack.c.h.b16 %v273
        %v876 = vunpack.c.l.b16 %v274
        %v877 = vunpack.c.h.b16 %v274
        %v878 = vunpack.c.l.b16 %v275
        %v879 = vunpack.c.h.b16 %v275
        %v880 = vunpack.c.l.b16 %v276
        %v881 = vunpack.c.h.b16 %v276
        %v882 = vunpack.c.l.b16 %v277
        %v883 = vunpack.c.h.b16 %v277
        %v884 = vunpack.c.l.b16 %v278
        %v885 = vunpack.c.h.b16 %v278
        %v886 = vunpack.c.l.b16 %v279
        %v887 = vunpack.c.h.b16 %v279
        %v888 = vunpack.c.l.b16 %v280
        %v889 = vunpack.c.h.b16 %v280
        %v890 = vunpack.c.l.b16 %v281
        %v891 = vunpack.c.h.b16 %v281
        %v892 = vunpack.c.l.b16 %v282
        %v893 = vunpack.c.h.b16 %v282
        %v894 = vunpack.c.l.b16 %v283
        %v895 = vunpack.c.h.b16 %v283
        %v896 = vunpack.c.l.b16 %v284
        %v897 = vunpack.c.h.b16 %v284
        %v898 = vunpack.c.l.b16 %v285
        %v899 = vunpack.c.h.b16 %v285
        %v900 = vunpack.c.l.b16 %v286
        %v901 = vunpack.c.h.b16 %v286
        %v902 = vunpack.c.l.b16 %v287
        %v903 = vunpack.c.h.b16 %v287
        %v904 = vunpack.c.l.b16 %v288
        %v905 = vunpack.c.h.b16 %v288
        %v906 = vunpack.c.l.b16 %v289
        %v907 = vunpack.c.h.b16 %v289
        %v908 = vunpack.c.l.b16 %v290
        %v909 = vunpack.c.h.b16 %v290
        %v910 = vunpack.c.l.b16 %v291
        %v911 = vunpack.c.h.b16 %v291
        %v912 = vunpack.c.l.b16 %v292
        %v913 = vunpack.c.h.b16 %v292
        %v914 = vunpack.c.l.b16 %v293
        %v915 = vunpack.c.h.b16 %v293
        %v916 = vunpack.c.l.b16 %v294
        %v917 = vunpack.c.h.b16 %v294
        %v918 = vunpack.c.l.b16 %v295
        %v919 = vunpack.c.h.b16 %v295
        %v920 = vunpack.c.l.b16 %v296
        %v921 = vunpack.c.h.b16 %v296
        %v922 = vunpack.c.l.b16 %v297
        %v923 = vunpack.c.h.b16 %v297
        %v924 = vunpack.c.l.b16 %v298
        %v925 = vunpack.c.h.b16 %v298
        %v926 = vunpack.c.l.b16 %v299
        %v927 = vunpack.c.h.b16 %v299
        %v928 = vunpack.c.l.b16 %v300
        %v929 = vunpack.c.h.b16 %v300
        %v930 = vunpack.c.l.b16 %v301
        %v931 = vunpack.c.h.b16 %v301
        %v932 = vunpack.c.l.b16 %v302
        %v933 = vunpack.c.h.b16 %v302
        %v934 = vunpack.c.l.b16 %v303
        %v935 = vunpack.c.h.b16 %v303
        %v936 = vunpack.c.l.b16 %v304
        %v937 = vunpack.c.h.b16 %v304
        %v938 = vunpack.c.l.b16 %v305
        %v939 = vunpack.c.h.b16 %v305
        %v940 = vunpack.c.l.b16 %v306
        %v941 = vunpack.c.h.b16 %v306
        %v942 = vunpack.c.l.b16 %v307
        %v943 = vunpack.c.h.b16 %v307
        %v944 = vunpack.c.l.b16 %v308
        %v945 = vunpack.c.h.b16 %v308
        %v946 = vunpack.c.l.b16 %v309
        %v947 = vunpack.c.h.b16 %v309
        %v948 = vunpack.c.l.b16 %v310
        %v949 = vunpack.c.h.b16 %v310
        %v950 = vunpack.c.l.b16 %v311
        %v951 = vunpack.c.h.b16 %v311
        %v952 = vunpack.c.l.b16 %v312
        %v953 = vunpack.c.h.b16 %v312
        %v954 = vunpack.c.l.b16 %v313
        %v955 = vunpack.c.h.b16 %v313
        %v956 = vunpack.c.l.b16 %v314
        %v957 = vunpack.c.h.b16 %v314
        %v958 = vunpack.c.l.b16 %v315
        %v959 = vunpack.c.h.b16 %v315
        %v960 = vunpack.c.l.b16 %v316
        %v961 = vunpack.c.h.b16 %v316
        %v962 = vunpack.c.l.b16 %v317
        %v963 = vunpack.c.h.b16 %v317
        %v964 = vunpack.c.l.b16 %v318
        %v965 = vunpack.c.h.b16 %v318
        %v966 = vunpack.c.l.b16 %v319
        %v967 = vunpack.c.h.b16 %v319
        %v968 = vunpack.c.l.b16 %v320
        %v969 = vunpack.c.h.b16 %v320
        %v970 = vunpack.c.l.b16 %v321
        %v971 = vunpack.c.h.b16 %v321
        %v972 = vunpack.c.l.b16 %v322
        %v973 = vunpack.c.h.b16 %v322
        %v974 = vunpack.c.l.b16 %v323
        %v975 = vunpack.c.h.b16 %v323
        %v976 = vunpack.c.l.b16 %v324
        %v977 = vunpack.c.h.b16 %v324
        %v978 = vunpack.c.l.b16 %v325
        %v979 = vunpack.c.h.b16 %v325
        %v980 = vunpack.c.l.b16 %v326
        %v981 = vunpack.c.h.b16 %v326
        %v982 = vunpack.c.l.b16 %v327
        %v983 = vunpack.c.h.b16 %v327
        %v984 = vunpack.c.l.b16 %v328
        %v985 = vunpack.c.h.b16 %v328
        %v986 = vunpack.c.l.b16 %v329
        %v987 = vunpack.c.h.b16 %v329
        %v988 = vunpack.c.l.b16 %v330
        %v989 = vunpack.c.h.b16 %v330
        %v990 = vunpack.c.l.b16 %v331
        %v991 = vunpack.c.h.b16 %v331
        %v992 = vunpack.c.l.b16 %v332
        %v993 = vunpack.c.h.b16 %v332
        %v994 = vunpack.c.l.b16 %v333
        %v995 = vunpack.c.h.b16 %v333
        %v996 = vunpack.c.l.b16 %v334
        %v997 = vunpack.c.h.b16 %v334
        %v998 = vunpack.c.l.b16 %v335
        %v999 = vunpack.c.h.b16 %v335
        %v1000 = vunpack.c.l.b16 %v336
        %v1001 = vunpack.c.h.b16 %v336
        %v1002 = vunpack.c.l.b16 %v337
        %v1003 = vunpack.c.h.b16 %v337
        %v1004 = vunpack.c.l.b16 %v338
        %v1005 = vunpack.c.h.b16 %v338
        %v1006 = vunpack.c.l.b16 %v339
        %v1007 = vunpack.c.h.b16 %v339
        %v1008 = vunpack.c.l.b16 %v340
        %v1009 = vunpack.c.h.b16 %v340
        %v1010 = vunpack.c.l.b16 %v341
        %v1011 = vunpack.c.h.b16 %v341
        %v1012 = vunpack.c.l.b16 %v342
        %v1013 = vunpack.c.h.b16 %v342
        %v1014 = vunpack.c.l.b16 %v343
        %v1015 = vunpack.c.h.b16 %v343
        %v1016 = vunpack.c.l.b16 %v344
        %v1017 = vunpack.c.h.b16 %v344
        %v1018 = vunpack.c.l.b16 %v345
        %v1019 = vunpack.c.h.b16 %v345
        %v1020 = vunpack.c.l.b16 %v346
        %v1021 = vunpack.c.h.b16 %v346
        %v1022 = vunpack.c.l.b16 %v347
        %v1023 = vunpack.c.h.b16 %v347
        %v1024 = vunpack.c.l.b16 %v348
        %v1025 = vunpack.c.h.b16 %v348
        %v1026 = vunpack.c.l.b16 %v349
        %v1027 = vunpack.c.h.b16 %v349
        %v1028 = vunpack.c.l.b16 %v350
        %v1029 = vunpack.c.h.b16 %v350
        %v1030 = vunpack.c.l.b16 %v351
        %v1031 = vunpack.c.h.b16 %v351
        %v1032 = vunpack.c.l.b16 %v352
        %v1033 = vunpack.c.h.b16 %v352
        %v1034 = vunpack.c.l.b16 %v353
        %v1035 = vunpack.c.h.b16 %v353
        %v1036 = vunpack.c.l.b16 %v354
        %v1037 = vunpack.c.h.b16 %v354
        %v1038 = vunpack.c.l.b16 %v355
        %v1039 = vunpack.c.h.b16 %v355
        %v1040 = vunpack.c.l.b16 %v356
        %v1041 = vunpack.c.h.b16 %v356
        %v1042 = vunpack.c.l.b16 %v357
        %v1043 = vunpack.c.h.b16 %v357
        %v1044 = vunpack.c.l.b16 %v358
        %v1045 = vunpack.c.h.b16 %v358
        %v1046 = vunpack.c.l.b16 %v359
        %v1047 = vunpack.c.h.b16 %v359
        %v1048 = vunpack.c.l.b16 %v360
        %v1049 = vunpack.c.h.b16 %v360
        %v1050 = vunpack.c.l.b16 %v361
        %v1051 = vunpack.c.h.b16 %v361
        %v1052 = vunpack.c.l.b16 %v362
        %v1053 = vunpack.c.h.b16 %v362
        %v1054 = vunpack.c.l.b16 %v363
        %v1055 = vunpack.c.h.b16 %v363
        %v1056 = vunpack.c.l.b16 %v364
        %v1057 = vunpack.c.h.b16 %v364
        %v1058 = vunpack.c.l.b16 %v365
        %v1059 = vunpack.c.h.b16 %v365
        %v1060 = vunpack.c.l.b16 %v366
        %v1061 = vunpack.c.h.b16 %v366
        %v1062 = vunpack.c.l.b16 %v367
        %v1063 = vunpack.c.h.b16 %v367
        %v1064 = vunpack.c.l.b16 %v368
        %v1065 = vunpack.c.h.b16 %v368
        %v1066 = vunpack.c.l.b16 %v369
        %v1067 = vunpack.c.h.b16 %v369
        %v1068 = vunpack.c.l.b16 %v370
        %v1069 = vunpack.c.h.b16 %v370
        %v1070 = vunpack.c.l.b16 %v371
        %v1071 = vunpack.c.h.b16 %v371
        %v1072 = vunpack.c.l.b16 %v372
        %v1073 = vunpack.c.h.b16 %v372
        %v1074 = vunpack.c.l.b16 %v373
        %v1075 = vunpack.c.h.b16 %v373
        %v1076 = vunpack.c.l.b16 %v374
        %v1077 = vunpack.c.h.b16 %v374
        %v1078 = vunpack.c.l.b16 %v375
        %v1079 = vunpack.c.h.b16 %v375
        %v1080 = vunpack.c.l.b16 %v376
        %v1081 = vunpack.c.h.b16 %v376
        %v1082 = vunpack.c.l.b16 %v377
        %v1083 = vunpack.c.h.b16 %v377
        %v1084 = vunpack.c.l.b16 %v378
        %v1085 = vunpack.c.h.b16 %v378
        %v1086 = vunpack.c.l.b16 %v379
        %v1087 = vunpack.c.h.b16 %v379
        %v1088 = vunpack.c.l.b16 %v380
        %v1089 = vunpack.c.h.b16 %v380
        %v1090 = vunpack.c.l.b16 %v381
        %v1091 = vunpack.c.h.b16 %v381
        %v1092 = vunpack.c.l.b16 %v382
        %v1093 = vunpack.c.h.b16 %v382
        %v1094 = vunpack.c.l.b16 %v383
        %v1095 = vunpack.c.h.b16 %v383
        %v1096 = vunpack.c.l.b16 %v384
        %v1097 = vunpack.c.h.b16 %v384
        %v1098 = vunpack.c.l.b16 %v385
        %v1099 = vunpack.c.h.b16 %v385
        %v1100 = vunpack.c.l.b16 %v386
        %v1101 = vunpack.c.h.b16 %v386
        %v1102 = vunpack.c.l.b16 %v387
        %v1103 = vunpack.c.h.b16 %v387
        %v1104 = vunpack.c.l.b16 %v388
        %v1105 = vunpack.c.h.b16 %v388
        %v1106 = vunpack.c.l.b16 %v389
        %v1107 = vunpack.c.h.b16 %v389
        %v1108 = vunpack.c.l.b16 %v390
        %v1109 = vunpack.c.h.b16 %v390
        %v1110 = vunpack.c.l.b16 %v391
        %v1111 = vunpack.c.h.b16 %v391
        %v1112 = vunpack.c.l.b16 %v392
        %v1113 = vunpack.c.h.b16 %v392
        %v1114 = vunpack.c.l.b16 %v393
        %v1115 = vunpack.c.h.b16 %v393
        %v1116 = vunpack.c.l.b16 %v394
        %v1117 = vunpack.c.h.b16 %v394
        %v1118 = vunpack.c.l.b16 %v395
        %v1119 = vunpack.c.h.b16 %v395
        %v1120 = vunpack.c.l.b16 %v396
        %v1121 = vunpack.c.h.b16 %v396
        %v1122 = vunpack.c.l.b16 %v397
        %v1123 = vunpack.c.h.b16 %v397
        %v1124 = vunpack.c.l.b16 %v398
        %v1125 = vunpack.c.h.b16 %v398
        %v1126 = vunpack.c.l.b16 %v399
        %v1127 = vunpack.c.h.b16 %v399
        %v1128 = vunpack.c.l.b16 %v400
        %v1129 = vunpack.c.h.b16 %v400
        %v1130 = vunpack.c.l.b16 %v401
        %v1131 = vunpack.c.h.b16 %v401
        %v1132 = vunpack.c.l.b16 %v402
        %v1133 = vunpack.c.h.b16 %v402
        %v1134 = vunpack.c.l.b16 %v403
        %v1135 = vunpack.c.h.b16 %v403
        %v1136 = vunpack.c.l.b16 %v404
        %v1137 = vunpack.c.h.b16 %v404
        %v1138 = vunpack.c.l.b16 %v405
        %v1139 = vunpack.c.h.b16 %v405
        %v1140 = vunpack.c.l.b16 %v406
        %v1141 = vunpack.c.h.b16 %v406
        %v1142 = vunpack.c.l.b16 %v407
        %v1143 = vunpack.c.h.b16 %v407
        %v1144 = vunpack.c.l.b16 %v408
        %v1145 = vunpack.c.h.b16 %v408
        %v1146 = vunpack.c.l.b16 %v409
        %v1147 = vunpack.c.h.b16 %v409
        %v1148 = vunpack.c.l.b16 %v410
        %v1149 = vunpack.c.h.b16 %v410
        %v1150 = vunpack.c.l.b16 %v411
        %v1151 = vunpack.c.h.b16 %v411
        %v1152 = vunpack.c.l.b16 %v412
        %v1153 = vunpack.c.h.b16 %v412
        %v1154 = vunpack.c.l.b16 %v413
        %v1155 = vunpack.c.h.b16 %v413
        %v1156 = vunpack.c.l.b16 %v414
        %v1157 = vunpack.c.h.b16 %v414
        %v1158 = vunpack.c.l.b16 %v415
        %v1159 = vunpack.c.h.b16 %v415
        %v1160 = vunpack.c.l.b16 %v416
        %v1161 = vunpack.c.h.b16 %v416
        %v1162 = vunpack.c.l.b16 %v417
        %v1163 = vunpack.c.h.b16 %v417
        %v1164 = vunpack.c.l.b16 %v418
        %v1165 = vunpack.c.h.b16 %v418
        %v1166 = vunpack.c.l.b16 %v419
        %v1167 = vunpack.c.h.b16 %v419
        %v1168 = vunpack.c.l.b16 %v420
        %v1169 = vunpack.c.h.b16 %v420
        %v1170 = vunpack.c.l.b16 %v421
        %v1171 = vunpack.c.h.b16 %v421
        %v1172 = vunpack.c.l.b16 %v422
        %v1173 = vunpack.c.h.b16 %v422
        %v1174 = vunpack.c.l.b16 %v423
        %v1175 = vunpack.c.h.b16 %v423
        %v1176 = vunpack.c.l.b16 %v424
        %v1177 = vunpack.c.h.b16 %v424
        %v1178 = vunpack.c.l.b16 %v425
        %v1179 = vunpack.c.h.b16 %v425
        %v1180 = vunpack.c.l.b16 %v426
        %v1181 = vunpack.c.h.b16 %v426
        %v1182 = vunpack.c.l.b16 %v427
        %v1183 = vunpack.c.h.b16 %v427
        %v1184 = vunpack.c.l.b16 %v428
        %v1185 = vunpack.c.h.b16 %v428
        %v1186 = vunpack.c.l.b16 %v429
        %v1187 = vunpack.c.h.b16 %v429
        %v1188 = vunpack.c.l.b16 %v430
        %v1189 = vunpack.c.h.b16 %v430
        %v1190 = vunpack.c.l.b16 %v431
        %v1191 = vunpack.c.h.b16 %v431
        %v1192 = vunpack.c.l.b16 %v432
        %v1193 = vunpack.c.h.b16 %v432
        %v1194 = vunpack.c.l.b16 %v433
        %v1195 = vunpack.c.h.b16 %v433
        %v1196 = vunpack.c.l.b16 %v434
        %v1197 = vunpack.c.h.b16 %v434
        %v1198 = vunpack.c.l.b16 %v435
        %v1199 = vunpack.c.h.b16 %v435
        %v1200 = vunpack.c.l.b16 %v436
        %v1201 = vunpack.c.h.b16 %v436
        %v1202 = vunpack.c.l.b16 %v437
        %v1203 = vunpack.c.h.b16 %v437
        %v1204 = vunpack.c.l.b16 %v438
        %v1205 = vunpack.c.h.b16 %v438
        %v1206 = vunpack.c.l.b16 %v439
        %v1207 = vunpack.c.h.b16 %v439
        %v1208 = vunpack.c.l.b16 %v440
        %v1209 = vunpack.c.h.b16 %v440
        %v1210 = vunpack.c.l.b16 %v441
        %v1211 = vunpack.c.h.b16 %v441
        %v1212 = vunpack.c.l.b16 %v442
        %v1213 = vunpack.c.h.b16 %v442
        %v1214 = vunpack.c.l.b16 %v443
        %v1215 = vunpack.c.h.b16 %v443
        %v1216 = vunpack.c.l.b16 %v444
        %v1217 = vunpack.c.h.b16 %v444
        %v1218 = vunpack.c.l.b16 %v445
        %v1219 = vunpack.c.h.b16 %v445
        %v1220 = vunpack.c.l.b16 %v446
        %v1221 = vunpack.c.h.b16 %v446
        %v1222 = vunpack.c.l.b16 %v447
        %v1223 = vunpack.c.h.b16 %v447
        %v1224 = vunpack.c.l.b16 %v448
        %v1225 = vunpack.c.h.b16 %v448
        %v1226 = vunpack.c.l.b16 %v449
        %v1227 = vunpack.c.h.b16 %v449
        %v1228 = vunpack.c.l.b16 %v450
        %v1229 = vunpack.c.h.b16 %v450
        %v1230 = vunpack.c.l.b16 %v451
        %v1231 = vunpack.c.h.b16 %v451
        %v1232 = vunpack.c.l.b16 %v452
        %v1233 = vunpack.c.h.b16 %v452
        %v1234 = vunpack.c.l.b16 %v453
        %v1235 = vunpack.c.h.b16 %v453
        %v1236 = vunpack.c.l.b16 %v454
        %v1237 = vunpack.c.h.b16 %v454
        %v1238 = vunpack.c.l.b16 %v455
        %v1239 = vunpack.c.h.b16 %v455
        %v1240 = vunpack.c.l.b16 %v456
        %v1241 = vunpack.c.h.b16 %v456
        %v1242 = vunpack.c.l.b16 %v457
        %v1243 = vunpack.c.h.b16 %v457
        %v1244 = vunpack.c.l.b16 %v458
        %v1245 = vunpack.c.h.b16 %v458
        %v1246 = vunpack.c.l.b16 %v459
        %v1247 = vunpack.c.h.b16 %v459
        %v1248 = vunpack.c.l.b16 %v460
        %v1249 = vunpack.c.h.b16 %v460
        %v1250 = vunpack.c.l.b16 %v461
        %v1251 = vunpack.c.h.b16 %v461
        %v1252 = vunpack.c.l.b16 %v462
        %v1253 = vunpack.c.h.b16 %v462
        %v1254 = vunpack.c.l.b16 %v463
        %v1255 = vunpack.c.h.b16 %v463
        %v1256 = vunpack.c.l.b16 %v464
        %v1257 = vunpack.c.h.b16 %v464
        %v1258 = vunpack.c.l.b16 %v465
        %v1259 = vunpack.c.h.b16 %v465
        %v1260 = vunpack.c.l.b16 %v466
        %v1261 = vunpack.c.h.b16 %v466
        %v1262 = vunpack.c.l.b16 %v467
        %v1263 = vunpack.c.h.b16 %v467
        %v1264 = vunpack.c.l.b16 %v468
        %v1265 = vunpack.c.h.b16 %v468
        %v1266 = vunpack.c.l.b16 %v469
        %v1267 = vunpack.c.h.b16 %v469
        %v1268 = vunpack.c.l.b16 %v470
        %v1269 = vunpack.c.h.b16 %v470
        %v1270 = vunpack.c.l.b16 %v471
        %v1271 = vunpack.c.h.b16 %v471
        %v1272 = vunpack.c.l.b16 %v472
        %v1273 = vunpack.c.h.b16 %v472
        %v1274 = vunpack.c.l.b16 %v473
        %v1275 = vunpack.c.h.b16 %v473
        %v1276 = vunpack.c.l.b16 %v474
        %v1277 = vunpack.c.h.b16 %v474
        %v1278 = vunpack.c.l.b16 %v475
        %v1279 = vunpack.c.h.b16 %v475
        %v1280 = vunpack.c.l.b16 %v476
        %v1281 = vunpack.c.h.b16 %v476
        %v1282 = vunpack.c.l.b16 %v477
        %v1283 = vunpack.c.h.b16 %v477
        %v1284 = vunpack.c.l.b16 %v478
        %v1285 = vunpack.c.h.b16 %v478
        %v1286 = vunpack.c.l.b16 %v479
        %v1287 = vunpack.c.h.b16 %v479
        %v1288 = vunpack.c.l.b16 %v480
        %v1289 = vunpack.c.h.b16 %v480
        %v1290 = vunpack.c.l.b16 %v481
        %v1291 = vunpack.c.h.b16 %v481
        %v1292 = vunpack.c.l.b16 %v482
        %v1293 = vunpack.c.h.b16 %v482
        %v1294 = vunpack.c.l.b16 %v483
        %v1295 = vunpack.c.h.b16 %v483
        %v1296 = vunpack.c.l.b16 %v484
        %v1297 = vunpack.c.h.b16 %v484
        %v1298 = vunpack.c.l.b16 %v485
        %v1299 = vunpack.c.h.b16 %v485
        %v1300 = vunpack.c.l.b16 %v486
        %v1301 = vunpack.c.h.b16 %v486
        %v1302 = vunpack.c.l.b16 %v487
        %v1303 = vunpack.c.h.b16 %v487
        %v1304 = vunpack.c.l.b16 %v488
        %v1305 = vunpack.c.h.b16 %v488
        %v1306 = vunpack.c.l.b16 %v489
        %v1307 = vunpack.c.h.b16 %v489
        %v1308 = vunpack.c.l.b16 %v490
        %v1309 = vunpack.c.h.b16 %v490
        %v1310 = vunpack.c.l.b16 %v491
        %v1311 = vunpack.c.h.b16 %v491
        %v1312 = vunpack.c.l.b16 %v492
        %v1313 = vunpack.c.h.b16 %v492
        %v1314 = vunpack.c.l.b16 %v493
        %v1315 = vunpack.c.h.b16 %v493
        %v1316 = vunpack.c.l.b16 %v494
        %v1317 = vunpack.c.h.b16 %v494
        %v1318 = vunpack.c.l.b16 %v495
        %v1319 = vunpack.c.h.b16 %v495
        %v1320 = vunpack.c.l.b16 %v496
        %v1321 = vunpack.c.h.b16 %v496
        %v1322 = vunpack.c.l.b16 %v497
        %v1323 = vunpack.c.h.b16 %v497
        %v1324 = vpack.c.b16 %v816, %v812
        %v1325 = vpack.c.b16 %v817, %v813
        %v1326 = vpack.c.b16 %v818, %v814
        %v1327 = vpack.c.b16 %v819, %v815
        %v1328 = vpack.c.b16 %v824, %v820
        %v1329 = vpack.c.b16 %v825, %v821
        %v1330 = vpack.c.b16 %v826, %v822
        %v1331 = vpack.c.b16 %v827, %v823
        %v1332 = vpack.c.b16 %v832, %v828
        %v1333 = vpack.c.b16 %v833, %v829
        %v1334 = vpack.c.b16 %v834, %v830
        %v1335 = vpack.c.b16 %v835, %v831
        %v1336 = vpack.c.b16 %v840, %v836
        %v1337 = vpack.c.b16 %v841, %v837
        %v1338 = vpack.c.b16 %v842, %v838
        %v1339 = vpack.c.b16 %v843, %v839
        %v1340 = vpack.c.b16 %v848, %v844
        %v1341 = vpack.c.b16 %v849, %v845
        %v1342 = vpack.c.b16 %v850, %v846
        %v1343 = vpack.c.b16 %v851, %v847
        %v1344 = vpack.c.b16 %v856, %v852
        %v1345 = vpack.c.b16 %v857, %v853
        %v1346 = vpack.c.b16 %v858, %v854
        %v1347 = vpack.c.b16 %v859, %v855
        %v1348 = vpack.c.b16 %v864, %v860
        %v1349 = vpack.c.b16 %v865, %v861
        %v1350 = vpack.c.b16 %v866, %v862
        %v1351 = vpack.c.b16 %v867, %v863
        %v1352 = vpack.c.b16 %v872, %v868
        %v1353 = vpack.c.b16 %v873, %v869
        %v1354 = vpack.c.b16 %v874, %v870
        %v1355 = vpack.c.b16 %v875, %v871
        %v1356 = vpack.c.b16 %v880, %v876
        %v1357 = vpack.c.b16 %v881, %v877
        %v1358 = vpack.c.b16 %v882, %v878
        %v1359 = vpack.c.b16 %v883, %v879
        %v1360 = vpack.c.b16 %v888, %v884
        %v1361 = vpack.c.b16 %v889, %v885
        %v1362 = vpack.c.b16 %v890, %v886
        %v1363 = vpack.c.b16 %v891, %v887
        %v1364 = vpack.c.b16 %v896, %v892
        %v1365 = vpack.c.b16 %v897, %v893
        %v1366 = vpack.c.b16 %v898, %v894
        %v1367 = vpack.c.b16 %v899, %v895
        %v1368 = vpack.c.b16 %v904, %v900
        %v1369 = vpack.c.b16 %v905, %v901
        %v1370 = vpack.c.b16 %v906, %v902
        %v1371 = vpack.c.b16 %v907, %v903
        %v1372 = vpack.c.b16 %v912, %v908
        %v1373 = vpack.c.b16 %v913, %v909
        %v1374 = vpack.c.b16 %v914, %v910
        %v1375 = vpack.c.b16 %v915, %v911
        %v1376 = vpack.c.b16 %v920, %v916
        %v1377 = vpack.c.b16 %v921, %v917
        %v1378 = vpack.c.b16 %v922, %v918
        %v1379 = vpack.c.b16 %v923, %v919
        %v1380 = vpack.c.b16 %v928, %v924
        %v1381 = vpack.c.b16 %v929, %v925
        %v1382 = vpack.c.b16 %v930, %v926
        %v1383 = vpack.c.b16 %v931, %v927
        %v1384 = vpack.c.b16 %v936, %v932
        %v1385 = vpack.c.b16 %v937, %v933
        %v1386 = vpack.c.b16 %v938, %v934
        %v1387 = vpack.c.b16 %v939, %v935
        %v1388 = vpack.c.b16 %v944, %v940
        %v1389 = vpack.c.b16 %v945, %v941
        %v1390 = vpack.c.b16 %v946, %v942
        %v1391 = vpack.c.b16 %v947, %v943
        %v1392 = vpack.c.b16 %v952, %v948
        %v1393 = vpack.c.b16 %v953, %v949
        %v1394 = vpack.c.b16 %v954, %v950
        %v1395 = vpack.c.b16 %v955, %v951
        %v1396 = vpack.c.b16 %v960, %v956
        %v1397 = vpack.c.b16 %v961, %v957
        %v1398 = vpack.c.b16 %v962, %v958
        %v1399 = vpack.c.b16 %v963, %v959
        %v1400 = vpack.c.b16 %v968, %v964
        %v1401 = vpack.c.b16 %v969, %v965
        %v1402 = vpack.c.b16 %v970, %v966
        %v1403 = vpack.c.b16 %v971, %v967
        %v1404 = vpack.c.b16 %v976, %v972
        %v1405 = vpack.c.b16 %v977, %v973
        %v1406 = vpack.c.b16 %v978, %v974
        %v1407 = vpack.c.b16 %v979, %v975
        %v1408 = vpack.c.b16 %v984, %v980
        %v1409 = vpack.c.b16 %v985, %v981
        %v1410 = vpack.c.b16 %v986, %v982
        %v1411 = vpack.c.b16 %v987, %v983
        %v1412 = vpack.c.b16 %v992, %v988
        %v1413 = vpack.c.b16 %v993, %v989
        %v1414 = vpack.c.b16 %v994, %v990
        %v1415 = vpack.c.b16 %v995, %v991
        %v1416 = vpack.c.b16 %v1000, %v996
        %v1417 = vpack.c.b16 %v1001, %v997
        %v1418 = vpack.c.b16 %v1002, %v998
        %v1419 = vpack.c.b16 %v1003, %v999
        %v1420 = vpack.c.b16 %v1008, %v1004
        %v1421 = vpack.c.b16 %v1009, %v1005
        %v1422 = vpack.c.b16 %v1010, %v1006
        %v1423 = vpack.c.b16 %v1011, %v1007
        %v1424 = vpack.c.b16 %v1016, %v1012
        %v1425 = vpack.c.b16 %v1017, %v1013
        %v1426 = vpack.c.b16 %v1018, %v1014
        %v1427 = vpack.c.b16 %v1019, %v1015
        %v1428 = vpack.c.b16 %v1024, %v1020
        %v1429 = vpack.c.b16 %v1025, %v1021
        %v1430 = vpack.c.b16 %v1026, %v1022
        %v1431 = vpack.c.b16 %v1027, %v1023
        %v1432 = vpack.c.b16 %v1032, %v1028
        %v1433 = vpack.c.b16 %v1033, %v1029
        %v1434 = vpack.c.b16 %v1034, %v1030
        %v1435 = vpack.c.b16 %v1035, %v1031
        %v1436 = vpack.c.b16 %v1040, %v1036
        %v1437 = vpack.c.b16 %v1041, %v1037
        %v1438 = vpack.c.b16 %v1042, %v1038
        %v1439 = vpack.c.b16 %v1043, %v1039
        %v1440 = vpack.c.b16 %v1048, %v1044
        %v1441 = vpack.c.b16 %v1049, %v1045
        %v1442 = vpack.c.b16 %v1050, %v1046
        %v1443 = vpack.c.b16 %v1051, %v1047
        %v1444 = vpack.c.b16 %v1056, %v1052
        %v1445 = vpack.c.b16 %v1057, %v1053
        %v1446 = vpack.c.b16 %v1058, %v1054
        %v1447 = vpack.c.b16 %v1059, %v1055
        %v1448 = vpack.c.b16 %v1064, %v1060
        %v1449 = vpack.c.b16 %v1065, %v1061
        %v1450 = vpack.c.b16 %v1066, %v1062
        %v1451 = vpack.c.b16 %v1067, %v1063
        %v1452 = vpack.c.b16 %v1072, %v1068
        %v1453 = vpack.c.b16 %v1073, %v1069
        %v1454 = vpack.c.b16 %v1074, %v1070
        %v1455 = vpack.c.b16 %v1075, %v1071
        %v1456 = vpack.c.b16 %v1080, %v1076
        %v1457 = vpack.c.b16 %v1081, %v1077
        %v1458 = vpack.c.b16 %v1082, %v1078
        %v1459 = vpack.c.b16 %v1083, %v1079
        %v1460 = vpack.c.b16 %v1088, %v1084
        %v1461 = vpack.c.b16 %v1089, %v1085
        %v1462 = vpack.c.b16 %v1090, %v1086
        %v1463 = vpack.c.b16 %v1091, %v1087
        %v1464 = vpack.c.b16 %v1096, %v1092
        %v1465 = vpack.c.b16 %v1097, %v1093
        %v1466 = vpack.c.b16 %v1098, %v1094
        %v1467 = vpack.c.b16 %v1099, %v1095
        %v1468 = vpack.c.b16 %v1104, %v1100
        %v1469 = vpack.c.b16 %v1105, %v1101
        %v1470 = vpack.c.b16 %v1106, %v1102
        %v1471 = vpack.c.b16 %v1107, %v1103
        %v1472 = vpack.c.b16 %v1112, %v1108
        %v1473 = vpack.c.b16 %v1113, %v1109
        %v1474 = vpack.c.b16 %v1114, %v1110
        %v1475 = vpack.c.b16 %v1115, %v1111
        %v1476 = vpack.c.b16 %v1120, %v1116
        %v1477 = vpack.c.b16 %v1121, %v1117
        %v1478 = vpack.c.b16 %v1122, %v1118
        %v1479 = vpack.c.b16 %v1123, %v1119
        %v1480 = vpack.c.b16 %v1128, %v1124
        %v1481 = vpack.c.b16 %v1129, %v1125
        %v1482 = vpack.c.b16 %v1130, %v1126
        %v1483 = vpack.c.b16 %v1131, %v1127
        %v1484 = vpack.c.b16 %v1136, %v1132
        %v1485 = vpack.c.b16 %v1137, %v1133
        %v1486 = vpack.c.b16 %v1138, %v1134
        %v1487 = vpack.c.b16 %v1139, %v1135
        %v1488 = vpack.c.b16 %v1144, %v1140
        %v1489 = vpack.c.b16 %v1145, %v1141
        %v1490 = vpack.c.b16 %v1146, %v1142
        %v1491 = vpack.c.b16 %v1147, %v1143
        %v1492 = vpack.c.b16 %v1152, %v1148
        %v1493 = vpack.c.b16 %v1153, %v1149
        %v1494 = vpack.c.b16 %v1154, %v1150
        %v1495 = vpack.c.b16 %v1155, %v1151
        %v1496 = vpack.c.b16 %v1160, %v1156
        %v1497 = vpack.c.b16 %v1161, %v1157
        %v1498 = vpack.c.b16 %v1162, %v1158
        %v1499 = vpack.c.b16 %v1163, %v1159
        %v1500 = vpack.c.b16 %v1168, %v1164
        %v1501 = vpack.c.b16 %v1169, %v1165
        %v1502 = vpack.c.b16 %v1170, %v1166
        %v1503 = vpack.c.b16 %v1171, %v1167
        %v1504 = vpack.c.b16 %v1176, %v1172
        %v1505 = vpack.c.b16 %v1177, %v1173
        %v1506 = vpack.c.b16 %v1178, %v1174
        %v1507 = vpack.c.b16 %v1179, %v1175
        %v1508 = vpack.c.b16 %v1184, %v1180
        %v1509 = vpack.c.b16 %v1185, %v1181
        %v1510 = vpack.c.b16 %v1186, %v1182
        %v1511 = vpack.c.b16 %v1187, %v1183
        %v1512 = vpack.c.b16 %v1192, %v1188
        %v1513 = vpack.c.b16 %v1193, %v1189
        %v1514 = vpack.c.b16 %v1194, %v1190
        %v1515 = vpack.c.b16 %v1195, %v1191
        %v1516 = vpack.c.b16 %v1200, %v1196
        %v1517 = vpack.c.b16 %v1201, %v1197
        %v1518 = vpack.c.b16 %v1202, %v1198
        %v1519 = vpack.c.b16 %v1203, %v1199
        %v1520 = vpack.c.b16 %v1208, %v1204
        %v1521 = vpack.c.b16 %v1209, %v1205
        %v1522 = vpack.c.b16 %v1210, %v1206
        %v1523 = vpack.c.b16 %v1211, %v1207
        %v1524 = vpack.c.b16 %v1216, %v1212
        %v1525 = vpack.c.b16 %v1217, %v1213
        %v1526 = vpack.c.b16 %v1218, %v1214
        %v1527 = vpack.c.b16 %v1219, %v1215
        %v1528 = vpack.c.b16 %v1224, %v1220
        %v1529 = vpack.c.b16 %v1225, %v1221
        %v1530 = vpack.c.b16 %v1226, %v1222
        %v1531 = vpack.c.b16 %v1227, %v1223
        %v1532 = vpack.c.b16 %v1232, %v1228
        %v1533 = vpack.c.b16 %v1233, %v1229
        %v1534 = vpack.c.b16 %v1234, %v1230
        %v1535 = vpack.c.b16 %v1235, %v1231
        %v1536 = vpack.c.b16 %v1240, %v1236
        %v1537 = vpack.c.b16 %v1241, %v1237
        %v1538 = vpack.c.b16 %v1242, %v1238
        %v1539 = vpack.c.b16 %v1243, %v1239
        %v1540 = vpack.c.b16 %v1248, %v1244
        %v1541 = vpack.c.b16 %v1249, %v1245
        %v1542 = vpack.c.b16 %v1250, %v1246
        %v1543 = vpack.c.b16 %v1251, %v1247
        %v1544 = vpack.c.b16 %v1256, %v1252
        %v1545 = vpack.c.b16 %v1257, %v1253
        %v1546 = vpack.c.b16 %v1258, %v1254
        %v1547 = vpack.c.b16 %v1259, %v1255
        %v1548 = vpack.c.b16 %v1264, %v1260
        %v1549 = vpack.c.b16 %v1265, %v1261
        %v1550 = vpack.c.b16 %v1266, %v1262
        %v1551 = vpack.c.b16 %v1267, %v1263
        %v1552 = vpack.c.b16 %v1272, %v1268
        %v1553 = vpack.c.b16 %v1273, %v1269
        %v1554 = vpack.c.b16 %v1274, %v1270
        %v1555 = vpack.c.b16 %v1275, %v1271
        %v1556 = vpack.c.b16 %v1280, %v1276
        %v1557 = vpack.c.b16 %v1281, %v1277
        %v1558 = vpack.c.b16 %v1282, %v1278
        %v1559 = vpack.c.b16 %v1283, %v1279
        %v1560 = vpack.c.b16 %v1288, %v1284
        %v1561 = vpack.c.b16 %v1289, %v1285
        %v1562 = vpack.c.b16 %v1290, %v1286
        %v1563 = vpack.c.b16 %v1291, %v1287
        %v1564 = vpack.c.b16 %v1296, %v1292
        %v1565 = vpack.c.b16 %v1297, %v1293
        %v1566 = vpack.c.b16 %v1298, %v1294
        %v1567 = vpack.c.b16 %v1299, %v1295
        %v1568 = vpack.c.b16 %v1304, %v1300
        %v1569 = vpack.c.b16 %v1305, %v1301
        %v1570 = vpack.c.b16 %v1306, %v1302
        %v1571 = vpack.c.b16 %v1307, %v1303
        %v1572 = vpack.c.b16 %v1312, %v1308
        %v1573 = vpack.c.b16 %v1313, %v1309
        %v1574 = vpack.c.b16 %v1314, %v1310
        %v1575 = vpack.c.b16 %v1315, %v1311
        %v1576 = vpack.c.b16 %v1320, %v1316
        %v1577 = vpack.c.b16 %v1321, %v1317
        %v1578 = vpack.c.b16 %v1322, %v1318
        %v1579 = vpack.c.b16 %v1323, %v1319
        %1836 = vmatprep.subr.bf16.mxu0 %v1325
        %1837 = vmatpush1.bf16.msra.mxu0 %v1324
        %1838 = vmatprep.subr.bf16.mxu0 %v1329
        %1839 = vmatpush1.bf16.msra.mxu0 %v1328
        %1840 = vmatprep.subr.bf16.mxu0 %v1333
        %1841 = vmatpush1.bf16.msra.mxu0 %v1332
        %1842 = vmatprep.subr.bf16.mxu0 %v1337
        %1843 = vmatpush1.bf16.msra.mxu0 %v1336
        %1844 = vmatprep.subr.bf16.mxu0 %v1341
        %1845 = vmatpush1.bf16.msra.mxu0 %v1340
        %1846 = vmatprep.subr.bf16.mxu0 %v1345
        %1847 = vmatpush1.bf16.msra.mxu0 %v1344
        %1848 = vmatprep.subr.bf16.mxu0 %v1349
        %1849 = vmatpush1.bf16.msra.mxu0 %v1348
        %1850 = vmatprep.subr.bf16.mxu0 %v1353
        %1851 = vmatpush1.bf16.msra.mxu0 %v1352
        %1852 = vmatprep.subr.bf16.mxu0 %v1357
        %1853 = vmatpush1.bf16.msra.mxu0 %v1356
        %1854 = vmatprep.subr.bf16.mxu0 %v1361
        %1855 = vmatpush1.bf16.msra.mxu0 %v1360
        %1856 = vmatprep.subr.bf16.mxu0 %v1365
        %1857 = vmatpush1.bf16.msra.mxu0 %v1364
        %1858 = vmatprep.subr.bf16.mxu0 %v1369
        %1859 = vmatpush1.bf16.msra.mxu0 %v1368
        %1860 = vmatprep.subr.bf16.mxu0 %v1373
        %1861 = vmatpush1.bf16.msra.mxu0 %v1372
        %1862 = vmatprep.subr.bf16.mxu0 %v1377
        %1863 = vmatpush1.bf16.msra.mxu0 %v1376
        %1864 = vmatprep.subr.bf16.mxu0 %v1381
        %1865 = vmatpush1.bf16.msra.mxu0 %v1380
        %1866 = vmatprep.subr.bf16.mxu0 %v1385
        %1867 = vmatpush1.bf16.msra.mxu0 %v1384
        %1868 = vmatprep.mubr.bf16.mxu0 %v536
        %1869 = vmatmul.mubr.bf16.gmra.mrb[0].mxu0 %v522
        %v1870 = vpop.f32.mrb[0].mxu0
        %v1871 = vadd.f32 0.0, %v1870
        %v1872 = vpop.f32.mrb[0].mxu0
        %v1873 = vadd.f32 0.0, %v1872
        %v1874 = vpop.f32.mrb[0].mxu0
        %v1875 = vpop.f32.mrb[0].mxu0
        %1876 = vdwg.mxu0
        %1877 = vmatprep.subr.bf16.mxu0 %v1389
        %1878 = vmatpush1.bf16.msra.mxu0 %v1388
        %1879 = vmatprep.subr.bf16.mxu0 %v1393
        %1880 = vmatpush1.bf16.msra.mxu0 %v1392
        %1881 = vmatprep.subr.bf16.mxu0 %v1397
        %1882 = vmatpush1.bf16.msra.mxu0 %v1396
        %1883 = vmatprep.subr.bf16.mxu0 %v1401
        %1884 = vmatpush1.bf16.msra.mxu0 %v1400
        %1885 = vmatprep.subr.bf16.mxu0 %v1405
        %1886 = vmatpush1.bf16.msra.mxu0 %v1404
        %1887 = vmatprep.subr.bf16.mxu0 %v1409
        %1888 = vmatpush1.bf16.msra.mxu0 %v1408
        %1889 = vmatprep.subr.bf16.mxu0 %v1413
        %1890 = vmatpush1.bf16.msra.mxu0 %v1412
        %1891 = vmatprep.subr.bf16.mxu0 %v1417
        %1892 = vmatpush1.bf16.msra.mxu0 %v1416
        %1893 = vmatprep.subr.bf16.mxu0 %v1421
        %1894 = vmatpush1.bf16.msra.mxu0 %v1420
        %1895 = vmatprep.subr.bf16.mxu0 %v1425
        %1896 = vmatpush1.bf16.msra.mxu0 %v1424
        %1897 = vmatprep.subr.bf16.mxu0 %v1429
        %1898 = vmatpush1.bf16.msra.mxu0 %v1428
        %1899 = vmatprep.subr.bf16.mxu0 %v1433
        %1900 = vmatpush1.bf16.msra.mxu0 %v1432
        %1901 = vmatprep.subr.bf16.mxu0 %v1437
        %1902 = vmatpush1.bf16.msra.mxu0 %v1436
        %1903 = vmatprep.subr.bf16.mxu0 %v1441
        %1904 = vmatpush1.bf16.msra.mxu0 %v1440
        %1905 = vmatprep.subr.bf16.mxu0 %v1445
        %1906 = vmatpush1.bf16.msra.mxu0 %v1444
        %1907 = vmatprep.subr.bf16.mxu0 %v1449
        %1908 = vmatpush1.bf16.msra.mxu0 %v1448
        %1909 = vmatprep.mubr.bf16.mxu0 %v546
        %1910 = vmatmul.mubr.bf16.gmra.mrb[0].mxu0 %v544
        %v1911 = vpop.f32.mrb[0].mxu0
        %v1912 = vadd.f32 %v1871, %v1911
        %v1913 = vpop.f32.mrb[0].mxu0
        %v1914 = vadd.f32 %v1873, %v1913
        %v1915 = vpop.f32.mrb[0].mxu0
        %v1916 = vpop.f32.mrb[0].mxu0
        %1917 = vdwg.mxu0
        %1918 = vmatprep.subr.bf16.mxu0 %v1453
        %1919 = vmatpush1.bf16.msra.mxu0 %v1452
        %1920 = vmatprep.subr.bf16.mxu0 %v1457
        %1921 = vmatpush1.bf16.msra.mxu0 %v1456
        %1922 = vmatprep.subr.bf16.mxu0 %v1461
        %1923 = vmatpush1.bf16.msra.mxu0 %v1460
        %1924 = vmatprep.subr.bf16.mxu0 %v1465
        %1925 = vmatpush1.bf16.msra.mxu0 %v1464
        %1926 = vmatprep.subr.bf16.mxu0 %v1469
        %1927 = vmatpush1.bf16.msra.mxu0 %v1468
        %1928 = vmatprep.subr.bf16.mxu0 %v1473
        %1929 = vmatpush1.bf16.msra.mxu0 %v1472
        %1930 = vmatprep.subr.bf16.mxu0 %v1477
        %1931 = vmatpush1.bf16.msra.mxu0 %v1476
        %1932 = vmatprep.subr.bf16.mxu0 %v1481
        %1933 = vmatpush1.bf16.msra.mxu0 %v1480
        %1934 = vmatprep.subr.bf16.mxu0 %v1485
        %1935 = vmatpush1.bf16.msra.mxu0 %v1484
        %1936 = vmatprep.subr.bf16.mxu0 %v1489
        %1937 = vmatpush1.bf16.msra.mxu0 %v1488
        %1938 = vmatprep.subr.bf16.mxu0 %v1493
        %1939 = vmatpush1.bf16.msra.mxu0 %v1492
        %1940 = vmatprep.subr.bf16.mxu0 %v1497
        %1941 = vmatpush1.bf16.msra.mxu0 %v1496
        %1942 = vmatprep.subr.bf16.mxu0 %v1501
        %1943 = vmatpush1.bf16.msra.mxu0 %v1500
        %1944 = vmatprep.subr.bf16.mxu0 %v1505
        %1945 = vmatpush1.bf16.msra.mxu0 %v1504
        %1946 = vmatprep.subr.bf16.mxu0 %v1509
        %1947 = vmatpush1.bf16.msra.mxu0 %v1508
        %1948 = vmatprep.subr.bf16.mxu0 %v1513
        %1949 = vmatpush1.bf16.msra.mxu0 %v1512
        %1950 = vmatprep.mubr.bf16.mxu0 %v543
        %1951 = vmatmul.mubr.bf16.gmra.mrb[0].mxu0 %v529
        %v1952 = vpop.f32.mrb[0].mxu0
        %v1953 = vadd.f32 %v1912, %v1952
        %v1954 = vpop.f32.mrb[0].mxu0
        %v1955 = vadd.f32 %v1914, %v1954
        %v1956 = vpop.f32.mrb[0].mxu0
        %v1957 = vpop.f32.mrb[0].mxu0
        %1958 = vdwg.mxu0
        %1959 = vmatprep.subr.bf16.mxu0 %v1517
        %1960 = vmatpush1.bf16.msra.mxu0 %v1516
        %1961 = vmatprep.subr.bf16.mxu0 %v1521
        %1962 = vmatpush1.bf16.msra.mxu0 %v1520
        %1963 = vmatprep.subr.bf16.mxu0 %v1525
        %1964 = vmatpush1.bf16.msra.mxu0 %v1524
        %1965 = vmatprep.subr.bf16.mxu0 %v1529
        %1966 = vmatpush1.bf16.msra.mxu0 %v1528
        %1967 = vmatprep.subr.bf16.mxu0 %v1533
        %1968 = vmatpush1.bf16.msra.mxu0 %v1532
        %1969 = vmatprep.subr.bf16.mxu0 %v1537
        %1970 = vmatpush1.bf16.msra.mxu0 %v1536
        %1971 = vmatprep.subr.bf16.mxu0 %v1541
        %1972 = vmatpush1.bf16.msra.mxu0 %v1540
        %1973 = vmatprep.subr.bf16.mxu0 %v1545
        %1974 = vmatpush1.bf16.msra.mxu0 %v1544
        %1975 = vmatprep.subr.bf16.mxu0 %v1549
        %1976 = vmatpush1.bf16.msra.mxu0 %v1548
        %1977 = vmatprep.subr.bf16.mxu0 %v1553
        %1978 = vmatpush1.bf16.msra.mxu0 %v1552
        %1979 = vmatprep.subr.bf16.mxu0 %v1557
        %1980 = vmatpush1.bf16.msra.mxu0 %v1556
        %1981 = vmatprep.subr.bf16.mxu0 %v1561
        %1982 = vmatpush1.bf16.msra.mxu0 %v1560
        %1983 = vmatprep.subr.bf16.mxu0 %v1565
        %1984 = vmatpush1.bf16.msra.mxu0 %v1564
        %1985 = vmatprep.subr.bf16.mxu0 %v1569
        %1986 = vmatpush1.bf16.msra.mxu0 %v1568
        %1987 = vmatprep.subr.bf16.mxu0 %v1573
        %1988 = vmatpush1.bf16.msra.mxu0 %v1572
        %1989 = vmatprep.subr.bf16.mxu0 %v1577
        %1990 = vmatpush1.bf16.msra.mxu0 %v1576
        %1991 = vmatprep.mubr.bf16.mxu0 %v547
        %1992 = vmatmul.mubr.bf16.gmra.mrb[0].mxu0 %v545
        %v1993 = vpop.f32.mrb[0].mxu0
        %v1994 = vadd.f32 %v1953, %v1993
        %v1995 = vpop.f32.mrb[0].mxu0
        %v1996 = vadd.f32 %v1955, %v1995
        %v1997 = vpop.f32.mrb[0].mxu0
        %v1998 = vpop.f32.mrb[0].mxu0
        %1999 = vdwg.mxu0
        %2000 = vmatprep.subr.bf16.mxu0 %v1327
        %2001 = vmatpush1.bf16.msra.mxu0 %v1326
        %2002 = vmatprep.subr.bf16.mxu0 %v1331
        %2003 = vmatpush1.bf16.msra.mxu0 %v1330
        %2004 = vmatprep.subr.bf16.mxu0 %v1335
        %2005 = vmatpush1.bf16.msra.mxu0 %v1334
        %2006 = vmatprep.subr.bf16.mxu0 %v1339
        %2007 = vmatpush1.bf16.msra.mxu0 %v1338
        %2008 = vmatprep.subr.bf16.mxu0 %v1343
        %2009 = vmatpush1.bf16.msra.mxu0 %v1342
        %2010 = vmatprep.subr.bf16.mxu0 %v1347
        %2011 = vmatpush1.bf16.msra.mxu0 %v1346
        %2012 = vmatprep.subr.bf16.mxu0 %v1351
        %2013 = vmatpush1.bf16.msra.mxu0 %v1350
        %2014 = vmatprep.subr.bf16.mxu0 %v1355
        %2015 = vmatpush1.bf16.msra.mxu0 %v1354
        %2016 = vmatprep.subr.bf16.mxu0 %v1359
        %2017 = vmatpush1.bf16.msra.mxu0 %v1358
        %2018 = vmatprep.subr.bf16.mxu0 %v1363
        %2019 = vmatpush1.bf16.msra.mxu0 %v1362
        %2020 = vmatprep.subr.bf16.mxu0 %v1367
        %2021 = vmatpush1.bf16.msra.mxu0 %v1366
        %2022 = vmatprep.subr.bf16.mxu0 %v1371
        %2023 = vmatpush1.bf16.msra.mxu0 %v1370
        %2024 = vmatprep.subr.bf16.mxu0 %v1375
        %2025 = vmatpush1.bf16.msra.mxu0 %v1374
        %2026 = vmatprep.subr.bf16.mxu0 %v1379
        %2027 = vmatpush1.bf16.msra.mxu0 %v1378
        %2028 = vmatprep.subr.bf16.mxu0 %v1383
        %2029 = vmatpush1.bf16.msra.mxu0 %v1382
        %2030 = vmatprep.subr.bf16.mxu0 %v1387
        %2031 = vmatpush1.bf16.msra.mxu0 %v1386
        %2032 = vmatprep.mubr.bf16.mxu0 %v536
        %2033 = vmatmul.mubr.bf16.gmra.mrb[0].mxu0 %v522
        %v2034 = vpop.f32.mrb[0].mxu0
        %v2035 = vadd.f32 0.0, %v2034
        %v2036 = vpop.f32.mrb[0].mxu0
        %v2037 = vadd.f32 0.0, %v2036
        %v2038 = vpop.f32.mrb[0].mxu0
        %v2039 = vpop.f32.mrb[0].mxu0
        %2040 = vdwg.mxu0
        %2041 = vmatprep.subr.bf16.mxu0 %v1391
        %2042 = vmatpush1.bf16.msra.mxu0 %v1390
        %2043 = vmatprep.subr.bf16.mxu0 %v1395
        %2044 = vmatpush1.bf16.msra.mxu0 %v1394
        %2045 = vmatprep.subr.bf16.mxu0 %v1399
        %2046 = vmatpush1.bf16.msra.mxu0 %v1398
        %2047 = vmatprep.subr.bf16.mxu0 %v1403
        %2048 = vmatpush1.bf16.msra.mxu0 %v1402
        %2049 = vmatprep.subr.bf16.mxu0 %v1407
        %2050 = vmatpush1.bf16.msra.mxu0 %v1406
        %2051 = vmatprep.subr.bf16.mxu0 %v1411
        %2052 = vmatpush1.bf16.msra.mxu0 %v1410
        %2053 = vmatprep.subr.bf16.mxu0 %v1415
        %2054 = vmatpush1.bf16.msra.mxu0 %v1414
        %2055 = vmatprep.subr.bf16.mxu0 %v1419
        %2056 = vmatpush1.bf16.msra.mxu0 %v1418
        %2057 = vmatprep.subr.bf16.mxu0 %v1423
        %2058 = vmatpush1.bf16.msra.mxu0 %v1422
        %2059 = vmatprep.subr.bf16.mxu0 %v1427
        %2060 = vmatpush1.bf16.msra.mxu0 %v1426
        %2061 = vmatprep.subr.bf16.mxu0 %v1431
        %2062 = vmatpush1.bf16.msra.mxu0 %v1430
        %2063 = vmatprep.subr.bf16.mxu0 %v1435
        %2064 = vmatpush1.bf16.msra.mxu0 %v1434
        %2065 = vmatprep.subr.bf16.mxu0 %v1439
        %2066 = vmatpush1.bf16.msra.mxu0 %v1438
        %2067 = vmatprep.subr.bf16.mxu0 %v1443
        %2068 = vmatpush1.bf16.msra.mxu0 %v1442
        %2069 = vmatprep.subr.bf16.mxu0 %v1447
        %2070 = vmatpush1.bf16.msra.mxu0 %v1446
        %2071 = vmatprep.subr.bf16.mxu0 %v1451
        %2072 = vmatpush1.bf16.msra.mxu0 %v1450
        %2073 = vmatprep.mubr.bf16.mxu0 %v546
        %2074 = vmatmul.mubr.bf16.gmra.mrb[0].mxu0 %v544
        %v2075 = vpop.f32.mrb[0].mxu0
        %v2076 = vadd.f32 %v2035, %v2075
        %v2077 = vpop.f32.mrb[0].mxu0
        %v2078 = vadd.f32 %v2037, %v2077
        %v2079 = vpop.f32.mrb[0].mxu0
        %v2080 = vpop.f32.mrb[0].mxu0
        %2081 = vdwg.mxu0
        %2082 = vmatprep.subr.bf16.mxu0 %v1455
        %2083 = vmatpush1.bf16.msra.mxu0 %v1454
        %2084 = vmatprep.subr.bf16.mxu0 %v1459
        %2085 = vmatpush1.bf16.msra.mxu0 %v1458
        %2086 = vmatprep.subr.bf16.mxu0 %v1463
        %2087 = vmatpush1.bf16.msra.mxu0 %v1462
        %2088 = vmatprep.subr.bf16.mxu0 %v1467
        %2089 = vmatpush1.bf16.msra.mxu0 %v1466
        %2090 = vmatprep.subr.bf16.mxu0 %v1471
        %2091 = vmatpush1.bf16.msra.mxu0 %v1470
        %2092 = vmatprep.subr.bf16.mxu0 %v1475
        %2093 = vmatpush1.bf16.msra.mxu0 %v1474
        %2094 = vmatprep.subr.bf16.mxu0 %v1479
        %2095 = vmatpush1.bf16.msra.mxu0 %v1478
        %2096 = vmatprep.subr.bf16.mxu0 %v1483
        %2097 = vmatpush1.bf16.msra.mxu0 %v1482
        %2098 = vmatprep.subr.bf16.mxu0 %v1487
        %2099 = vmatpush1.bf16.msra.mxu0 %v1486
        %2100 = vmatprep.subr.bf16.mxu0 %v1491
        %2101 = vmatpush1.bf16.msra.mxu0 %v1490
        %2102 = vmatprep.subr.bf16.mxu0 %v1495
        %2103 = vmatpush1.bf16.msra.mxu0 %v1494
        %2104 = vmatprep.subr.bf16.mxu0 %v1499
        %2105 = vmatpush1.bf16.msra.mxu0 %v1498
        %2106 = vmatprep.subr.bf16.mxu0 %v1503
        %2107 = vmatpush1.bf16.msra.mxu0 %v1502
        %2108 = vmatprep.subr.bf16.mxu0 %v1507
        %2109 = vmatpush1.bf16.msra.mxu0 %v1506
        %2110 = vmatprep.subr.bf16.mxu0 %v1511
        %2111 = vmatpush1.bf16.msra.mxu0 %v1510
        %2112 = vmatprep.subr.bf16.mxu0 %v1515
        %2113 = vmatpush1.bf16.msra.mxu0 %v1514
        %2114 = vmatprep.mubr.bf16.mxu0 %v543
        %2115 = vmatmul.mubr.bf16.gmra.mrb[0].mxu0 %v529
        %v2116 = vpop.f32.mrb[0].mxu0
        %v2117 = vadd.f32 %v2076, %v2116
        %v2118 = vpop.f32.mrb[0].mxu0
        %v2119 = vadd.f32 %v2078, %v2118
        %v2120 = vpop.f32.mrb[0].mxu0
        %v2121 = vpop.f32.mrb[0].mxu0
        %2122 = vdwg.mxu0
        %2123 = vmatprep.subr.bf16.mxu0 %v1519
        %2124 = vmatpush1.bf16.msra.mxu0 %v1518
        %2125 = vmatprep.subr.bf16.mxu0 %v1523
        %2126 = vmatpush1.bf16.msra.mxu0 %v1522
        %2127 = vmatprep.subr.bf16.mxu0 %v1527
        %2128 = vmatpush1.bf16.msra.mxu0 %v1526
        %2129 = vmatprep.subr.bf16.mxu0 %v1531
        %2130 = vmatpush1.bf16.msra.mxu0 %v1530
        %2131 = vmatprep.subr.bf16.mxu0 %v1535
        %2132 = vmatpush1.bf16.msra.mxu0 %v1534
        %2133 = vmatprep.subr.bf16.mxu0 %v1539
        %2134 = vmatpush1.bf16.msra.mxu0 %v1538
        %2135 = vmatprep.subr.bf16.mxu0 %v1543
        %2136 = vmatpush1.bf16.msra.mxu0 %v1542
        %2137 = vmatprep.subr.bf16.mxu0 %v1547
        %2138 = vmatpush1.bf16.msra.mxu0 %v1546
        %2139 = vmatprep.subr.bf16.mxu0 %v1551
        %2140 = vmatpush1.bf16.msra.mxu0 %v1550
        %2141 = vmatprep.subr.bf16.mxu0 %v1555
        %2142 = vmatpush1.bf16.msra.mxu0 %v1554
        %2143 = vmatprep.subr.bf16.mxu0 %v1559
        %2144 = vmatpush1.bf16.msra.mxu0 %v1558
        %2145 = vmatprep.subr.bf16.mxu0 %v1563
        %2146 = vmatpush1.bf16.msra.mxu0 %v1562
        %2147 = vmatprep.subr.bf16.mxu0 %v1567
        %2148 = vmatpush1.bf16.msra.mxu0 %v1566
        %2149 = vmatprep.subr.bf16.mxu0 %v1571
        %2150 = vmatpush1.bf16.msra.mxu0 %v1570
        %2151 = vmatprep.subr.bf16.mxu0 %v1575
        %2152 = vmatpush1.bf16.msra.mxu0 %v1574
        %2153 = vmatprep.subr.bf16.mxu0 %v1579
        %2154 = vmatpush1.bf16.msra.mxu0 %v1578
        %2155 = vmatprep.mubr.bf16.mxu0 %v547
        %2156 = vmatmul.mubr.bf16.gmra.mrb[0].mxu0 %v545
        %v2157 = vpop.f32.mrb[0].mxu0
        %v2158 = vadd.f32 %v2117, %v2157
        %v2159 = vpop.f32.mrb[0].mxu0
        %v2160 = vadd.f32 %v2119, %v2159
        %v2161 = vpop.f32.mrb[0].mxu0
        %v2162 = vpop.f32.mrb[0].mxu0
        %2163 = vdwg.mxu0
        %v2168 = vcombine.low %v1994, %v1996
        %v2169 = vcombine.low %v2158, %v2160
        %v2171 = vunpack.c.l.s4 1983009808
        %v2172 = vunpack.c.0.s8 %v2171
        %v2173 = vlaneseq
        %v2174 = vshrl.u32 %v2173, 7
        %v2175 = vsub.s32 %v2172, %v2174
        %v2176 = vrot.slane %v2168, %v2175
        %v2178 = vunpack.c.l.s4 1983009808
        %v2179 = vunpack.c.0.s8 %v2178
        %v2180 = vlaneseq
        %v2181 = vshrl.u32 %v2180, 7
        %v2182 = vsub.s32 %v2179, %v2181
        %v2183 = vrot.slane %v2169, %v2182
        %v2184 = vcombine.low %v2176, %v2183
        %v2186 = vadd.f32 %v240, %v2184
        %2187 = vst [vmem:[#allocation2] sm:$0xff] %v2186
        %p2188 = scmp.eq.s32.totalorder %s17, 3
        // Predicated region
        $region45: #{medical_cnn_forward.5} parent=39 // pred_check
          %p2189 = pneg %p2188
        $region46: #{medical_cnn_forward.5} parent=39 // pred_check_branch
          %2191 = sbr.rel (%p2189) target = $region48
        $region47: #{medical_cnn_forward.5} parent=39 // pred_region
          %v2192 = vld [vmem:[#allocation2] sm:$0xff]
          %v2193 = vld [vmem:[%s2] sm:$0xf]
          %v2195 = vlaneseq
          %v2196 = vshrl.u32 %v2195, 7
          %v2197 = vsub.s32 0, %v2196
          %v2198 = vrot.slane %v2193, %v2197
          %v2199 = vlaneseq
          %v2200 = vshrl.u32 %v2199, 7
          %v2201 = vsub.s32 1, %v2200
          %v2202 = vrot.slane %v2193, %v2201
          %v2203 = vlaneseq
          %v2204 = vshrl.u32 %v2203, 7
          %v2205 = vsub.s32 2, %v2204
          %v2206 = vrot.slane %v2193, %v2205
          %v2207 = vlaneseq
          %v2208 = vshrl.u32 %v2207, 7
          %v2209 = vsub.s32 3, %v2208
          %v2210 = vrot.slane %v2193, %v2209
          %v2211 = vcombine.low %v2198, %v2202
          %v2212 = vcombine.low %v2206, %v2210
          %v2214 = vunpack.c.l.s4 1983009808
          %v2215 = vunpack.c.0.s8 %v2214
          %v2216 = vlaneseq
          %v2217 = vshrl.u32 %v2216, 7
          %v2218 = vsub.s32 %v2215, %v2217
          %v2219 = vrot.slane %v2211, %v2218
          %v2221 = vunpack.c.l.s4 1983009808
          %v2222 = vunpack.c.0.s8 %v2221
          %v2223 = vlaneseq
          %v2224 = vshrl.u32 %v2223, 7
          %v2225 = vsub.s32 %v2222, %v2224
          %v2226 = vrot.slane %v2212, %v2225
          %v2227 = vcombine.low %v2219, %v2226
          %v2229 = vadd.f32 %v2192, %v2227
          %v2230 = vmax.f32 %v2229, 0.0
          %v2231 = vld [vmem:[%s3] sm:$0xff]
          %v2232 = vld [vmem:[%s3 + $0x8] sm:$0xff]
          %v2233 = vld [vmem:[%s3 + $0x10] sm:$0xff]
          %v2234 = vld [vmem:[%s3 + $0x18] sm:$0xff]
          %v2235 = vld [vmem:[%s3 + $0x20] sm:$0xff]
          %v2236 = vld [vmem:[%s3 + $0x28] sm:$0xff]
          %v2237 = vld [vmem:[%s3 + $0x30] sm:$0xff]
          %v2238 = vld [vmem:[%s3 + $0x38] sm:$0xff]
          %v2239 = vld [vmem:[%s3 + $0x40] sm:$0xff]
          %v2240 = vld [vmem:[%s3 + $0x48] sm:$0xff]
          %v2241 = vld [vmem:[%s3 + $0x50] sm:$0xff]
          %v2242 = vld [vmem:[%s3 + $0x58] sm:$0xff]
          %v2243 = vld [vmem:[%s3 + $0x60] sm:$0xff]
          %v2244 = vld [vmem:[%s3 + $0x68] sm:$0xff]
          %v2245 = vld [vmem:[%s3 + $0x70] sm:$0xff]
          %v2246 = vld [vmem:[%s3 + $0x78] sm:$0xff]
          %v2247 = vld [vmem:[%s3 + $0x80] sm:$0xff]
          %v2248 = vld [vmem:[%s3 + $0x88] sm:$0xff]
          %v2249 = vld [vmem:[%s3 + $0x90] sm:$0xff]
          %v2250 = vld [vmem:[%s3 + $0x98] sm:$0xff]
          %v2251 = vld [vmem:[%s3 + $0xa0] sm:$0xff]
          %v2252 = vld [vmem:[%s3 + $0xa8] sm:$0xff]
          %v2253 = vld [vmem:[%s3 + $0xb0] sm:$0xff]
          %v2254 = vld [vmem:[%s3 + $0xb8] sm:$0xff]
          %v2255 = vld [vmem:[%s3 + $0xc0] sm:$0xff]
          %v2256 = vld [vmem:[%s3 + $0xc8] sm:$0xff]
          %v2257 = vld [vmem:[%s3 + $0xd0] sm:$0xff]
          %v2258 = vld [vmem:[%s3 + $0xd8] sm:$0xff]
          %v2259 = vld [vmem:[%s3 + $0xe0] sm:$0xff]
          %v2260 = vld [vmem:[%s3 + $0xe8] sm:$0xff]
          %v2261 = vld [vmem:[%s3 + $0xf0] sm:$0xff]
          %v2262 = vld [vmem:[%s3 + $0xf8] sm:$0xff]
          %v2263 = vld [vmem:[%s3 + $0x100] sm:$0xff]
          %v2264 = vld [vmem:[%s3 + $0x108] sm:$0xff]
          %v2265 = vld [vmem:[%s3 + $0x110] sm:$0xff]
          %v2266 = vld [vmem:[%s3 + $0x118] sm:$0xff]
          %v2267 = vld [vmem:[%s3 + $0x120] sm:$0xff]
          %v2268 = vld [vmem:[%s3 + $0x128] sm:$0xff]
          %v2269 = vld [vmem:[%s3 + $0x130] sm:$0xff]
          %v2270 = vld [vmem:[%s3 + $0x138] sm:$0xff]
          %v2271 = vld [vmem:[%s3 + $0x140] sm:$0xff]
          %v2272 = vld [vmem:[%s3 + $0x148] sm:$0xff]
          %v2273 = vld [vmem:[%s3 + $0x150] sm:$0xff]
          %v2274 = vld [vmem:[%s3 + $0x158] sm:$0xff]
          %v2275 = vld [vmem:[%s3 + $0x160] sm:$0xff]
          %v2276 = vld [vmem:[%s3 + $0x168] sm:$0xff]
          %v2277 = vld [vmem:[%s3 + $0x170] sm:$0xff]
          %v2278 = vld [vmem:[%s3 + $0x178] sm:$0xff]
          %v2279 = vld [vmem:[%s3 + $0x180] sm:$0xff]
          %v2280 = vld [vmem:[%s3 + $0x188] sm:$0xff]
          %v2281 = vld [vmem:[%s3 + $0x190] sm:$0xff]
          %v2282 = vld [vmem:[%s3 + $0x198] sm:$0xff]
          %v2283 = vld [vmem:[%s3 + $0x1a0] sm:$0xff]
          %v2284 = vld [vmem:[%s3 + $0x1a8] sm:$0xff]
          %v2285 = vld [vmem:[%s3 + $0x1b0] sm:$0xff]
          %v2286 = vld [vmem:[%s3 + $0x1b8] sm:$0xff]
          %v2287 = vld [vmem:[%s3 + $0x1c0] sm:$0xff]
          %v2288 = vld [vmem:[%s3 + $0x1c8] sm:$0xff]
          %v2289 = vld [vmem:[%s3 + $0x1d0] sm:$0xff]
          %v2290 = vld [vmem:[%s3 + $0x1d8] sm:$0xff]
          %v2291 = vld [vmem:[%s3 + $0x1e0] sm:$0xff]
          %v2292 = vld [vmem:[%s3 + $0x1e8] sm:$0xff]
          %v2293 = vld [vmem:[%s3 + $0x1f0] sm:$0xff]
          %v2294 = vld [vmem:[%s3 + $0x1f8] sm:$0xff]
          %v2295 = vld [vmem:[%s4] sm:$0x1]
          %v2297 = vlaneseq
          %v2298 = vshrl.u32 %v2297, 7
          %v2299 = vsub.s32 0, %v2298
          %v2300 = vrot.slane %v2295, %v2299
          %v2303 = vcombine.high %v2230, %v2230
          %v2305 = vunpack.c.l.s4 1983009808
          %v2306 = vunpack.c.0.s8 %v2305
          %v2307 = vlaneseq
          %v2308 = vshrl.u32 %v2307, 7
          %v2309 = vsub.s32 %v2306, %v2308
          %v2310 = vrot.slane %v2230, %v2309
          %v2312 = vunpack.c.l.s4 1983009808
          %v2313 = vunpack.c.0.s8 %v2312
          %v2314 = vlaneseq
          %v2315 = vshrl.u32 %v2314, 7
          %v2316 = vsub.s32 %v2313, %v2315
          %v2317 = vrot.slane %v2303, %v2316
          %v2318 = vcombine.high %v2310, %v2310
          %v2319 = vcombine.high %v2317, %v2317
          %2324 = vmatprep.subr.mxu0 0.0
          %2325 = vmatpush1.msra.mxu0 %v2231
          %2326 = vmatprep.subr.mxu0 0.0
          %2327 = vmatpush1.msra.mxu0 %v2232
          %2328 = vmatprep.subr.mxu0 0.0
          %2329 = vmatpush1.msra.mxu0 %v2233
          %2330 = vmatprep.subr.mxu0 0.0
          %2331 = vmatpush1.msra.mxu0 %v2234
          %2332 = vmatprep.subr.mxu0 0.0
          %2333 = vmatpush1.msra.mxu0 %v2235
          %2334 = vmatprep.subr.mxu0 0.0
          %2335 = vmatpush1.msra.mxu0 %v2236
          %2336 = vmatprep.subr.mxu0 0.0
          %2337 = vmatpush1.msra.mxu0 %v2237
          %2338 = vmatprep.subr.mxu0 0.0
          %2339 = vmatpush1.msra.mxu0 %v2238
          %2340 = vmatprep.subr.mxu0 0.0
          %2341 = vmatpush1.msra.mxu0 %v2239
          %2342 = vmatprep.subr.mxu0 0.0
          %2343 = vmatpush1.msra.mxu0 %v2240
          %2344 = vmatprep.subr.mxu0 0.0
          %2345 = vmatpush1.msra.mxu0 %v2241
          %2346 = vmatprep.subr.mxu0 0.0
          %2347 = vmatpush1.msra.mxu0 %v2242
          %2348 = vmatprep.subr.mxu0 0.0
          %2349 = vmatpush1.msra.mxu0 %v2243
          %2350 = vmatprep.subr.mxu0 0.0
          %2351 = vmatpush1.msra.mxu0 %v2244
          %2352 = vmatprep.subr.mxu0 0.0
          %2353 = vmatpush1.msra.mxu0 %v2245
          %2354 = vmatprep.subr.mxu0 0.0
          %2355 = vmatpush1.msra.mxu0 %v2246
          %2356 = vmatprep.subr.mxu0 0.0
          %2357 = vmatpush1.msra.mxu0 %v2247
          %2358 = vmatprep.subr.mxu0 0.0
          %2359 = vmatpush1.msra.mxu0 %v2248
          %2360 = vmatprep.subr.mxu0 0.0
          %2361 = vmatpush1.msra.mxu0 %v2249
          %2362 = vmatprep.subr.mxu0 0.0
          %2363 = vmatpush1.msra.mxu0 %v2250
          %2364 = vmatprep.subr.mxu0 0.0
          %2365 = vmatpush1.msra.mxu0 %v2251
          %2366 = vmatprep.subr.mxu0 0.0
          %2367 = vmatpush1.msra.mxu0 %v2252
          %2368 = vmatprep.subr.mxu0 0.0
          %2369 = vmatpush1.msra.mxu0 %v2253
          %2370 = vmatprep.subr.mxu0 0.0
          %2371 = vmatpush1.msra.mxu0 %v2254
          %2372 = vmatprep.subr.mxu0 0.0
          %2373 = vmatpush1.msra.mxu0 %v2255
          %2374 = vmatprep.subr.mxu0 0.0
          %2375 = vmatpush1.msra.mxu0 %v2256
          %2376 = vmatprep.subr.mxu0 0.0
          %2377 = vmatpush1.msra.mxu0 %v2257
          %2378 = vmatprep.subr.mxu0 0.0
          %2379 = vmatpush1.msra.mxu0 %v2258
          %2380 = vmatprep.subr.mxu0 0.0
          %2381 = vmatpush1.msra.mxu0 %v2259
          %2382 = vmatprep.subr.mxu0 0.0
          %2383 = vmatpush1.msra.mxu0 %v2260
          %2384 = vmatprep.subr.mxu0 0.0
          %2385 = vmatpush1.msra.mxu0 %v2261
          %2386 = vmatprep.subr.mxu0 0.0
          %2387 = vmatpush1.msra.mxu0 %v2262
          %2388 = vmatprep.mubr.f32.mxu0 %v2318
          %2389 = vmatmul.mubr.f32.gmra.mrb[0].mxu0 %v2310
          %v2390 = vpop.f32.mrb[0].mxu0
          %v2391 = vadd.f32 %v2300, %v2390
          %v2392 = vpop.f32.mrb[0].mxu0
          %2393 = vdwg.mxu0
          %2394 = vmatprep.subr.mxu0 0.0
          %2395 = vmatpush1.msra.mxu0 %v2263
          %2396 = vmatprep.subr.mxu0 0.0
          %2397 = vmatpush1.msra.mxu0 %v2264
          %2398 = vmatprep.subr.mxu0 0.0
          %2399 = vmatpush1.msra.mxu0 %v2265
          %2400 = vmatprep.subr.mxu0 0.0
          %2401 = vmatpush1.msra.mxu0 %v2266
          %2402 = vmatprep.subr.mxu0 0.0
          %2403 = vmatpush1.msra.mxu0 %v2267
          %2404 = vmatprep.subr.mxu0 0.0
          %2405 = vmatpush1.msra.mxu0 %v2268
          %2406 = vmatprep.subr.mxu0 0.0
          %2407 = vmatpush1.msra.mxu0 %v2269
          %2408 = vmatprep.subr.mxu0 0.0
          %2409 = vmatpush1.msra.mxu0 %v2270
          %2410 = vmatprep.subr.mxu0 0.0
          %2411 = vmatpush1.msra.mxu0 %v2271
          %2412 = vmatprep.subr.mxu0 0.0
          %2413 = vmatpush1.msra.mxu0 %v2272
          %2414 = vmatprep.subr.mxu0 0.0
          %2415 = vmatpush1.msra.mxu0 %v2273
          %2416 = vmatprep.subr.mxu0 0.0
          %2417 = vmatpush1.msra.mxu0 %v2274
          %2418 = vmatprep.subr.mxu0 0.0
          %2419 = vmatpush1.msra.mxu0 %v2275
          %2420 = vmatprep.subr.mxu0 0.0
          %2421 = vmatpush1.msra.mxu0 %v2276
          %2422 = vmatprep.subr.mxu0 0.0
          %2423 = vmatpush1.msra.mxu0 %v2277
          %2424 = vmatprep.subr.mxu0 0.0
          %2425 = vmatpush1.msra.mxu0 %v2278
          %2426 = vmatprep.subr.mxu0 0.0
          %2427 = vmatpush1.msra.mxu0 %v2279
          %2428 = vmatprep.subr.mxu0 0.0
          %2429 = vmatpush1.msra.mxu0 %v2280
          %2430 = vmatprep.subr.mxu0 0.0
          %2431 = vmatpush1.msra.mxu0 %v2281
          %2432 = vmatprep.subr.mxu0 0.0
          %2433 = vmatpush1.msra.mxu0 %v2282
          %2434 = vmatprep.subr.mxu0 0.0
          %2435 = vmatpush1.msra.mxu0 %v2283
          %2436 = vmatprep.subr.mxu0 0.0
          %2437 = vmatpush1.msra.mxu0 %v2284
          %2438 = vmatprep.subr.mxu0 0.0
          %2439 = vmatpush1.msra.mxu0 %v2285
          %2440 = vmatprep.subr.mxu0 0.0
          %2441 = vmatpush1.msra.mxu0 %v2286
          %2442 = vmatprep.subr.mxu0 0.0
          %2443 = vmatpush1.msra.mxu0 %v2287
          %2444 = vmatprep.subr.mxu0 0.0
          %2445 = vmatpush1.msra.mxu0 %v2288
          %2446 = vmatprep.subr.mxu0 0.0
          %2447 = vmatpush1.msra.mxu0 %v2289
          %2448 = vmatprep.subr.mxu0 0.0
          %2449 = vmatpush1.msra.mxu0 %v2290
          %2450 = vmatprep.subr.mxu0 0.0
          %2451 = vmatpush1.msra.mxu0 %v2291
          %2452 = vmatprep.subr.mxu0 0.0
          %2453 = vmatpush1.msra.mxu0 %v2292
          %2454 = vmatprep.subr.mxu0 0.0
          %2455 = vmatpush1.msra.mxu0 %v2293
          %2456 = vmatprep.subr.mxu0 0.0
          %2457 = vmatpush1.msra.mxu0 %v2294
          %2458 = vmatprep.mubr.f32.mxu0 %v2319
          %2459 = vmatmul.mubr.f32.gmra.mrb[0].mxu0 %v2317
          %v2460 = vpop.f32.mrb[0].mxu0
          %v2461 = vadd.f32 %v2391, %v2460
          %v2462 = vpop.f32.mrb[0].mxu0
          %2463 = vdwg.mxu0
          %vm2464 = vcmask 9216
          %2465 = vst.msk [vmem:[#allocation3] sm:$0x3] %vm2464, %v2461
        $region48: #{medical_cnn_forward.5} parent=39 // pred_fallthru
          _
        // Predicated region
        $region49: #{medical_cnn_forward.5} parent=39 // pred_check
          %p2466 = pneg %p145
        $region50: #{medical_cnn_forward.5} parent=39 // pred_check_branch
          %2468 = sbr.rel (%p2466) target = $region52
        $region51: #{medical_cnn_forward.5} parent=39 // pred_region
          %s2470 = ssub.s32 32, 32
          %2471 = vsyncadd [#allocation4], %s2470
          %s2473 = sshll.u32 [#allocation3], 4
          %s2474 = int_to_ptr.vmem [resolvable:$true] %s2473
          %2476 = dma.vmem_to_hbm [thread:$0]  %s2474, 32, %s5, [#allocation4]
        $region52: #{medical_cnn_forward.5} parent=39 // pred_fallthru
          _
        // Predicated region
        $region53: #{medical_cnn_forward.5} parent=39 // pred_check
          %p2477 = pneg %p145
        $region54: #{medical_cnn_forward.5} parent=39 // pred_check_branch
          %2479 = sbr.rel (%p2477) target = $region56
        $region55: #{medical_cnn_forward.5} parent=39 // pred_region
          %2480 = dma.done [#allocation4], 32
        $region56: #{medical_cnn_forward.5} parent=39 // pred_fallthru
          _
      $region40: #{medical_cnn_forward.5} parent=5 // pred_fallthru
        _
      %p2481 = scmp.le.s32.totalorder 2, %s12
      // Predicated region
      $region57: #{medical_cnn_forward.5} parent=5 // pred_check
        %p2482 = pneg %p2481
      $region58: #{medical_cnn_forward.5} parent=5 // pred_check_branch
        %2484 = sbr.rel (%p2482) target = $region60
      $region59: #{medical_cnn_forward.5} parent=5 // pred_region
        %s2485 = ssub.s32 %s12, 2
      $region60: #{medical_cnn_forward.5} parent=5 // pred_fallthru
        _
    $region6: #{medical_cnn_forward.5} parent=1 // loop_footer
      %s16 = sadd.s32 1, %s12
    $region7: #{medical_cnn_forward.5} parent=1 // loop_footer_branch
      %11 = sbr.rel target = $region3
    $region8: #{medical_cnn_forward.5} parent=1 // loop_exit
      _
    %2486 = vsyncpa [#allocation4], 1
    %s2487 = scalar_lea.sflag [#allocation4], 1
    %2488 = vsyncpa %s2487, 1

</llo_original>
